<compile_context>
chip_gen: v7x
topology: tpu7x:2x2x1
jax: 0.10.0
libtpu: 0.0.40
codegen_flags: <defaults>
</compile_context>

<pallas_src>
import functools
import math

import jax
import jax.numpy as jnp
import numpy as np
from jax import lax
from jax.experimental import pallas as pl
from jax.experimental.pallas import tpu as pltpu


def _round_up(x, m):
    return ((x + m - 1) // m) * m


# ----------------------------- Pallas kernel -------------------------------

def _attn_kernel(q_ref, k_ref, v_ref, o_ref, *, scale2, kv_len, kv_len_padded,
                 matmul_dtype=None):
    """Attention for hb heads x one query tile.

    q_ref : (hb, C, Tq)   queries for hb heads / one query tile
    k_ref : (hb, C, Sp)   keys   (K half of kv, zero-padded to Sp)
    v_ref : (hb, C, Sp)   values (V half of kv, zero-padded to Sp)
    o_ref : (hb, C, Tq)   attention output
    """
    q = q_ref[...]
    k = k_ref[...]
    v = v_ref[...]

    # Fold scale^2 into the small q operand (C*Tq elements, not Tq*S).
    qs = q * scale2
    if matmul_dtype is not None:
        qs = qs.astype(matmul_dtype)
        k = k.astype(matmul_dtype)

    # scores[h, t, s] = sum_c q[h,c,t]*k[h,c,s]*scale^2.
    # lhs contracts a non-minor dim -> only the small (C,Tq) q tile may need a
    # transpose; rhs k is in canonical (K, N) layout.
    s = lax.dot_general(
        qs, k,
        dimension_numbers=(((1,), (1,)), ((0,), (0,))),
        preferred_element_type=jnp.float32)                 # (hb, Tq, Sp) f32

    # Mask padded key columns (only emitted when S was padded to 128 lanes).
    if kv_len_padded != kv_len:
        col = lax.broadcasted_iota(jnp.int32, (1, 1, kv_len_padded), 2)
        s = jnp.where(col < kv_len, s, -jnp.inf)

    # Softmax statistics over S in float32 (matches torch softmax(w.float())).
    m = jnp.max(s, axis=-1, keepdims=True)
    p = jnp.exp(s - m)                                      # unnormalized
    l = jnp.sum(p, axis=-1, keepdims=True)
    inv_l = pl.reciprocal(l, approx=False)                  # (hb, Tq, 1)

    pv_dtype = matmul_dtype if matmul_dtype is not None else q_ref.dtype
    pw = p.astype(pv_dtype)                                 # .type(weight.dtype)
    vv = v.astype(pv_dtype) if matmul_dtype is not None else v

    # a[h, t, c] = sum_s p[h,t,s]*v[h,c,s] : the big p tile contracts on its
    # minor dim (canonical), only the small (C,Sp) v operand is transposed.
    a = lax.dot_general(
        pw, vv,
        dimension_numbers=(((2,), (2,)), ((0,), (0,))),
        preferred_element_type=jnp.float32)                 # (hb, Tq, C) f32

    # Deferred softmax normalization: C*Tq multiply instead of Tq*S divide.
    a = a * inv_l

    # Small XLU transpose of the (Tq, C) result into the module's (C, T)
    # output layout -> no wrapper transpose over HBM, lane-dense stores.
    o_ref[...] = jnp.swapaxes(a, 1, 2).astype(o_ref.dtype)


# ------------------------------ JAX wrapper --------------------------------

def qkv_attention_legacy(q, kv, n_heads, *, matmul_dtype=None):
    """q: [N, H*C, T], kv: [N, H*2C, S]  ->  [N, H*C, T].

    `matmul_dtype` (e.g. jnp.bfloat16) optionally casts the MXU operands
    (accuracy flag; accumulation and softmax stay f32).
    """
    bs, width, T = q.shape
    _, width_kv, S = kv.shape
    assert width % n_heads == 0
    ch = width // n_heads
    assert width_kv == 2 * ch * n_heads
    B = bs * n_heads
    scale = 1.0 / math.sqrt(math.sqrt(ch))
    scale2 = scale * scale
    dtype = q.dtype
    itemsize = jnp.dtype(dtype).itemsize

    # Contiguous (free) reshapes only.
    q_r = q.reshape(B, ch, T)
    kv_r = kv.reshape(B, 2 * ch, S)

    # Sublane alignment for the K/V half BlockSpecs: pad channel dim to a
    # multiple of 8 in the rare misaligned case (zero channels are inert).
    chp = _round_up(ch, 8)
    if chp != ch:
        k_half = jnp.pad(kv_r[:, :ch, :], ((0, 0), (0, chp - ch), (0, 0)))
        v_half = jnp.pad(kv_r[:, ch:, :], ((0, 0), (0, chp - ch), (0, 0)))
        kv_r = jnp.concatenate([k_half, v_half], axis=1)
        q_r = jnp.pad(q_r, ((0, 0), (0, chp - ch), (0, 0)))

    # Lane-dense (multiple-of-128) query and kv lengths.
    Tp = _round_up(T, 128)
    Sp = _round_up(S, 128)
    if Tp != T:
        q_r = jnp.pad(q_r, ((0, 0), (0, 0), (0, Tp - T)))
    if Sp != S:
        kv_r = jnp.pad(kv_r, ((0, 0), (0, 0), (0, Sp - S)))

    # Query-tile size: lane-dense, smaller when S (whole-S blocks) is large so
    # the f32 (tq,Sp) intermediates + double-buffered kv fit v7x's 64 MiB.
    if Sp >= 8192:
        cap = 128
    elif Sp >= 2048:
        cap = 256
    else:
        cap = 512
    tq = min(Tp, cap)
    while Tp % tq:
        tq -= 128

    # Heads per grid step: amortize the ~0.35us per-step overhead when the
    # per-head tiles are tiny, under a rough VMEM budget.
    per_head = (2 * tq * Sp * 4                      # f32 score/exp tiles
                + 2 * (2 * chp) * Sp * itemsize      # K+V halves, double-buffered
                + 2 * 2 * chp * tq * itemsize)       # q/out blocks
    hb = max(1, min(B, (8 * 1024 * 1024) // max(per_head, 1), 16))
    while B % hb:
        hb -= 1

    grid = (B // hb, Tp // tq)

    kernel = functools.partial(
        _attn_kernel, scale2=scale2, kv_len=S, kv_len_padded=Sp,
        matmul_dtype=matmul_dtype)

    out = pl.pallas_call(
        kernel,
        out_shape=jax.ShapeDtypeStruct((B, chp, Tp), dtype),
        grid=grid,
        in_specs=[
            pl.BlockSpec((hb, chp, tq), lambda g, t: (g, 0, t)),
            # Two views of the SAME kv array: block index 0 / 1 along the
            # channel dim select the K / V halves (no in-kernel sublane slice,
            # kv is still read from HBM exactly once per head group).
            pl.BlockSpec((hb, chp, Sp), lambda g, t: (g, 0, 0)),   # K half
            pl.BlockSpec((hb, chp, Sp), lambda g, t: (g, 1, 0)),   # V half
        ],
        out_specs=pl.BlockSpec((hb, chp, tq), lambda g, t: (g, 0, t)),
        compiler_params=pltpu.CompilerParams(
            dimension_semantics=("parallel", "arbitrary"),
            vmem_limit_bytes=48 * 1024 * 1024),
    )(q_r, kv_r, kv_r)

    # Drop channel / length padding (no-op copies when nothing was padded);
    # the final module reshape is contiguous (free).
    out = out[:, :ch, :T]
    return out.reshape(bs, n_heads * ch, T)


class MyQKVAttentionLegacy:
    """JAX/Pallas port of my_QKVAttentionLegacy (legacy QKV attention)."""

    def __init__(self, n_heads):
        self.n_heads = n_heads

    def __call__(self, q, kv):
        return qkv_attention_legacy(q, kv, self.n_heads)


# ------------------------------ reference ----------------------------------

def _reference(q, kv, n_heads):
    bs, width, T = q.shape
    _, _, S = kv.shape
    ch = width // n_heads
    qr = q.reshape(bs * n_heads, ch, T)
    kvr = kv.reshape(bs * n_heads, 2 * ch, S)
    k, v = kvr[:, :ch, :], kvr[:, ch:, :]
    scale = 1.0 / math.sqrt(math.sqrt(ch))
    w = jnp.einsum('bct,bcs->bts', qr * scale, k * scale)
    w = jax.nn.softmax(w.astype(jnp.float32), axis=-1).astype(w.dtype)
    a = jnp.einsum('bts,bcs->bct', w, v)
    return a.reshape(bs, -1, T)


# --------------------------------- main ------------------------------------

if __name__ == "__main__":
    key = jax.random.PRNGKey(0)

    configs = [
        # (bs, n_heads, ch, T, S)
        (2, 4, 16, 8, 16),     # tiny, exercises T/S lane padding + key masking
        (1, 2, 32, 64, 64),    # 8x8 diffusion-style attention map
    ]

    for bs, n_heads, ch, T, S in configs:
        key, kq, kkv = jax.random.split(key, 3)
        q = jax.random.normal(kq, (bs, n_heads * ch, T), jnp.float32)
        kv = jax.random.normal(kkv, (bs, n_heads * 2 * ch, S), jnp.float32)

        attn = MyQKVAttentionLegacy(n_heads)
        y = jax.block_until_ready(attn(q, kv))
        assert y.shape == (bs, n_heads * ch, T)

        ref = _reference(q, kv, n_heads)
        np.testing.assert_allclose(np.asarray(y), np.asarray(ref),
                                   rtol=2e-5, atol=2e-5)

    print("KERNEL_OK")
</pallas_src>

<mosaic_0001>
module attributes {stable_mosaic.version = 11 : i64} {
  func.func @_attn_kernel(%arg0: i32, %arg1: i32, %arg2: memref<8x16x128xf32, #tpu.memory_space<vmem>>, %arg3: memref<8x16x128xf32, #tpu.memory_space<vmem>>, %arg4: memref<8x16x128xf32, #tpu.memory_space<vmem>>, %arg5: memref<8x16x128xf32, #tpu.memory_space<vmem>>) attributes {dimension_semantics = [#tpu.dimension_semantics<parallel>, #tpu.dimension_semantics<arbitrary>], iteration_bounds = array<i64: 1, 1>, scalar_prefetch = 0 : i64, scratch_operands = 0 : i64, tpu.core_type = #tpu.core_type<tc>, window_params = [{transform_indices = @transform_0, window_bounds = array<i64: 8, 16, 128>}, {transform_indices = @transform_1, window_bounds = array<i64: 8, 16, 128>}, {transform_indices = @transform_2, window_bounds = array<i64: 8, 16, 128>}, {transform_indices = @transform_3, window_bounds = array<i64: 8, 16, 128>}]} {
    %c0 = arith.constant 0 : index
    %c0_0 = arith.constant 0 : index
    %c0_1 = arith.constant 0 : index
    %0 = vector.load %arg2[%c0, %c0_0, %c0_1] : memref<8x16x128xf32, #tpu.memory_space<vmem>>, vector<8x16x128xf32>
    %c0_2 = arith.constant 0 : index
    %c0_3 = arith.constant 0 : index
    %c0_4 = arith.constant 0 : index
    %1 = vector.load %arg3[%c0_2, %c0_3, %c0_4] : memref<8x16x128xf32, #tpu.memory_space<vmem>>, vector<8x16x128xf32>
    %c0_5 = arith.constant 0 : index
    %c0_6 = arith.constant 0 : index
    %c0_7 = arith.constant 0 : index
    %2 = vector.load %arg4[%c0_5, %c0_6, %c0_7] : memref<8x16x128xf32, #tpu.memory_space<vmem>>, vector<8x16x128xf32>
    %cst = arith.constant 2.500000e-01 : f32
    %3 = vector.broadcast %cst : f32 to vector<8x16x128xf32>
    %4 = arith.mulf %0, %3 : vector<8x16x128xf32>
    %cst_8 = arith.constant dense<0.000000e+00> : vector<8x128x128xf32>
    %5 = tpu.matmul %4, %1, %cst_8 {dimension_numbers = #tpu.dot_dimension_numbers<[1], [1], [2], [2], [0, 0, 0, 2, 1, 2], [0], [0]>} : vector<8x16x128xf32>, vector<8x16x128xf32>, vector<8x128x128xf32> -> vector<8x128x128xf32>
    %6 = tpu.iota {dimensions = array<i32: 2>} : vector<1x1x128xi32>
    %c16_i32 = arith.constant 16 : i32
    %7 = vector.broadcast %c16_i32 : i32 to vector<1x1x128xi32>
    %8 = arith.cmpi slt, %6, %7 : vector<1x1x128xi32>
    %cst_9 = arith.constant 0xFF800000 : f32
    %9 = vector.shape_cast %8 : vector<1x1x128xi1> to vector<1x1x128xi1>
    %10 = vector.broadcast %9 : vector<1x1x128xi1> to vector<8x128x128xi1>
    %11 = vector.broadcast %cst_9 : f32 to vector<8x128x128xf32>
    %12 = arith.select %10, %5, %11 : vector<8x128x128xi1>, vector<8x128x128xf32>
    %cst_10 = arith.constant dense<0xFF800000> : vector<8x128xf32>
    %13 = vector.multi_reduction <maximumf>, %12, %cst_10 [2] : vector<8x128x128xf32> to vector<8x128xf32>
    %14 = vector.shape_cast %13 : vector<8x128xf32> to vector<8x128x1xf32>
    %15 = vector.broadcast %14 : vector<8x128x1xf32> to vector<8x128x128xf32>
    %16 = arith.subf %12, %15 : vector<8x128x128xf32>
    %17 = math.exp %16 : vector<8x128x128xf32>
    %cst_11 = arith.constant dense<0.000000e+00> : vector<8x128xf32>
    %18 = vector.multi_reduction <add>, %17, %cst_11 [2] : vector<8x128x128xf32> to vector<8x128xf32>
    %19 = vector.shape_cast %18 : vector<8x128xf32> to vector<8x128x1xf32>
    %20 = tpu.reciprocal %19 : vector<8x128x1xf32> -> vector<8x128x1xf32>
    %cst_12 = arith.constant dense<0.000000e+00> : vector<8x128x16xf32>
    %21 = tpu.matmul %17, %2, %cst_12 {dimension_numbers = #tpu.dot_dimension_numbers<[2], [2], [1], [1], [0, 0, 0, 1, 1, 1], [0], [0]>} : vector<8x128x128xf32>, vector<8x16x128xf32>, vector<8x128x16xf32> -> vector<8x128x16xf32>
    %22 = vector.broadcast %20 : vector<8x128x1xf32> to vector<8x128x16xf32>
    %23 = arith.mulf %21, %22 : vector<8x128x16xf32>
    %24 = tpu.transpose %23, [0, 2, 1] : vector<8x128x16xf32> -> vector<8x16x128xf32>
    %c0_13 = arith.constant 0 : index
    %c0_14 = arith.constant 0 : index
    %c0_15 = arith.constant 0 : index
    %25 = vector.load %arg5[%c0_13, %c0_14, %c0_15] : memref<8x16x128xf32, #tpu.memory_space<vmem>>, vector<8x16x128xf32>
    tpu.vector_store %arg5[%c0_13, %c0_14, %c0_15], %24 {strides = array<i32>} : memref<8x16x128xf32, #tpu.memory_space<vmem>>, vector<8x16x128xf32>,
    return
  }
  func.func @transform_0(%arg0: i32, %arg1: i32) -> (i32, i32, i32) {
    %c0_i32 = arith.constant 0 : i32
    %c0_i32_0 = arith.constant 0 : i32
    return %arg0, %c0_i32, %arg1 : i32, i32, i32
  }
  func.func @transform_1(%arg0: i32, %arg1: i32) -> (i32, i32, i32) {
    %c0_i32 = arith.constant 0 : i32
    %c0_i32_0 = arith.constant 0 : i32
    %c0_i32_1 = arith.constant 0 : i32
    return %arg0, %c0_i32, %c0_i32_0 : i32, i32, i32
  }
  func.func @transform_2(%arg0: i32, %arg1: i32) -> (i32, i32, i32) {
    %c1_i32 = arith.constant 1 : i32
    %c0_i32 = arith.constant 0 : i32
    %c0_i32_0 = arith.constant 0 : i32
    return %arg0, %c1_i32, %c0_i32 : i32, i32, i32
  }
  func.func @transform_3(%arg0: i32, %arg1: i32) -> (i32, i32, i32) {
    %c0_i32 = arith.constant 0 : i32
    %c0_i32_0 = arith.constant 0 : i32
    return %arg0, %c0_i32, %arg1 : i32, i32, i32
  }
}

</mosaic_0001>

<llo_original>
// kernel: tpu_custom_call.1
$region0: #{tpu_custom_call.1}
  #allocation0 [shape = 'u32[]', space=smem, size = 0x4, offset = 0x4, fixed_abs, tag = 'smem constant byte address 0x4 - core index']
  #allocation1 [shape = 'u32[144,128]{1,0:T(1,128)}', space=vmem, size = 0x12000, scoped, tag = 'internal scratch']
  #allocation9 [shape = 's32[]', space=sflag, size = 0x4, offset = 0, fixed_abs, tag = 'sflag constant byte address 0x0 - dummy sync flag']
  #allocation11 [shape = 's32[]', space=sflag, size = 0x4, offset = 0, fixed_abs, tag = 'sflag constant byte address 0x0 - dummy sync flag']
  %s0 = inlined_call_operand.hbm [shape: f32[8,16,128], index: 0, kind: input, shape index: {}]
  %s1 = inlined_call_operand.hbm [shape: f32[8,32,128], index: 1, kind: input, shape index: {}]
  %s2 = inlined_call_operand.hbm [shape: f32[8,32,128], index: 2, kind: input, shape index: {}]
  %s3 = inlined_call_operand.hbm [shape: f32[8,16,128], index: 3, kind: output, shape index: {}]
  %s4 = sld [smem:[#allocation0]]
  $region34: #{tpu_custom_call.1} parent=0
    _
  %s6 = ssub.s32 1, %s4
  %s7 = scalar_select 0, %s6, %s4
  $region1: #{tpu_custom_call.1} parent=0
    #allocation2 [shape = 'u8[65536]{0}', space=vmem, size = 0x10000, scoped, tag = 'input window, operand 0, single buffered']
    #allocation3 [shape = 's32[1]{0}', space=sflag, size = 0x4, scoped, tag = 'scoped memory for tpu_custom_call.1']
    #allocation4 [shape = 's32[1]{0}', space=sflag, size = 0x4, scoped, tag = 'scoped memory for tpu_custom_call.1']
    #allocation5 [shape = 'u8[65536]{0}', space=vmem, size = 0x10000, scoped, tag = 'input window, operand 1, single buffered']
    #allocation6 [shape = 's32[1]{0}', space=sflag, size = 0x4, scoped, tag = 'scoped memory for tpu_custom_call.1']
    #allocation7 [shape = 'u8[65536]{0}', space=vmem, size = 0x10000, scoped, tag = 'input window, operand 2, single buffered']
    #allocation8 [shape = 'u8[65536]{0}', space=vmem, size = 0x10000, scoped, tag = 'output window, operand 0, single buffered']
    %8 = vsyncpa [#allocation3], 0
    %9 = vsyncpa [#allocation6], 0
    %10 = vsyncpa [#allocation4], 0
    // Predicated region
    $region2: #{tpu_custom_call.1} parent=1 // pred_check
      _
    $region3: #{tpu_custom_call.1} parent=1 // pred_check_branch
      %12 = sbr.rel (0) target = $region5
    $region4: #{tpu_custom_call.1} parent=1 // pred_region
      %s14 = ssub.s32 2048, 2048
      %15 = vsyncadd [#allocation3], %s14
      %s16 = sshll.u32 [#allocation2], 4
      %s17 = int_to_ptr.vmem [resolvable:$true] %s16
      %22 = dma.hbm_to_vmem [thread:$0]  %s0, 2048, %s17, [#allocation3], 128, 128, 8
    $region5: #{tpu_custom_call.1} parent=1 // pred_fallthru
      _
    // Predicated region
    $region6: #{tpu_custom_call.1} parent=1 // pred_check
      _
    $region7: #{tpu_custom_call.1} parent=1 // pred_check_branch
      %24 = sbr.rel (0) target = $region9
    $region8: #{tpu_custom_call.1} parent=1 // pred_region
      #allocation10 [shape = 'u32[6]{0}', space=smem, size = 0x18, scoped, tag = 'DMA stride descriptor']
      %s26 = ssub.s32 2048, 2048
      %27 = vsyncadd [#allocation6], %s26
      %s29 = sshll.u32 1, 14
      %s30 = sxor.u32 4294967295, %s29
      %s32 = sld [smem:[#allocation0]]
      %s33 = sadd.s32 2, %s32
      %s35 = sshll.u32 7, 26
      %s36 = sxor.u32 4294967295, %s35
      %s37 = sand.u32 0, %s36
      %s38 = sshll.u32 %s33, 26
      %s39 = sor.u32 %s37, %s38
      %s40 = sshll.u32 [#allocation5], 4
      %s41 = int_to_ptr.vmem [resolvable:$true] %s40
      %47 = sst [smem:[#allocation10]] 512
      %s48 = scalar_lea.smem [#allocation10], 1
      %49 = sst [smem:[%s48]] 256
      %s50 = scalar_lea.smem [#allocation10], 2
      %51 = sst [smem:[%s50]] 2
      %s52 = scalar_lea.smem [#allocation10], 3
      %53 = sst [smem:[%s52]] 128
      %s54 = scalar_lea.smem [#allocation10], 4
      %55 = sst [smem:[%s54]] 128
      %s56 = scalar_lea.smem [#allocation10], 5
      %57 = sst [smem:[%s56]] 8
      %59 = dma.general %s1, 2048, %s41, [#allocation6], [#allocation9], [#allocation10], %s39, 0
    $region9: #{tpu_custom_call.1} parent=1 // pred_fallthru
      _
    // Predicated region
    $region10: #{tpu_custom_call.1} parent=1 // pred_check
      _
    $region11: #{tpu_custom_call.1} parent=1 // pred_check_branch
      %61 = sbr.rel (0) target = $region13
    $region12: #{tpu_custom_call.1} parent=1 // pred_region
      #allocation12 [shape = 'u32[6]{0}', space=smem, size = 0x18, scoped, tag = 'DMA stride descriptor']
      %s63 = ssub.s32 2048, 2048
      %64 = vsyncadd [#allocation6], %s63
      %s65 = scalar_lea.hbm %s2, 256
      %s67 = sshll.u32 1, 14
      %s68 = sxor.u32 4294967295, %s67
      %s70 = sld [smem:[#allocation0]]
      %s71 = sadd.s32 2, %s70
      %s73 = sshll.u32 7, 26
      %s74 = sxor.u32 4294967295, %s73
      %s75 = sand.u32 0, %s74
      %s76 = sshll.u32 %s71, 26
      %s77 = sor.u32 %s75, %s76
      %s78 = sshll.u32 [#allocation7], 4
      %s79 = int_to_ptr.vmem [resolvable:$true] %s78
      %85 = sst [smem:[#allocation12]] 512
      %s86 = scalar_lea.smem [#allocation12], 1
      %87 = sst [smem:[%s86]] 256
      %s88 = scalar_lea.smem [#allocation12], 2
      %89 = sst [smem:[%s88]] 2
      %s90 = scalar_lea.smem [#allocation12], 3
      %91 = sst [smem:[%s90]] 128
      %s92 = scalar_lea.smem [#allocation12], 4
      %93 = sst [smem:[%s92]] 128
      %s94 = scalar_lea.smem [#allocation12], 5
      %95 = sst [smem:[%s94]] 8
      %97 = dma.general %s65, 2048, %s79, [#allocation6], [#allocation11], [#allocation12], %s77, 0
    $region13: #{tpu_custom_call.1} parent=1 // pred_fallthru
      _
    // Predicated region
    $region14: #{tpu_custom_call.1} parent=1 // pred_check
      _
    $region15: #{tpu_custom_call.1} parent=1 // pred_check_branch
      %99 = sbr.rel (0) target = $region17
    $region16: #{tpu_custom_call.1} parent=1 // pred_region
      %100 = dma.done [#allocation3], 2048
    $region17: #{tpu_custom_call.1} parent=1 // pred_fallthru
      _
    // Predicated region
    $region18: #{tpu_custom_call.1} parent=1 // pred_check
      _
    $region19: #{tpu_custom_call.1} parent=1 // pred_check_branch
      %102 = sbr.rel (0) target = $region21
    $region20: #{tpu_custom_call.1} parent=1 // pred_region
      %103 = dma.done [#allocation6], 2048
    $region21: #{tpu_custom_call.1} parent=1 // pred_fallthru
      _
    // Predicated region
    $region22: #{tpu_custom_call.1} parent=1 // pred_check
      _
    $region23: #{tpu_custom_call.1} parent=1 // pred_check_branch
      %105 = sbr.rel (0) target = $region25
    $region24: #{tpu_custom_call.1} parent=1 // pred_region
      %106 = dma.done [#allocation6], 2048
    $region25: #{tpu_custom_call.1} parent=1 // pred_fallthru
      _
    %v107 = vld [vmem:[#allocation2] sm:$0xff]
    %v108 = vld [vmem:[#allocation2 + $0x8] sm:$0xff]
    %v109 = vld [vmem:[#allocation2 + $0x10] sm:$0xff]
    %v110 = vld [vmem:[#allocation2 + $0x18] sm:$0xff]
    %v111 = vld [vmem:[#allocation2 + $0x20] sm:$0xff]
    %v112 = vld [vmem:[#allocation2 + $0x28] sm:$0xff]
    %v113 = vld [vmem:[#allocation2 + $0x30] sm:$0xff]
    %v114 = vld [vmem:[#allocation2 + $0x38] sm:$0xff]
    %v115 = vld [vmem:[#allocation2 + $0x40] sm:$0xff]
    %v116 = vld [vmem:[#allocation2 + $0x48] sm:$0xff]
    %v117 = vld [vmem:[#allocation2 + $0x50] sm:$0xff]
    %v118 = vld [vmem:[#allocation2 + $0x58] sm:$0xff]
    %v119 = vld [vmem:[#allocation2 + $0x60] sm:$0xff]
    %v120 = vld [vmem:[#allocation2 + $0x68] sm:$0xff]
    %v121 = vld [vmem:[#allocation2 + $0x70] sm:$0xff]
    %v122 = vld [vmem:[#allocation2 + $0x78] sm:$0xff]
    %v123 = vld [vmem:[#allocation5] sm:$0xff]
    %v124 = vld [vmem:[#allocation5 + $0x8] sm:$0xff]
    %v125 = vld [vmem:[#allocation5 + $0x10] sm:$0xff]
    %v126 = vld [vmem:[#allocation5 + $0x18] sm:$0xff]
    %v127 = vld [vmem:[#allocation5 + $0x20] sm:$0xff]
    %v128 = vld [vmem:[#allocation5 + $0x28] sm:$0xff]
    %v129 = vld [vmem:[#allocation5 + $0x30] sm:$0xff]
    %v130 = vld [vmem:[#allocation5 + $0x38] sm:$0xff]
    %v131 = vld [vmem:[#allocation5 + $0x40] sm:$0xff]
    %v132 = vld [vmem:[#allocation5 + $0x48] sm:$0xff]
    %v133 = vld [vmem:[#allocation5 + $0x50] sm:$0xff]
    %v134 = vld [vmem:[#allocation5 + $0x58] sm:$0xff]
    %v135 = vld [vmem:[#allocation5 + $0x60] sm:$0xff]
    %v136 = vld [vmem:[#allocation5 + $0x68] sm:$0xff]
    %v137 = vld [vmem:[#allocation5 + $0x70] sm:$0xff]
    %v138 = vld [vmem:[#allocation5 + $0x78] sm:$0xff]
    %v139 = vld [vmem:[#allocation7] sm:$0xff]
    %v140 = vld [vmem:[#allocation7 + $0x8] sm:$0xff]
    %v141 = vld [vmem:[#allocation7 + $0x10] sm:$0xff]
    %v142 = vld [vmem:[#allocation7 + $0x18] sm:$0xff]
    %v143 = vld [vmem:[#allocation7 + $0x20] sm:$0xff]
    %v144 = vld [vmem:[#allocation7 + $0x28] sm:$0xff]
    %v145 = vld [vmem:[#allocation7 + $0x30] sm:$0xff]
    %v146 = vld [vmem:[#allocation7 + $0x38] sm:$0xff]
    %v147 = vld [vmem:[#allocation7 + $0x40] sm:$0xff]
    %v148 = vld [vmem:[#allocation7 + $0x48] sm:$0xff]
    %v149 = vld [vmem:[#allocation7 + $0x50] sm:$0xff]
    %v150 = vld [vmem:[#allocation7 + $0x58] sm:$0xff]
    %v151 = vld [vmem:[#allocation7 + $0x60] sm:$0xff]
    %v152 = vld [vmem:[#allocation7 + $0x68] sm:$0xff]
    %v153 = vld [vmem:[#allocation7 + $0x70] sm:$0xff]
    %v154 = vld [vmem:[#allocation7 + $0x78] sm:$0xff]
    %v155 = vmul.f32 %v107, 0.25
    %v156 = vmul.f32 %v108, 0.25
    %v157 = vmul.f32 %v109, 0.25
    %v158 = vmul.f32 %v110, 0.25
    %v159 = vmul.f32 %v111, 0.25
    %v160 = vmul.f32 %v112, 0.25
    %v161 = vmul.f32 %v113, 0.25
    %v162 = vmul.f32 %v114, 0.25
    %v163 = vmul.f32 %v115, 0.25
    %v164 = vmul.f32 %v116, 0.25
    %v165 = vmul.f32 %v117, 0.25
    %v166 = vmul.f32 %v118, 0.25
    %v167 = vmul.f32 %v119, 0.25
    %v168 = vmul.f32 %v120, 0.25
    %v169 = vmul.f32 %v121, 0.25
    %v170 = vmul.f32 %v122, 0.25
    %171 = vxpose.xlu0.b32.start [1/16] %v155, 128
    %172 = vxpose.xlu0.b32.cont [2/16] %v156, 128
    %173 = vxpose.xlu0.b32.cont [3/16] 0.0, 128
    %174 = vxpose.xlu0.b32.cont [4/16] 0.0, 128
    %175 = vxpose.xlu0.b32.cont [5/16] 0.0, 128
    %176 = vxpose.xlu0.b32.cont [6/16] 0.0, 128
    %177 = vxpose.xlu0.b32.cont [7/16] 0.0, 128
    %178 = vxpose.xlu0.b32.cont [8/16] 0.0, 128
    %179 = vxpose.xlu0.b32.cont [9/16] 0.0, 128
    %180 = vxpose.xlu0.b32.cont [10/16] 0.0, 128
    %181 = vxpose.xlu0.b32.cont [11/16] 0.0, 128
    %182 = vxpose.xlu0.b32.cont [12/16] 0.0, 128
    %183 = vxpose.xlu0.b32.cont [13/16] 0.0, 128
    %184 = vxpose.xlu0.b32.cont [14/16] 0.0, 128
    %185 = vxpose.xlu0.b32.cont [15/16] 0.0, 128
    %186 = vxpose.xlu0.b32.end [16/16] 0.0, 128
    %v187 = vpop.trf.xlu0
    %v188 = vpop.trf.xlu0
    %v189 = vpop.trf.xlu0
    %v190 = vpop.trf.xlu0
    %v191 = vpop.trf.xlu0
    %v192 = vpop.trf.xlu0
    %v193 = vpop.trf.xlu0
    %v194 = vpop.trf.xlu0
    %v195 = vpop.trf.xlu0
    %v196 = vpop.trf.xlu0
    %v197 = vpop.trf.xlu0
    %v198 = vpop.trf.xlu0
    %v199 = vpop.trf.xlu0
    %v200 = vpop.trf.xlu0
    %v201 = vpop.trf.xlu0
    %v202 = vpop.trf.xlu0
    %vm203 = vcmask 130048
    %v205 = vsel %vm203, %v187, 0
    %v208 = vsel %vm203, %v188, 0
    %v211 = vsel %vm203, %v189, 0
    %v214 = vsel %vm203, %v190, 0
    %v217 = vsel %vm203, %v191, 0
    %v220 = vsel %vm203, %v192, 0
    %v223 = vsel %vm203, %v193, 0
    %v226 = vsel %vm203, %v194, 0
    %v229 = vsel %vm203, %v195, 0
    %v232 = vsel %vm203, %v196, 0
    %v235 = vsel %vm203, %v197, 0
    %v238 = vsel %vm203, %v198, 0
    %v241 = vsel %vm203, %v199, 0
    %v244 = vsel %vm203, %v200, 0
    %v247 = vsel %vm203, %v201, 0
    %v250 = vsel %vm203, %v202, 0
    %252 = vmatprep.subr.mxu0 0.0
    %253 = vmatpush1.msra.mxu0 %v123
    %254 = vmatprep.subr.mxu0 0.0
    %255 = vmatpush1.msra.mxu0 %v124
    %256 = vmatprep.subr.mxu0 0.0
    %257 = vmatpush1.msra.mxu0 0.0
    %258 = vmatprep.subr.mxu0 0.0
    %259 = vmatpush1.msra.mxu0 0.0
    %260 = vmatprep.subr.mxu0 0.0
    %261 = vmatpush1.msra.mxu0 0.0
    %262 = vmatprep.subr.mxu0 0.0
    %263 = vmatpush1.msra.mxu0 0.0
    %264 = vmatprep.subr.mxu0 0.0
    %265 = vmatpush1.msra.mxu0 0.0
    %266 = vmatprep.subr.mxu0 0.0
    %267 = vmatpush1.msra.mxu0 0.0
    %268 = vmatprep.subr.mxu0 0.0
    %269 = vmatpush1.msra.mxu0 0.0
    %270 = vmatprep.subr.mxu0 0.0
    %271 = vmatpush1.msra.mxu0 0.0
    %272 = vmatprep.subr.mxu0 0.0
    %273 = vmatpush1.msra.mxu0 0.0
    %274 = vmatprep.subr.mxu0 0.0
    %275 = vmatpush1.msra.mxu0 0.0
    %276 = vmatprep.subr.mxu0 0.0
    %277 = vmatpush1.msra.mxu0 0.0
    %278 = vmatprep.subr.mxu0 0.0
    %279 = vmatpush1.msra.mxu0 0.0
    %280 = vmatprep.subr.mxu0 0.0
    %281 = vmatpush1.msra.mxu0 0.0
    %282 = vmatprep.subr.mxu0 0.0
    %283 = vmatpush1.msra.mxu0 0.0
    %284 = vmatprep.subr.mxu0 0.0
    %285 = vmatpush1.msra.mxu0 0.0
    %286 = vmatprep.subr.mxu0 0.0
    %287 = vmatpush1.msra.mxu0 0.0
    %288 = vmatprep.subr.mxu0 0.0
    %289 = vmatpush1.msra.mxu0 0.0
    %290 = vmatprep.subr.mxu0 0.0
    %291 = vmatpush1.msra.mxu0 0.0
    %292 = vmatprep.subr.mxu0 0.0
    %293 = vmatpush1.msra.mxu0 0.0
    %294 = vmatprep.subr.mxu0 0.0
    %295 = vmatpush1.msra.mxu0 0.0
    %296 = vmatprep.subr.mxu0 0.0
    %297 = vmatpush1.msra.mxu0 0.0
    %298 = vmatprep.subr.mxu0 0.0
    %299 = vmatpush1.msra.mxu0 0.0
    %300 = vmatprep.subr.mxu0 0.0
    %301 = vmatpush1.msra.mxu0 0.0
    %302 = vmatprep.subr.mxu0 0.0
    %303 = vmatpush1.msra.mxu0 0.0
    %304 = vmatprep.subr.mxu0 0.0
    %305 = vmatpush1.msra.mxu0 0.0
    %306 = vmatprep.subr.mxu0 0.0
    %307 = vmatpush1.msra.mxu0 0.0
    %308 = vmatprep.subr.mxu0 0.0
    %309 = vmatpush1.msra.mxu0 0.0
    %310 = vmatprep.subr.mxu0 0.0
    %311 = vmatpush1.msra.mxu0 0.0
    %312 = vmatprep.subr.mxu0 0.0
    %313 = vmatpush1.msra.mxu0 0.0
    %314 = vmatprep.subr.mxu0 0.0
    %315 = vmatpush1.msra.mxu0 0.0
    %316 = vmatprep.mubr.f32.mxu0 0.0
    %317 = vmatmul.mubr.f32.gmra.mrb[0].mxu0 %v205
    %v318 = vpop.f32.mrb[0].mxu0
    %v319 = vadd.f32 0.0, %v318
    %v320 = vpop.f32.mrb[0].mxu0
    %321 = vmatprep.mubr.f32.mxu0 0.0
    %322 = vmatmul.mubr.f32.gmra.mrb[0].mxu0 %v208
    %v323 = vpop.f32.mrb[0].mxu0
    %v324 = vadd.f32 0.0, %v323
    %v325 = vpop.f32.mrb[0].mxu0
    %326 = vmatprep.mubr.f32.mxu0 0.0
    %327 = vmatmul.mubr.f32.gmra.mrb[0].mxu0 %v211
    %v328 = vpop.f32.mrb[0].mxu0
    %v329 = vadd.f32 0.0, %v328
    %v330 = vpop.f32.mrb[0].mxu0
    %331 = vmatprep.mubr.f32.mxu0 0.0
    %332 = vmatmul.mubr.f32.gmra.mrb[0].mxu0 %v214
    %v333 = vpop.f32.mrb[0].mxu0
    %v334 = vadd.f32 0.0, %v333
    %v335 = vpop.f32.mrb[0].mxu0
    %336 = vmatprep.mubr.f32.mxu0 0.0
    %337 = vmatmul.mubr.f32.gmra.mrb[0].mxu0 %v217
    %v338 = vpop.f32.mrb[0].mxu0
    %v339 = vadd.f32 0.0, %v338
    %v340 = vpop.f32.mrb[0].mxu0
    %341 = vmatprep.mubr.f32.mxu0 0.0
    %342 = vmatmul.mubr.f32.gmra.mrb[0].mxu0 %v220
    %v343 = vpop.f32.mrb[0].mxu0
    %v344 = vadd.f32 0.0, %v343
    %v345 = vpop.f32.mrb[0].mxu0
    %346 = vmatprep.mubr.f32.mxu0 0.0
    %347 = vmatmul.mubr.f32.gmra.mrb[0].mxu0 %v223
    %v348 = vpop.f32.mrb[0].mxu0
    %v349 = vadd.f32 0.0, %v348
    %v350 = vpop.f32.mrb[0].mxu0
    %351 = vmatprep.mubr.f32.mxu0 0.0
    %352 = vmatmul.mubr.f32.gmra.mrb[0].mxu0 %v226
    %v353 = vpop.f32.mrb[0].mxu0
    %v354 = vadd.f32 0.0, %v353
    %v355 = vpop.f32.mrb[0].mxu0
    %356 = vmatprep.mubr.f32.mxu0 0.0
    %357 = vmatmul.mubr.f32.gmra.mrb[0].mxu0 %v229
    %v358 = vpop.f32.mrb[0].mxu0
    %v359 = vadd.f32 0.0, %v358
    %v360 = vpop.f32.mrb[0].mxu0
    %361 = vmatprep.mubr.f32.mxu0 0.0
    %362 = vmatmul.mubr.f32.gmra.mrb[0].mxu0 %v232
    %v363 = vpop.f32.mrb[0].mxu0
    %v364 = vadd.f32 0.0, %v363
    %v365 = vpop.f32.mrb[0].mxu0
    %366 = vmatprep.mubr.f32.mxu0 0.0
    %367 = vmatmul.mubr.f32.gmra.mrb[0].mxu0 %v235
    %v368 = vpop.f32.mrb[0].mxu0
    %v369 = vadd.f32 0.0, %v368
    %v370 = vpop.f32.mrb[0].mxu0
    %371 = vmatprep.mubr.f32.mxu0 0.0
    %372 = vmatmul.mubr.f32.gmra.mrb[0].mxu0 %v238
    %v373 = vpop.f32.mrb[0].mxu0
    %v374 = vadd.f32 0.0, %v373
    %v375 = vpop.f32.mrb[0].mxu0
    %376 = vmatprep.mubr.f32.mxu0 0.0
    %377 = vmatmul.mubr.f32.gmra.mrb[0].mxu0 %v241
    %v378 = vpop.f32.mrb[0].mxu0
    %v379 = vadd.f32 0.0, %v378
    %v380 = vpop.f32.mrb[0].mxu0
    %381 = vmatprep.mubr.f32.mxu0 0.0
    %382 = vmatmul.mubr.f32.gmra.mrb[0].mxu0 %v244
    %v383 = vpop.f32.mrb[0].mxu0
    %v384 = vadd.f32 0.0, %v383
    %v385 = vpop.f32.mrb[0].mxu0
    %386 = vmatprep.mubr.f32.mxu0 0.0
    %387 = vmatmul.mubr.f32.gmra.mrb[0].mxu0 %v247
    %v388 = vpop.f32.mrb[0].mxu0
    %v389 = vadd.f32 0.0, %v388
    %v390 = vpop.f32.mrb[0].mxu0
    %391 = vmatprep.mubr.f32.mxu0 0.0
    %392 = vmatmul.mubr.f32.gmra.mrb[0].mxu0 %v250
    %v393 = vpop.f32.mrb[0].mxu0
    %v394 = vadd.f32 0.0, %v393
    %v395 = vpop.f32.mrb[0].mxu0
    %396 = vdwg.mxu0
    %397 = vxpose.xlu0.b32.start [1/16] %v157, 128
    %398 = vxpose.xlu0.b32.cont [2/16] %v158, 128
    %399 = vxpose.xlu0.b32.cont [3/16] 0.0, 128
    %400 = vxpose.xlu0.b32.cont [4/16] 0.0, 128
    %401 = vxpose.xlu0.b32.cont [5/16] 0.0, 128
    %402 = vxpose.xlu0.b32.cont [6/16] 0.0, 128
    %403 = vxpose.xlu0.b32.cont [7/16] 0.0, 128
    %404 = vxpose.xlu0.b32.cont [8/16] 0.0, 128
    %405 = vxpose.xlu0.b32.cont [9/16] 0.0, 128
    %406 = vxpose.xlu0.b32.cont [10/16] 0.0, 128
    %407 = vxpose.xlu0.b32.cont [11/16] 0.0, 128
    %408 = vxpose.xlu0.b32.cont [12/16] 0.0, 128
    %409 = vxpose.xlu0.b32.cont [13/16] 0.0, 128
    %410 = vxpose.xlu0.b32.cont [14/16] 0.0, 128
    %411 = vxpose.xlu0.b32.cont [15/16] 0.0, 128
    %412 = vxpose.xlu0.b32.end [16/16] 0.0, 128
    %v413 = vpop.trf.xlu0
    %v414 = vpop.trf.xlu0
    %v415 = vpop.trf.xlu0
    %v416 = vpop.trf.xlu0
    %v417 = vpop.trf.xlu0
    %v418 = vpop.trf.xlu0
    %v419 = vpop.trf.xlu0
    %v420 = vpop.trf.xlu0
    %v421 = vpop.trf.xlu0
    %v422 = vpop.trf.xlu0
    %v423 = vpop.trf.xlu0
    %v424 = vpop.trf.xlu0
    %v425 = vpop.trf.xlu0
    %v426 = vpop.trf.xlu0
    %v427 = vpop.trf.xlu0
    %v428 = vpop.trf.xlu0
    %v430 = vsel %vm203, %v413, 0
    %v433 = vsel %vm203, %v414, 0
    %v436 = vsel %vm203, %v415, 0
    %v439 = vsel %vm203, %v416, 0
    %v442 = vsel %vm203, %v417, 0
    %v445 = vsel %vm203, %v418, 0
    %v448 = vsel %vm203, %v419, 0
    %v451 = vsel %vm203, %v420, 0
    %v454 = vsel %vm203, %v421, 0
    %v457 = vsel %vm203, %v422, 0
    %v460 = vsel %vm203, %v423, 0
    %v463 = vsel %vm203, %v424, 0
    %v466 = vsel %vm203, %v425, 0
    %v469 = vsel %vm203, %v426, 0
    %v472 = vsel %vm203, %v427, 0
    %v475 = vsel %vm203, %v428, 0
    %477 = vmatprep.subr.mxu0 0.0
    %478 = vmatpush1.msra.mxu0 %v125
    %479 = vmatprep.subr.mxu0 0.0
    %480 = vmatpush1.msra.mxu0 %v126
    %481 = vmatprep.subr.mxu0 0.0
    %482 = vmatpush1.msra.mxu0 0.0
    %483 = vmatprep.subr.mxu0 0.0
    %484 = vmatpush1.msra.mxu0 0.0
    %485 = vmatprep.subr.mxu0 0.0
    %486 = vmatpush1.msra.mxu0 0.0
    %487 = vmatprep.subr.mxu0 0.0
    %488 = vmatpush1.msra.mxu0 0.0
    %489 = vmatprep.subr.mxu0 0.0
    %490 = vmatpush1.msra.mxu0 0.0
    %491 = vmatprep.subr.mxu0 0.0
    %492 = vmatpush1.msra.mxu0 0.0
    %493 = vmatprep.subr.mxu0 0.0
    %494 = vmatpush1.msra.mxu0 0.0
    %495 = vmatprep.subr.mxu0 0.0
    %496 = vmatpush1.msra.mxu0 0.0
    %497 = vmatprep.subr.mxu0 0.0
    %498 = vmatpush1.msra.mxu0 0.0
    %499 = vmatprep.subr.mxu0 0.0
    %500 = vmatpush1.msra.mxu0 0.0
    %501 = vmatprep.subr.mxu0 0.0
    %502 = vmatpush1.msra.mxu0 0.0
    %503 = vmatprep.subr.mxu0 0.0
    %504 = vmatpush1.msra.mxu0 0.0
    %505 = vmatprep.subr.mxu0 0.0
    %506 = vmatpush1.msra.mxu0 0.0
    %507 = vmatprep.subr.mxu0 0.0
    %508 = vmatpush1.msra.mxu0 0.0
    %509 = vmatprep.subr.mxu0 0.0
    %510 = vmatpush1.msra.mxu0 0.0
    %511 = vmatprep.subr.mxu0 0.0
    %512 = vmatpush1.msra.mxu0 0.0
    %513 = vmatprep.subr.mxu0 0.0
    %514 = vmatpush1.msra.mxu0 0.0
    %515 = vmatprep.subr.mxu0 0.0
    %516 = vmatpush1.msra.mxu0 0.0
    %517 = vmatprep.subr.mxu0 0.0
    %518 = vmatpush1.msra.mxu0 0.0
    %519 = vmatprep.subr.mxu0 0.0
    %520 = vmatpush1.msra.mxu0 0.0
    %521 = vmatprep.subr.mxu0 0.0
    %522 = vmatpush1.msra.mxu0 0.0
    %523 = vmatprep.subr.mxu0 0.0
    %524 = vmatpush1.msra.mxu0 0.0
    %525 = vmatprep.subr.mxu0 0.0
    %526 = vmatpush1.msra.mxu0 0.0
    %527 = vmatprep.subr.mxu0 0.0
    %528 = vmatpush1.msra.mxu0 0.0
    %529 = vmatprep.subr.mxu0 0.0
    %530 = vmatpush1.msra.mxu0 0.0
    %531 = vmatprep.subr.mxu0 0.0
    %532 = vmatpush1.msra.mxu0 0.0
    %533 = vmatprep.subr.mxu0 0.0
    %534 = vmatpush1.msra.mxu0 0.0
    %535 = vmatprep.subr.mxu0 0.0
    %536 = vmatpush1.msra.mxu0 0.0
    %537 = vmatprep.subr.mxu0 0.0
    %538 = vmatpush1.msra.mxu0 0.0
    %539 = vmatprep.subr.mxu0 0.0
    %540 = vmatpush1.msra.mxu0 0.0
    %541 = vmatprep.mubr.f32.mxu0 0.0
    %542 = vmatmul.mubr.f32.gmra.mrb[0].mxu0 %v430
    %v543 = vpop.f32.mrb[0].mxu0
    %v544 = vadd.f32 0.0, %v543
    %v545 = vpop.f32.mrb[0].mxu0
    %546 = vmatprep.mubr.f32.mxu0 0.0
    %547 = vmatmul.mubr.f32.gmra.mrb[0].mxu0 %v433
    %v548 = vpop.f32.mrb[0].mxu0
    %v549 = vadd.f32 0.0, %v548
    %v550 = vpop.f32.mrb[0].mxu0
    %551 = vmatprep.mubr.f32.mxu0 0.0
    %552 = vmatmul.mubr.f32.gmra.mrb[0].mxu0 %v436
    %v553 = vpop.f32.mrb[0].mxu0
    %v554 = vadd.f32 0.0, %v553
    %v555 = vpop.f32.mrb[0].mxu0
    %556 = vmatprep.mubr.f32.mxu0 0.0
    %557 = vmatmul.mubr.f32.gmra.mrb[0].mxu0 %v439
    %v558 = vpop.f32.mrb[0].mxu0
    %v559 = vadd.f32 0.0, %v558
    %v560 = vpop.f32.mrb[0].mxu0
    %561 = vmatprep.mubr.f32.mxu0 0.0
    %562 = vmatmul.mubr.f32.gmra.mrb[0].mxu0 %v442
    %v563 = vpop.f32.mrb[0].mxu0
    %v564 = vadd.f32 0.0, %v563
    %v565 = vpop.f32.mrb[0].mxu0
    %566 = vmatprep.mubr.f32.mxu0 0.0
    %567 = vmatmul.mubr.f32.gmra.mrb[0].mxu0 %v445
    %v568 = vpop.f32.mrb[0].mxu0
    %v569 = vadd.f32 0.0, %v568
    %v570 = vpop.f32.mrb[0].mxu0
    %571 = vmatprep.mubr.f32.mxu0 0.0
    %572 = vmatmul.mubr.f32.gmra.mrb[0].mxu0 %v448
    %v573 = vpop.f32.mrb[0].mxu0
    %v574 = vadd.f32 0.0, %v573
    %v575 = vpop.f32.mrb[0].mxu0
    %576 = vmatprep.mubr.f32.mxu0 0.0
    %577 = vmatmul.mubr.f32.gmra.mrb[0].mxu0 %v451
    %v578 = vpop.f32.mrb[0].mxu0
    %v579 = vadd.f32 0.0, %v578
    %v580 = vpop.f32.mrb[0].mxu0
    %581 = vmatprep.mubr.f32.mxu0 0.0
    %582 = vmatmul.mubr.f32.gmra.mrb[0].mxu0 %v454
    %v583 = vpop.f32.mrb[0].mxu0
    %v584 = vadd.f32 0.0, %v583
    %v585 = vpop.f32.mrb[0].mxu0
    %586 = vmatprep.mubr.f32.mxu0 0.0
    %587 = vmatmul.mubr.f32.gmra.mrb[0].mxu0 %v457
    %v588 = vpop.f32.mrb[0].mxu0
    %v589 = vadd.f32 0.0, %v588
    %v590 = vpop.f32.mrb[0].mxu0
    %591 = vmatprep.mubr.f32.mxu0 0.0
    %592 = vmatmul.mubr.f32.gmra.mrb[0].mxu0 %v460
    %v593 = vpop.f32.mrb[0].mxu0
    %v594 = vadd.f32 0.0, %v593
    %v595 = vpop.f32.mrb[0].mxu0
    %596 = vmatprep.mubr.f32.mxu0 0.0
    %597 = vmatmul.mubr.f32.gmra.mrb[0].mxu0 %v463
    %v598 = vpop.f32.mrb[0].mxu0
    %v599 = vadd.f32 0.0, %v598
    %v600 = vpop.f32.mrb[0].mxu0
    %601 = vmatprep.mubr.f32.mxu0 0.0
    %602 = vmatmul.mubr.f32.gmra.mrb[0].mxu0 %v466
    %v603 = vpop.f32.mrb[0].mxu0
    %v604 = vadd.f32 0.0, %v603
    %v605 = vpop.f32.mrb[0].mxu0
    %606 = vmatprep.mubr.f32.mxu0 0.0
    %607 = vmatmul.mubr.f32.gmra.mrb[0].mxu0 %v469
    %v608 = vpop.f32.mrb[0].mxu0
    %v609 = vadd.f32 0.0, %v608
    %v610 = vpop.f32.mrb[0].mxu0
    %611 = vmatprep.mubr.f32.mxu0 0.0
    %612 = vmatmul.mubr.f32.gmra.mrb[0].mxu0 %v472
    %v613 = vpop.f32.mrb[0].mxu0
    %v614 = vadd.f32 0.0, %v613
    %v615 = vpop.f32.mrb[0].mxu0
    %616 = vmatprep.mubr.f32.mxu0 0.0
    %617 = vmatmul.mubr.f32.gmra.mrb[0].mxu0 %v475
    %v618 = vpop.f32.mrb[0].mxu0
    %v619 = vadd.f32 0.0, %v618
    %v620 = vpop.f32.mrb[0].mxu0
    %621 = vdwg.mxu0
    %622 = vxpose.xlu0.b32.start [1/16] %v159, 128
    %623 = vxpose.xlu0.b32.cont [2/16] %v160, 128
    %624 = vxpose.xlu0.b32.cont [3/16] 0.0, 128
    %625 = vxpose.xlu0.b32.cont [4/16] 0.0, 128
    %626 = vxpose.xlu0.b32.cont [5/16] 0.0, 128
    %627 = vxpose.xlu0.b32.cont [6/16] 0.0, 128
    %628 = vxpose.xlu0.b32.cont [7/16] 0.0, 128
    %629 = vxpose.xlu0.b32.cont [8/16] 0.0, 128
    %630 = vxpose.xlu0.b32.cont [9/16] 0.0, 128
    %631 = vxpose.xlu0.b32.cont [10/16] 0.0, 128
    %632 = vxpose.xlu0.b32.cont [11/16] 0.0, 128
    %633 = vxpose.xlu0.b32.cont [12/16] 0.0, 128
    %634 = vxpose.xlu0.b32.cont [13/16] 0.0, 128
    %635 = vxpose.xlu0.b32.cont [14/16] 0.0, 128
    %636 = vxpose.xlu0.b32.cont [15/16] 0.0, 128
    %637 = vxpose.xlu0.b32.end [16/16] 0.0, 128
    %v638 = vpop.trf.xlu0
    %v639 = vpop.trf.xlu0
    %v640 = vpop.trf.xlu0
    %v641 = vpop.trf.xlu0
    %v642 = vpop.trf.xlu0
    %v643 = vpop.trf.xlu0
    %v644 = vpop.trf.xlu0
    %v645 = vpop.trf.xlu0
    %v646 = vpop.trf.xlu0
    %v647 = vpop.trf.xlu0
    %v648 = vpop.trf.xlu0
    %v649 = vpop.trf.xlu0
    %v650 = vpop.trf.xlu0
    %v651 = vpop.trf.xlu0
    %v652 = vpop.trf.xlu0
    %v653 = vpop.trf.xlu0
    %v655 = vsel %vm203, %v638, 0
    %v658 = vsel %vm203, %v639, 0
    %v661 = vsel %vm203, %v640, 0
    %v664 = vsel %vm203, %v641, 0
    %v667 = vsel %vm203, %v642, 0
    %v670 = vsel %vm203, %v643, 0
    %v673 = vsel %vm203, %v644, 0
    %v676 = vsel %vm203, %v645, 0
    %v679 = vsel %vm203, %v646, 0
    %v682 = vsel %vm203, %v647, 0
    %v685 = vsel %vm203, %v648, 0
    %v688 = vsel %vm203, %v649, 0
    %v691 = vsel %vm203, %v650, 0
    %v694 = vsel %vm203, %v651, 0
    %v697 = vsel %vm203, %v652, 0
    %v700 = vsel %vm203, %v653, 0
    %702 = vmatprep.subr.mxu0 0.0
    %703 = vmatpush1.msra.mxu0 %v127
    %704 = vmatprep.subr.mxu0 0.0
    %705 = vmatpush1.msra.mxu0 %v128
    %706 = vmatprep.subr.mxu0 0.0
    %707 = vmatpush1.msra.mxu0 0.0
    %708 = vmatprep.subr.mxu0 0.0
    %709 = vmatpush1.msra.mxu0 0.0
    %710 = vmatprep.subr.mxu0 0.0
    %711 = vmatpush1.msra.mxu0 0.0
    %712 = vmatprep.subr.mxu0 0.0
    %713 = vmatpush1.msra.mxu0 0.0
    %714 = vmatprep.subr.mxu0 0.0
    %715 = vmatpush1.msra.mxu0 0.0
    %716 = vmatprep.subr.mxu0 0.0
    %717 = vmatpush1.msra.mxu0 0.0
    %718 = vmatprep.subr.mxu0 0.0
    %719 = vmatpush1.msra.mxu0 0.0
    %720 = vmatprep.subr.mxu0 0.0
    %721 = vmatpush1.msra.mxu0 0.0
    %722 = vmatprep.subr.mxu0 0.0
    %723 = vmatpush1.msra.mxu0 0.0
    %724 = vmatprep.subr.mxu0 0.0
    %725 = vmatpush1.msra.mxu0 0.0
    %726 = vmatprep.subr.mxu0 0.0
    %727 = vmatpush1.msra.mxu0 0.0
    %728 = vmatprep.subr.mxu0 0.0
    %729 = vmatpush1.msra.mxu0 0.0
    %730 = vmatprep.subr.mxu0 0.0
    %731 = vmatpush1.msra.mxu0 0.0
    %732 = vmatprep.subr.mxu0 0.0
    %733 = vmatpush1.msra.mxu0 0.0
    %734 = vmatprep.subr.mxu0 0.0
    %735 = vmatpush1.msra.mxu0 0.0
    %736 = vmatprep.subr.mxu0 0.0
    %737 = vmatpush1.msra.mxu0 0.0
    %738 = vmatprep.subr.mxu0 0.0
    %739 = vmatpush1.msra.mxu0 0.0
    %740 = vmatprep.subr.mxu0 0.0
    %741 = vmatpush1.msra.mxu0 0.0
    %742 = vmatprep.subr.mxu0 0.0
    %743 = vmatpush1.msra.mxu0 0.0
    %744 = vmatprep.subr.mxu0 0.0
    %745 = vmatpush1.msra.mxu0 0.0
    %746 = vmatprep.subr.mxu0 0.0
    %747 = vmatpush1.msra.mxu0 0.0
    %748 = vmatprep.subr.mxu0 0.0
    %749 = vmatpush1.msra.mxu0 0.0
    %750 = vmatprep.subr.mxu0 0.0
    %751 = vmatpush1.msra.mxu0 0.0
    %752 = vmatprep.subr.mxu0 0.0
    %753 = vmatpush1.msra.mxu0 0.0
    %754 = vmatprep.subr.mxu0 0.0
    %755 = vmatpush1.msra.mxu0 0.0
    %756 = vmatprep.subr.mxu0 0.0
    %757 = vmatpush1.msra.mxu0 0.0
    %758 = vmatprep.subr.mxu0 0.0
    %759 = vmatpush1.msra.mxu0 0.0
    %760 = vmatprep.subr.mxu0 0.0
    %761 = vmatpush1.msra.mxu0 0.0
    %762 = vmatprep.subr.mxu0 0.0
    %763 = vmatpush1.msra.mxu0 0.0
    %764 = vmatprep.subr.mxu0 0.0
    %765 = vmatpush1.msra.mxu0 0.0
    %766 = vmatprep.mubr.f32.mxu0 0.0
    %767 = vmatmul.mubr.f32.gmra.mrb[0].mxu0 %v655
    %v768 = vpop.f32.mrb[0].mxu0
    %v769 = vadd.f32 0.0, %v768
    %v770 = vpop.f32.mrb[0].mxu0
    %771 = vmatprep.mubr.f32.mxu0 0.0
    %772 = vmatmul.mubr.f32.gmra.mrb[0].mxu0 %v658
    %v773 = vpop.f32.mrb[0].mxu0
    %v774 = vadd.f32 0.0, %v773
    %v775 = vpop.f32.mrb[0].mxu0
    %776 = vmatprep.mubr.f32.mxu0 0.0
    %777 = vmatmul.mubr.f32.gmra.mrb[0].mxu0 %v661
    %v778 = vpop.f32.mrb[0].mxu0
    %v779 = vadd.f32 0.0, %v778
    %v780 = vpop.f32.mrb[0].mxu0
    %781 = vmatprep.mubr.f32.mxu0 0.0
    %782 = vmatmul.mubr.f32.gmra.mrb[0].mxu0 %v664
    %v783 = vpop.f32.mrb[0].mxu0
    %v784 = vadd.f32 0.0, %v783
    %v785 = vpop.f32.mrb[0].mxu0
    %786 = vmatprep.mubr.f32.mxu0 0.0
    %787 = vmatmul.mubr.f32.gmra.mrb[0].mxu0 %v667
    %v788 = vpop.f32.mrb[0].mxu0
    %v789 = vadd.f32 0.0, %v788
    %v790 = vpop.f32.mrb[0].mxu0
    %791 = vmatprep.mubr.f32.mxu0 0.0
    %792 = vmatmul.mubr.f32.gmra.mrb[0].mxu0 %v670
    %v793 = vpop.f32.mrb[0].mxu0
    %v794 = vadd.f32 0.0, %v793
    %v795 = vpop.f32.mrb[0].mxu0
    %796 = vmatprep.mubr.f32.mxu0 0.0
    %797 = vmatmul.mubr.f32.gmra.mrb[0].mxu0 %v673
    %v798 = vpop.f32.mrb[0].mxu0
    %v799 = vadd.f32 0.0, %v798
    %v800 = vpop.f32.mrb[0].mxu0
    %801 = vmatprep.mubr.f32.mxu0 0.0
    %802 = vmatmul.mubr.f32.gmra.mrb[0].mxu0 %v676
    %v803 = vpop.f32.mrb[0].mxu0
    %v804 = vadd.f32 0.0, %v803
    %v805 = vpop.f32.mrb[0].mxu0
    %806 = vmatprep.mubr.f32.mxu0 0.0
    %807 = vmatmul.mubr.f32.gmra.mrb[0].mxu0 %v679
    %v808 = vpop.f32.mrb[0].mxu0
    %v809 = vadd.f32 0.0, %v808
    %v810 = vpop.f32.mrb[0].mxu0
    %811 = vmatprep.mubr.f32.mxu0 0.0
    %812 = vmatmul.mubr.f32.gmra.mrb[0].mxu0 %v682
    %v813 = vpop.f32.mrb[0].mxu0
    %v814 = vadd.f32 0.0, %v813
    %v815 = vpop.f32.mrb[0].mxu0
    %816 = vmatprep.mubr.f32.mxu0 0.0
    %817 = vmatmul.mubr.f32.gmra.mrb[0].mxu0 %v685
    %v818 = vpop.f32.mrb[0].mxu0
    %v819 = vadd.f32 0.0, %v818
    %v820 = vpop.f32.mrb[0].mxu0
    %821 = vmatprep.mubr.f32.mxu0 0.0
    %822 = vmatmul.mubr.f32.gmra.mrb[0].mxu0 %v688
    %v823 = vpop.f32.mrb[0].mxu0
    %v824 = vadd.f32 0.0, %v823
    %v825 = vpop.f32.mrb[0].mxu0
    %826 = vmatprep.mubr.f32.mxu0 0.0
    %827 = vmatmul.mubr.f32.gmra.mrb[0].mxu0 %v691
    %v828 = vpop.f32.mrb[0].mxu0
    %v829 = vadd.f32 0.0, %v828
    %v830 = vpop.f32.mrb[0].mxu0
    %831 = vmatprep.mubr.f32.mxu0 0.0
    %832 = vmatmul.mubr.f32.gmra.mrb[0].mxu0 %v694
    %v833 = vpop.f32.mrb[0].mxu0
    %v834 = vadd.f32 0.0, %v833
    %v835 = vpop.f32.mrb[0].mxu0
    %836 = vmatprep.mubr.f32.mxu0 0.0
    %837 = vmatmul.mubr.f32.gmra.mrb[0].mxu0 %v697
    %v838 = vpop.f32.mrb[0].mxu0
    %v839 = vadd.f32 0.0, %v838
    %v840 = vpop.f32.mrb[0].mxu0
    %841 = vmatprep.mubr.f32.mxu0 0.0
    %842 = vmatmul.mubr.f32.gmra.mrb[0].mxu0 %v700
    %v843 = vpop.f32.mrb[0].mxu0
    %v844 = vadd.f32 0.0, %v843
    %v845 = vpop.f32.mrb[0].mxu0
    %846 = vdwg.mxu0
    %847 = vxpose.xlu0.b32.start [1/16] %v161, 128
    %848 = vxpose.xlu0.b32.cont [2/16] %v162, 128
    %849 = vxpose.xlu0.b32.cont [3/16] 0.0, 128
    %850 = vxpose.xlu0.b32.cont [4/16] 0.0, 128
    %851 = vxpose.xlu0.b32.cont [5/16] 0.0, 128
    %852 = vxpose.xlu0.b32.cont [6/16] 0.0, 128
    %853 = vxpose.xlu0.b32.cont [7/16] 0.0, 128
    %854 = vxpose.xlu0.b32.cont [8/16] 0.0, 128
    %855 = vxpose.xlu0.b32.cont [9/16] 0.0, 128
    %856 = vxpose.xlu0.b32.cont [10/16] 0.0, 128
    %857 = vxpose.xlu0.b32.cont [11/16] 0.0, 128
    %858 = vxpose.xlu0.b32.cont [12/16] 0.0, 128
    %859 = vxpose.xlu0.b32.cont [13/16] 0.0, 128
    %860 = vxpose.xlu0.b32.cont [14/16] 0.0, 128
    %861 = vxpose.xlu0.b32.cont [15/16] 0.0, 128
    %862 = vxpose.xlu0.b32.end [16/16] 0.0, 128
    %v863 = vpop.trf.xlu0
    %v864 = vpop.trf.xlu0
    %v865 = vpop.trf.xlu0
    %v866 = vpop.trf.xlu0
    %v867 = vpop.trf.xlu0
    %v868 = vpop.trf.xlu0
    %v869 = vpop.trf.xlu0
    %v870 = vpop.trf.xlu0
    %v871 = vpop.trf.xlu0
    %v872 = vpop.trf.xlu0
    %v873 = vpop.trf.xlu0
    %v874 = vpop.trf.xlu0
    %v875 = vpop.trf.xlu0
    %v876 = vpop.trf.xlu0
    %v877 = vpop.trf.xlu0
    %v878 = vpop.trf.xlu0
    %v880 = vsel %vm203, %v863, 0
    %v883 = vsel %vm203, %v864, 0
    %v886 = vsel %vm203, %v865, 0
    %v889 = vsel %vm203, %v866, 0
    %v892 = vsel %vm203, %v867, 0
    %v895 = vsel %vm203, %v868, 0
    %v898 = vsel %vm203, %v869, 0
    %v901 = vsel %vm203, %v870, 0
    %v904 = vsel %vm203, %v871, 0
    %v907 = vsel %vm203, %v872, 0
    %v910 = vsel %vm203, %v873, 0
    %v913 = vsel %vm203, %v874, 0
    %v916 = vsel %vm203, %v875, 0
    %v919 = vsel %vm203, %v876, 0
    %v922 = vsel %vm203, %v877, 0
    %v925 = vsel %vm203, %v878, 0
    %927 = vmatprep.subr.mxu0 0.0
    %928 = vmatpush1.msra.mxu0 %v129
    %929 = vmatprep.subr.mxu0 0.0
    %930 = vmatpush1.msra.mxu0 %v130
    %931 = vmatprep.subr.mxu0 0.0
    %932 = vmatpush1.msra.mxu0 0.0
    %933 = vmatprep.subr.mxu0 0.0
    %934 = vmatpush1.msra.mxu0 0.0
    %935 = vmatprep.subr.mxu0 0.0
    %936 = vmatpush1.msra.mxu0 0.0
    %937 = vmatprep.subr.mxu0 0.0
    %938 = vmatpush1.msra.mxu0 0.0
    %939 = vmatprep.subr.mxu0 0.0
    %940 = vmatpush1.msra.mxu0 0.0
    %941 = vmatprep.subr.mxu0 0.0
    %942 = vmatpush1.msra.mxu0 0.0
    %943 = vmatprep.subr.mxu0 0.0
    %944 = vmatpush1.msra.mxu0 0.0
    %945 = vmatprep.subr.mxu0 0.0
    %946 = vmatpush1.msra.mxu0 0.0
    %947 = vmatprep.subr.mxu0 0.0
    %948 = vmatpush1.msra.mxu0 0.0
    %949 = vmatprep.subr.mxu0 0.0
    %950 = vmatpush1.msra.mxu0 0.0
    %951 = vmatprep.subr.mxu0 0.0
    %952 = vmatpush1.msra.mxu0 0.0
    %953 = vmatprep.subr.mxu0 0.0
    %954 = vmatpush1.msra.mxu0 0.0
    %955 = vmatprep.subr.mxu0 0.0
    %956 = vmatpush1.msra.mxu0 0.0
    %957 = vmatprep.subr.mxu0 0.0
    %958 = vmatpush1.msra.mxu0 0.0
    %959 = vmatprep.subr.mxu0 0.0
    %960 = vmatpush1.msra.mxu0 0.0
    %961 = vmatprep.subr.mxu0 0.0
    %962 = vmatpush1.msra.mxu0 0.0
    %963 = vmatprep.subr.mxu0 0.0
    %964 = vmatpush1.msra.mxu0 0.0
    %965 = vmatprep.subr.mxu0 0.0
    %966 = vmatpush1.msra.mxu0 0.0
    %967 = vmatprep.subr.mxu0 0.0
    %968 = vmatpush1.msra.mxu0 0.0
    %969 = vmatprep.subr.mxu0 0.0
    %970 = vmatpush1.msra.mxu0 0.0
    %971 = vmatprep.subr.mxu0 0.0
    %972 = vmatpush1.msra.mxu0 0.0
    %973 = vmatprep.subr.mxu0 0.0
    %974 = vmatpush1.msra.mxu0 0.0
    %975 = vmatprep.subr.mxu0 0.0
    %976 = vmatpush1.msra.mxu0 0.0
    %977 = vmatprep.subr.mxu0 0.0
    %978 = vmatpush1.msra.mxu0 0.0
    %979 = vmatprep.subr.mxu0 0.0
    %980 = vmatpush1.msra.mxu0 0.0
    %981 = vmatprep.subr.mxu0 0.0
    %982 = vmatpush1.msra.mxu0 0.0
    %983 = vmatprep.subr.mxu0 0.0
    %984 = vmatpush1.msra.mxu0 0.0
    %985 = vmatprep.subr.mxu0 0.0
    %986 = vmatpush1.msra.mxu0 0.0
    %987 = vmatprep.subr.mxu0 0.0
    %988 = vmatpush1.msra.mxu0 0.0
    %989 = vmatprep.subr.mxu0 0.0
    %990 = vmatpush1.msra.mxu0 0.0
    %991 = vmatprep.mubr.f32.mxu0 0.0
    %992 = vmatmul.mubr.f32.gmra.mrb[0].mxu0 %v880
    %v993 = vpop.f32.mrb[0].mxu0
    %v994 = vadd.f32 0.0, %v993
    %v995 = vpop.f32.mrb[0].mxu0
    %996 = vmatprep.mubr.f32.mxu0 0.0
    %997 = vmatmul.mubr.f32.gmra.mrb[0].mxu0 %v883
    %v998 = vpop.f32.mrb[0].mxu0
    %v999 = vadd.f32 0.0, %v998
    %v1000 = vpop.f32.mrb[0].mxu0
    %1001 = vmatprep.mubr.f32.mxu0 0.0
    %1002 = vmatmul.mubr.f32.gmra.mrb[0].mxu0 %v886
    %v1003 = vpop.f32.mrb[0].mxu0
    %v1004 = vadd.f32 0.0, %v1003
    %v1005 = vpop.f32.mrb[0].mxu0
    %1006 = vmatprep.mubr.f32.mxu0 0.0
    %1007 = vmatmul.mubr.f32.gmra.mrb[0].mxu0 %v889
    %v1008 = vpop.f32.mrb[0].mxu0
    %v1009 = vadd.f32 0.0, %v1008
    %v1010 = vpop.f32.mrb[0].mxu0
    %1011 = vmatprep.mubr.f32.mxu0 0.0
    %1012 = vmatmul.mubr.f32.gmra.mrb[0].mxu0 %v892
    %v1013 = vpop.f32.mrb[0].mxu0
    %v1014 = vadd.f32 0.0, %v1013
    %v1015 = vpop.f32.mrb[0].mxu0
    %1016 = vmatprep.mubr.f32.mxu0 0.0
    %1017 = vmatmul.mubr.f32.gmra.mrb[0].mxu0 %v895
    %v1018 = vpop.f32.mrb[0].mxu0
    %v1019 = vadd.f32 0.0, %v1018
    %v1020 = vpop.f32.mrb[0].mxu0
    %1021 = vmatprep.mubr.f32.mxu0 0.0
    %1022 = vmatmul.mubr.f32.gmra.mrb[0].mxu0 %v898
    %v1023 = vpop.f32.mrb[0].mxu0
    %v1024 = vadd.f32 0.0, %v1023
    %v1025 = vpop.f32.mrb[0].mxu0
    %1026 = vmatprep.mubr.f32.mxu0 0.0
    %1027 = vmatmul.mubr.f32.gmra.mrb[0].mxu0 %v901
    %v1028 = vpop.f32.mrb[0].mxu0
    %v1029 = vadd.f32 0.0, %v1028
    %v1030 = vpop.f32.mrb[0].mxu0
    %1031 = vmatprep.mubr.f32.mxu0 0.0
    %1032 = vmatmul.mubr.f32.gmra.mrb[0].mxu0 %v904
    %v1033 = vpop.f32.mrb[0].mxu0
    %v1034 = vadd.f32 0.0, %v1033
    %v1035 = vpop.f32.mrb[0].mxu0
    %1036 = vmatprep.mubr.f32.mxu0 0.0
    %1037 = vmatmul.mubr.f32.gmra.mrb[0].mxu0 %v907
    %v1038 = vpop.f32.mrb[0].mxu0
    %v1039 = vadd.f32 0.0, %v1038
    %v1040 = vpop.f32.mrb[0].mxu0
    %1041 = vmatprep.mubr.f32.mxu0 0.0
    %1042 = vmatmul.mubr.f32.gmra.mrb[0].mxu0 %v910
    %v1043 = vpop.f32.mrb[0].mxu0
    %v1044 = vadd.f32 0.0, %v1043
    %v1045 = vpop.f32.mrb[0].mxu0
    %1046 = vmatprep.mubr.f32.mxu0 0.0
    %1047 = vmatmul.mubr.f32.gmra.mrb[0].mxu0 %v913
    %v1048 = vpop.f32.mrb[0].mxu0
    %v1049 = vadd.f32 0.0, %v1048
    %v1050 = vpop.f32.mrb[0].mxu0
    %1051 = vmatprep.mubr.f32.mxu0 0.0
    %1052 = vmatmul.mubr.f32.gmra.mrb[0].mxu0 %v916
    %v1053 = vpop.f32.mrb[0].mxu0
    %v1054 = vadd.f32 0.0, %v1053
    %v1055 = vpop.f32.mrb[0].mxu0
    %1056 = vmatprep.mubr.f32.mxu0 0.0
    %1057 = vmatmul.mubr.f32.gmra.mrb[0].mxu0 %v919
    %v1058 = vpop.f32.mrb[0].mxu0
    %v1059 = vadd.f32 0.0, %v1058
    %v1060 = vpop.f32.mrb[0].mxu0
    %1061 = vmatprep.mubr.f32.mxu0 0.0
    %1062 = vmatmul.mubr.f32.gmra.mrb[0].mxu0 %v922
    %v1063 = vpop.f32.mrb[0].mxu0
    %v1064 = vadd.f32 0.0, %v1063
    %v1065 = vpop.f32.mrb[0].mxu0
    %1066 = vmatprep.mubr.f32.mxu0 0.0
    %1067 = vmatmul.mubr.f32.gmra.mrb[0].mxu0 %v925
    %v1068 = vpop.f32.mrb[0].mxu0
    %v1069 = vadd.f32 0.0, %v1068
    %v1070 = vpop.f32.mrb[0].mxu0
    %1071 = vdwg.mxu0
    %1072 = vxpose.xlu0.b32.start [1/16] %v163, 128
    %1073 = vxpose.xlu0.b32.cont [2/16] %v164, 128
    %1074 = vxpose.xlu0.b32.cont [3/16] 0.0, 128
    %1075 = vxpose.xlu0.b32.cont [4/16] 0.0, 128
    %1076 = vxpose.xlu0.b32.cont [5/16] 0.0, 128
    %1077 = vxpose.xlu0.b32.cont [6/16] 0.0, 128
    %1078 = vxpose.xlu0.b32.cont [7/16] 0.0, 128
    %1079 = vxpose.xlu0.b32.cont [8/16] 0.0, 128
    %1080 = vxpose.xlu0.b32.cont [9/16] 0.0, 128
    %1081 = vxpose.xlu0.b32.cont [10/16] 0.0, 128
    %1082 = vxpose.xlu0.b32.cont [11/16] 0.0, 128
    %1083 = vxpose.xlu0.b32.cont [12/16] 0.0, 128
    %1084 = vxpose.xlu0.b32.cont [13/16] 0.0, 128
    %1085 = vxpose.xlu0.b32.cont [14/16] 0.0, 128
    %1086 = vxpose.xlu0.b32.cont [15/16] 0.0, 128
    %1087 = vxpose.xlu0.b32.end [16/16] 0.0, 128
    %v1088 = vpop.trf.xlu0
    %v1089 = vpop.trf.xlu0
    %v1090 = vpop.trf.xlu0
    %v1091 = vpop.trf.xlu0
    %v1092 = vpop.trf.xlu0
    %v1093 = vpop.trf.xlu0
    %v1094 = vpop.trf.xlu0
    %v1095 = vpop.trf.xlu0
    %v1096 = vpop.trf.xlu0
    %v1097 = vpop.trf.xlu0
    %v1098 = vpop.trf.xlu0
    %v1099 = vpop.trf.xlu0
    %v1100 = vpop.trf.xlu0
    %v1101 = vpop.trf.xlu0
    %v1102 = vpop.trf.xlu0
    %v1103 = vpop.trf.xlu0
    %v1105 = vsel %vm203, %v1088, 0
    %v1108 = vsel %vm203, %v1089, 0
    %v1111 = vsel %vm203, %v1090, 0
    %v1114 = vsel %vm203, %v1091, 0
    %v1117 = vsel %vm203, %v1092, 0
    %v1120 = vsel %vm203, %v1093, 0
    %v1123 = vsel %vm203, %v1094, 0
    %v1126 = vsel %vm203, %v1095, 0
    %v1129 = vsel %vm203, %v1096, 0
    %v1132 = vsel %vm203, %v1097, 0
    %v1135 = vsel %vm203, %v1098, 0
    %v1138 = vsel %vm203, %v1099, 0
    %v1141 = vsel %vm203, %v1100, 0
    %v1144 = vsel %vm203, %v1101, 0
    %v1147 = vsel %vm203, %v1102, 0
    %v1150 = vsel %vm203, %v1103, 0
    %1152 = vmatprep.subr.mxu0 0.0
    %1153 = vmatpush1.msra.mxu0 %v131
    %1154 = vmatprep.subr.mxu0 0.0
    %1155 = vmatpush1.msra.mxu0 %v132
    %1156 = vmatprep.subr.mxu0 0.0
    %1157 = vmatpush1.msra.mxu0 0.0
    %1158 = vmatprep.subr.mxu0 0.0
    %1159 = vmatpush1.msra.mxu0 0.0
    %1160 = vmatprep.subr.mxu0 0.0
    %1161 = vmatpush1.msra.mxu0 0.0
    %1162 = vmatprep.subr.mxu0 0.0
    %1163 = vmatpush1.msra.mxu0 0.0
    %1164 = vmatprep.subr.mxu0 0.0
    %1165 = vmatpush1.msra.mxu0 0.0
    %1166 = vmatprep.subr.mxu0 0.0
    %1167 = vmatpush1.msra.mxu0 0.0
    %1168 = vmatprep.subr.mxu0 0.0
    %1169 = vmatpush1.msra.mxu0 0.0
    %1170 = vmatprep.subr.mxu0 0.0
    %1171 = vmatpush1.msra.mxu0 0.0
    %1172 = vmatprep.subr.mxu0 0.0
    %1173 = vmatpush1.msra.mxu0 0.0
    %1174 = vmatprep.subr.mxu0 0.0
    %1175 = vmatpush1.msra.mxu0 0.0
    %1176 = vmatprep.subr.mxu0 0.0
    %1177 = vmatpush1.msra.mxu0 0.0
    %1178 = vmatprep.subr.mxu0 0.0
    %1179 = vmatpush1.msra.mxu0 0.0
    %1180 = vmatprep.subr.mxu0 0.0
    %1181 = vmatpush1.msra.mxu0 0.0
    %1182 = vmatprep.subr.mxu0 0.0
    %1183 = vmatpush1.msra.mxu0 0.0
    %1184 = vmatprep.subr.mxu0 0.0
    %1185 = vmatpush1.msra.mxu0 0.0
    %1186 = vmatprep.subr.mxu0 0.0
    %1187 = vmatpush1.msra.mxu0 0.0
    %1188 = vmatprep.subr.mxu0 0.0
    %1189 = vmatpush1.msra.mxu0 0.0
    %1190 = vmatprep.subr.mxu0 0.0
    %1191 = vmatpush1.msra.mxu0 0.0
    %1192 = vmatprep.subr.mxu0 0.0
    %1193 = vmatpush1.msra.mxu0 0.0
    %1194 = vmatprep.subr.mxu0 0.0
    %1195 = vmatpush1.msra.mxu0 0.0
    %1196 = vmatprep.subr.mxu0 0.0
    %1197 = vmatpush1.msra.mxu0 0.0
    %1198 = vmatprep.subr.mxu0 0.0
    %1199 = vmatpush1.msra.mxu0 0.0
    %1200 = vmatprep.subr.mxu0 0.0
    %1201 = vmatpush1.msra.mxu0 0.0
    %1202 = vmatprep.subr.mxu0 0.0
    %1203 = vmatpush1.msra.mxu0 0.0
    %1204 = vmatprep.subr.mxu0 0.0
    %1205 = vmatpush1.msra.mxu0 0.0
    %1206 = vmatprep.subr.mxu0 0.0
    %1207 = vmatpush1.msra.mxu0 0.0
    %1208 = vmatprep.subr.mxu0 0.0
    %1209 = vmatpush1.msra.mxu0 0.0
    %1210 = vmatprep.subr.mxu0 0.0
    %1211 = vmatpush1.msra.mxu0 0.0
    %1212 = vmatprep.subr.mxu0 0.0
    %1213 = vmatpush1.msra.mxu0 0.0
    %1214 = vmatprep.subr.mxu0 0.0
    %1215 = vmatpush1.msra.mxu0 0.0
    %1216 = vmatprep.mubr.f32.mxu0 0.0
    %1217 = vmatmul.mubr.f32.gmra.mrb[0].mxu0 %v1105
    %v1218 = vpop.f32.mrb[0].mxu0
    %v1219 = vadd.f32 0.0, %v1218
    %v1220 = vpop.f32.mrb[0].mxu0
    %1221 = vmatprep.mubr.f32.mxu0 0.0
    %1222 = vmatmul.mubr.f32.gmra.mrb[0].mxu0 %v1108
    %v1223 = vpop.f32.mrb[0].mxu0
    %v1224 = vadd.f32 0.0, %v1223
    %v1225 = vpop.f32.mrb[0].mxu0
    %1226 = vmatprep.mubr.f32.mxu0 0.0
    %1227 = vmatmul.mubr.f32.gmra.mrb[0].mxu0 %v1111
    %v1228 = vpop.f32.mrb[0].mxu0
    %v1229 = vadd.f32 0.0, %v1228
    %v1230 = vpop.f32.mrb[0].mxu0
    %1231 = vmatprep.mubr.f32.mxu0 0.0
    %1232 = vmatmul.mubr.f32.gmra.mrb[0].mxu0 %v1114
    %v1233 = vpop.f32.mrb[0].mxu0
    %v1234 = vadd.f32 0.0, %v1233
    %v1235 = vpop.f32.mrb[0].mxu0
    %1236 = vmatprep.mubr.f32.mxu0 0.0
    %1237 = vmatmul.mubr.f32.gmra.mrb[0].mxu0 %v1117
    %v1238 = vpop.f32.mrb[0].mxu0
    %v1239 = vadd.f32 0.0, %v1238
    %v1240 = vpop.f32.mrb[0].mxu0
    %1241 = vmatprep.mubr.f32.mxu0 0.0
    %1242 = vmatmul.mubr.f32.gmra.mrb[0].mxu0 %v1120
    %v1243 = vpop.f32.mrb[0].mxu0
    %v1244 = vadd.f32 0.0, %v1243
    %v1245 = vpop.f32.mrb[0].mxu0
    %1246 = vmatprep.mubr.f32.mxu0 0.0
    %1247 = vmatmul.mubr.f32.gmra.mrb[0].mxu0 %v1123
    %v1248 = vpop.f32.mrb[0].mxu0
    %v1249 = vadd.f32 0.0, %v1248
    %v1250 = vpop.f32.mrb[0].mxu0
    %1251 = vmatprep.mubr.f32.mxu0 0.0
    %1252 = vmatmul.mubr.f32.gmra.mrb[0].mxu0 %v1126
    %v1253 = vpop.f32.mrb[0].mxu0
    %v1254 = vadd.f32 0.0, %v1253
    %v1255 = vpop.f32.mrb[0].mxu0
    %1256 = vmatprep.mubr.f32.mxu0 0.0
    %1257 = vmatmul.mubr.f32.gmra.mrb[0].mxu0 %v1129
    %v1258 = vpop.f32.mrb[0].mxu0
    %v1259 = vadd.f32 0.0, %v1258
    %v1260 = vpop.f32.mrb[0].mxu0
    %1261 = vmatprep.mubr.f32.mxu0 0.0
    %1262 = vmatmul.mubr.f32.gmra.mrb[0].mxu0 %v1132
    %v1263 = vpop.f32.mrb[0].mxu0
    %v1264 = vadd.f32 0.0, %v1263
    %v1265 = vpop.f32.mrb[0].mxu0
    %1266 = vmatprep.mubr.f32.mxu0 0.0
    %1267 = vmatmul.mubr.f32.gmra.mrb[0].mxu0 %v1135
    %v1268 = vpop.f32.mrb[0].mxu0
    %v1269 = vadd.f32 0.0, %v1268
    %v1270 = vpop.f32.mrb[0].mxu0
    %1271 = vmatprep.mubr.f32.mxu0 0.0
    %1272 = vmatmul.mubr.f32.gmra.mrb[0].mxu0 %v1138
    %v1273 = vpop.f32.mrb[0].mxu0
    %v1274 = vadd.f32 0.0, %v1273
    %v1275 = vpop.f32.mrb[0].mxu0
    %1276 = vmatprep.mubr.f32.mxu0 0.0
    %1277 = vmatmul.mubr.f32.gmra.mrb[0].mxu0 %v1141
    %v1278 = vpop.f32.mrb[0].mxu0
    %v1279 = vadd.f32 0.0, %v1278
    %v1280 = vpop.f32.mrb[0].mxu0
    %1281 = vmatprep.mubr.f32.mxu0 0.0
    %1282 = vmatmul.mubr.f32.gmra.mrb[0].mxu0 %v1144
    %v1283 = vpop.f32.mrb[0].mxu0
    %v1284 = vadd.f32 0.0, %v1283
    %v1285 = vpop.f32.mrb[0].mxu0
    %1286 = vmatprep.mubr.f32.mxu0 0.0
    %1287 = vmatmul.mubr.f32.gmra.mrb[0].mxu0 %v1147
    %v1288 = vpop.f32.mrb[0].mxu0
    %v1289 = vadd.f32 0.0, %v1288
    %v1290 = vpop.f32.mrb[0].mxu0
    %1291 = vmatprep.mubr.f32.mxu0 0.0
    %1292 = vmatmul.mubr.f32.gmra.mrb[0].mxu0 %v1150
    %v1293 = vpop.f32.mrb[0].mxu0
    %v1294 = vadd.f32 0.0, %v1293
    %v1295 = vpop.f32.mrb[0].mxu0
    %1296 = vdwg.mxu0
    %1297 = vxpose.xlu0.b32.start [1/16] %v165, 128
    %1298 = vxpose.xlu0.b32.cont [2/16] %v166, 128
    %1299 = vxpose.xlu0.b32.cont [3/16] 0.0, 128
    %1300 = vxpose.xlu0.b32.cont [4/16] 0.0, 128
    %1301 = vxpose.xlu0.b32.cont [5/16] 0.0, 128
    %1302 = vxpose.xlu0.b32.cont [6/16] 0.0, 128
    %1303 = vxpose.xlu0.b32.cont [7/16] 0.0, 128
    %1304 = vxpose.xlu0.b32.cont [8/16] 0.0, 128
    %1305 = vxpose.xlu0.b32.cont [9/16] 0.0, 128
    %1306 = vxpose.xlu0.b32.cont [10/16] 0.0, 128
    %1307 = vxpose.xlu0.b32.cont [11/16] 0.0, 128
    %1308 = vxpose.xlu0.b32.cont [12/16] 0.0, 128
    %1309 = vxpose.xlu0.b32.cont [13/16] 0.0, 128
    %1310 = vxpose.xlu0.b32.cont [14/16] 0.0, 128
    %1311 = vxpose.xlu0.b32.cont [15/16] 0.0, 128
    %1312 = vxpose.xlu0.b32.end [16/16] 0.0, 128
    %v1313 = vpop.trf.xlu0
    %v1314 = vpop.trf.xlu0
    %v1315 = vpop.trf.xlu0
    %v1316 = vpop.trf.xlu0
    %v1317 = vpop.trf.xlu0
    %v1318 = vpop.trf.xlu0
    %v1319 = vpop.trf.xlu0
    %v1320 = vpop.trf.xlu0
    %v1321 = vpop.trf.xlu0
    %v1322 = vpop.trf.xlu0
    %v1323 = vpop.trf.xlu0
    %v1324 = vpop.trf.xlu0
    %v1325 = vpop.trf.xlu0
    %v1326 = vpop.trf.xlu0
    %v1327 = vpop.trf.xlu0
    %v1328 = vpop.trf.xlu0
    %v1330 = vsel %vm203, %v1313, 0
    %v1333 = vsel %vm203, %v1314, 0
    %v1336 = vsel %vm203, %v1315, 0
    %v1339 = vsel %vm203, %v1316, 0
    %v1342 = vsel %vm203, %v1317, 0
    %v1345 = vsel %vm203, %v1318, 0
    %v1348 = vsel %vm203, %v1319, 0
    %v1351 = vsel %vm203, %v1320, 0
    %v1354 = vsel %vm203, %v1321, 0
    %v1357 = vsel %vm203, %v1322, 0
    %v1360 = vsel %vm203, %v1323, 0
    %v1363 = vsel %vm203, %v1324, 0
    %v1366 = vsel %vm203, %v1325, 0
    %v1369 = vsel %vm203, %v1326, 0
    %v1372 = vsel %vm203, %v1327, 0
    %v1375 = vsel %vm203, %v1328, 0
    %1377 = vmatprep.subr.mxu0 0.0
    %1378 = vmatpush1.msra.mxu0 %v133
    %1379 = vmatprep.subr.mxu0 0.0
    %1380 = vmatpush1.msra.mxu0 %v134
    %1381 = vmatprep.subr.mxu0 0.0
    %1382 = vmatpush1.msra.mxu0 0.0
    %1383 = vmatprep.subr.mxu0 0.0
    %1384 = vmatpush1.msra.mxu0 0.0
    %1385 = vmatprep.subr.mxu0 0.0
    %1386 = vmatpush1.msra.mxu0 0.0
    %1387 = vmatprep.subr.mxu0 0.0
    %1388 = vmatpush1.msra.mxu0 0.0
    %1389 = vmatprep.subr.mxu0 0.0
    %1390 = vmatpush1.msra.mxu0 0.0
    %1391 = vmatprep.subr.mxu0 0.0
    %1392 = vmatpush1.msra.mxu0 0.0
    %1393 = vmatprep.subr.mxu0 0.0
    %1394 = vmatpush1.msra.mxu0 0.0
    %1395 = vmatprep.subr.mxu0 0.0
    %1396 = vmatpush1.msra.mxu0 0.0
    %1397 = vmatprep.subr.mxu0 0.0
    %1398 = vmatpush1.msra.mxu0 0.0
    %1399 = vmatprep.subr.mxu0 0.0
    %1400 = vmatpush1.msra.mxu0 0.0
    %1401 = vmatprep.subr.mxu0 0.0
    %1402 = vmatpush1.msra.mxu0 0.0
    %1403 = vmatprep.subr.mxu0 0.0
    %1404 = vmatpush1.msra.mxu0 0.0
    %1405 = vmatprep.subr.mxu0 0.0
    %1406 = vmatpush1.msra.mxu0 0.0
    %1407 = vmatprep.subr.mxu0 0.0
    %1408 = vmatpush1.msra.mxu0 0.0
    %1409 = vmatprep.subr.mxu0 0.0
    %1410 = vmatpush1.msra.mxu0 0.0
    %1411 = vmatprep.subr.mxu0 0.0
    %1412 = vmatpush1.msra.mxu0 0.0
    %1413 = vmatprep.subr.mxu0 0.0
    %1414 = vmatpush1.msra.mxu0 0.0
    %1415 = vmatprep.subr.mxu0 0.0
    %1416 = vmatpush1.msra.mxu0 0.0
    %1417 = vmatprep.subr.mxu0 0.0
    %1418 = vmatpush1.msra.mxu0 0.0
    %1419 = vmatprep.subr.mxu0 0.0
    %1420 = vmatpush1.msra.mxu0 0.0
    %1421 = vmatprep.subr.mxu0 0.0
    %1422 = vmatpush1.msra.mxu0 0.0
    %1423 = vmatprep.subr.mxu0 0.0
    %1424 = vmatpush1.msra.mxu0 0.0
    %1425 = vmatprep.subr.mxu0 0.0
    %1426 = vmatpush1.msra.mxu0 0.0
    %1427 = vmatprep.subr.mxu0 0.0
    %1428 = vmatpush1.msra.mxu0 0.0
    %1429 = vmatprep.subr.mxu0 0.0
    %1430 = vmatpush1.msra.mxu0 0.0
    %1431 = vmatprep.subr.mxu0 0.0
    %1432 = vmatpush1.msra.mxu0 0.0
    %1433 = vmatprep.subr.mxu0 0.0
    %1434 = vmatpush1.msra.mxu0 0.0
    %1435 = vmatprep.subr.mxu0 0.0
    %1436 = vmatpush1.msra.mxu0 0.0
    %1437 = vmatprep.subr.mxu0 0.0
    %1438 = vmatpush1.msra.mxu0 0.0
    %1439 = vmatprep.subr.mxu0 0.0
    %1440 = vmatpush1.msra.mxu0 0.0
    %1441 = vmatprep.mubr.f32.mxu0 0.0
    %1442 = vmatmul.mubr.f32.gmra.mrb[0].mxu0 %v1330
    %v1443 = vpop.f32.mrb[0].mxu0
    %v1444 = vadd.f32 0.0, %v1443
    %v1445 = vpop.f32.mrb[0].mxu0
    %1446 = vmatprep.mubr.f32.mxu0 0.0
    %1447 = vmatmul.mubr.f32.gmra.mrb[0].mxu0 %v1333
    %v1448 = vpop.f32.mrb[0].mxu0
    %v1449 = vadd.f32 0.0, %v1448
    %v1450 = vpop.f32.mrb[0].mxu0
    %1451 = vmatprep.mubr.f32.mxu0 0.0
    %1452 = vmatmul.mubr.f32.gmra.mrb[0].mxu0 %v1336
    %v1453 = vpop.f32.mrb[0].mxu0
    %v1454 = vadd.f32 0.0, %v1453
    %v1455 = vpop.f32.mrb[0].mxu0
    %1456 = vmatprep.mubr.f32.mxu0 0.0
    %1457 = vmatmul.mubr.f32.gmra.mrb[0].mxu0 %v1339
    %v1458 = vpop.f32.mrb[0].mxu0
    %v1459 = vadd.f32 0.0, %v1458
    %v1460 = vpop.f32.mrb[0].mxu0
    %1461 = vmatprep.mubr.f32.mxu0 0.0
    %1462 = vmatmul.mubr.f32.gmra.mrb[0].mxu0 %v1342
    %v1463 = vpop.f32.mrb[0].mxu0
    %v1464 = vadd.f32 0.0, %v1463
    %v1465 = vpop.f32.mrb[0].mxu0
    %1466 = vmatprep.mubr.f32.mxu0 0.0
    %1467 = vmatmul.mubr.f32.gmra.mrb[0].mxu0 %v1345
    %v1468 = vpop.f32.mrb[0].mxu0
    %v1469 = vadd.f32 0.0, %v1468
    %v1470 = vpop.f32.mrb[0].mxu0
    %1471 = vmatprep.mubr.f32.mxu0 0.0
    %1472 = vmatmul.mubr.f32.gmra.mrb[0].mxu0 %v1348
    %v1473 = vpop.f32.mrb[0].mxu0
    %v1474 = vadd.f32 0.0, %v1473
    %v1475 = vpop.f32.mrb[0].mxu0
    %1476 = vmatprep.mubr.f32.mxu0 0.0
    %1477 = vmatmul.mubr.f32.gmra.mrb[0].mxu0 %v1351
    %v1478 = vpop.f32.mrb[0].mxu0
    %v1479 = vadd.f32 0.0, %v1478
    %v1480 = vpop.f32.mrb[0].mxu0
    %1481 = vmatprep.mubr.f32.mxu0 0.0
    %1482 = vmatmul.mubr.f32.gmra.mrb[0].mxu0 %v1354
    %v1483 = vpop.f32.mrb[0].mxu0
    %v1484 = vadd.f32 0.0, %v1483
    %v1485 = vpop.f32.mrb[0].mxu0
    %1486 = vmatprep.mubr.f32.mxu0 0.0
    %1487 = vmatmul.mubr.f32.gmra.mrb[0].mxu0 %v1357
    %v1488 = vpop.f32.mrb[0].mxu0
    %v1489 = vadd.f32 0.0, %v1488
    %v1490 = vpop.f32.mrb[0].mxu0
    %1491 = vmatprep.mubr.f32.mxu0 0.0
    %1492 = vmatmul.mubr.f32.gmra.mrb[0].mxu0 %v1360
    %v1493 = vpop.f32.mrb[0].mxu0
    %v1494 = vadd.f32 0.0, %v1493
    %v1495 = vpop.f32.mrb[0].mxu0
    %1496 = vmatprep.mubr.f32.mxu0 0.0
    %1497 = vmatmul.mubr.f32.gmra.mrb[0].mxu0 %v1363
    %v1498 = vpop.f32.mrb[0].mxu0
    %v1499 = vadd.f32 0.0, %v1498
    %v1500 = vpop.f32.mrb[0].mxu0
    %1501 = vmatprep.mubr.f32.mxu0 0.0
    %1502 = vmatmul.mubr.f32.gmra.mrb[0].mxu0 %v1366
    %v1503 = vpop.f32.mrb[0].mxu0
    %v1504 = vadd.f32 0.0, %v1503
    %v1505 = vpop.f32.mrb[0].mxu0
    %1506 = vmatprep.mubr.f32.mxu0 0.0
    %1507 = vmatmul.mubr.f32.gmra.mrb[0].mxu0 %v1369
    %v1508 = vpop.f32.mrb[0].mxu0
    %v1509 = vadd.f32 0.0, %v1508
    %v1510 = vpop.f32.mrb[0].mxu0
    %1511 = vmatprep.mubr.f32.mxu0 0.0
    %1512 = vmatmul.mubr.f32.gmra.mrb[0].mxu0 %v1372
    %v1513 = vpop.f32.mrb[0].mxu0
    %v1514 = vadd.f32 0.0, %v1513
    %v1515 = vpop.f32.mrb[0].mxu0
    %1516 = vmatprep.mubr.f32.mxu0 0.0
    %1517 = vmatmul.mubr.f32.gmra.mrb[0].mxu0 %v1375
    %v1518 = vpop.f32.mrb[0].mxu0
    %v1519 = vadd.f32 0.0, %v1518
    %v1520 = vpop.f32.mrb[0].mxu0
    %1521 = vdwg.mxu0
    %1522 = vxpose.xlu0.b32.start [1/16] %v167, 128
    %1523 = vxpose.xlu0.b32.cont [2/16] %v168, 128
    %1524 = vxpose.xlu0.b32.cont [3/16] 0.0, 128
    %1525 = vxpose.xlu0.b32.cont [4/16] 0.0, 128
    %1526 = vxpose.xlu0.b32.cont [5/16] 0.0, 128
    %1527 = vxpose.xlu0.b32.cont [6/16] 0.0, 128
    %1528 = vxpose.xlu0.b32.cont [7/16] 0.0, 128
    %1529 = vxpose.xlu0.b32.cont [8/16] 0.0, 128
    %1530 = vxpose.xlu0.b32.cont [9/16] 0.0, 128
    %1531 = vxpose.xlu0.b32.cont [10/16] 0.0, 128
    %1532 = vxpose.xlu0.b32.cont [11/16] 0.0, 128
    %1533 = vxpose.xlu0.b32.cont [12/16] 0.0, 128
    %1534 = vxpose.xlu0.b32.cont [13/16] 0.0, 128
    %1535 = vxpose.xlu0.b32.cont [14/16] 0.0, 128
    %1536 = vxpose.xlu0.b32.cont [15/16] 0.0, 128
    %1537 = vxpose.xlu0.b32.end [16/16] 0.0, 128
    %v1538 = vpop.trf.xlu0
    %v1539 = vpop.trf.xlu0
    %v1540 = vpop.trf.xlu0
    %v1541 = vpop.trf.xlu0
    %v1542 = vpop.trf.xlu0
    %v1543 = vpop.trf.xlu0
    %v1544 = vpop.trf.xlu0
    %v1545 = vpop.trf.xlu0
    %v1546 = vpop.trf.xlu0
    %v1547 = vpop.trf.xlu0
    %v1548 = vpop.trf.xlu0
    %v1549 = vpop.trf.xlu0
    %v1550 = vpop.trf.xlu0
    %v1551 = vpop.trf.xlu0
    %v1552 = vpop.trf.xlu0
    %v1553 = vpop.trf.xlu0
    %v1555 = vsel %vm203, %v1538, 0
    %v1558 = vsel %vm203, %v1539, 0
    %v1561 = vsel %vm203, %v1540, 0
    %v1564 = vsel %vm203, %v1541, 0
    %v1567 = vsel %vm203, %v1542, 0
    %v1570 = vsel %vm203, %v1543, 0
    %v1573 = vsel %vm203, %v1544, 0
    %v1576 = vsel %vm203, %v1545, 0
    %v1579 = vsel %vm203, %v1546, 0
    %v1582 = vsel %vm203, %v1547, 0
    %v1585 = vsel %vm203, %v1548, 0
    %v1588 = vsel %vm203, %v1549, 0
    %v1591 = vsel %vm203, %v1550, 0
    %v1594 = vsel %vm203, %v1551, 0
    %v1597 = vsel %vm203, %v1552, 0
    %v1600 = vsel %vm203, %v1553, 0
    %1602 = vmatprep.subr.mxu0 0.0
    %1603 = vmatpush1.msra.mxu0 %v135
    %1604 = vmatprep.subr.mxu0 0.0
    %1605 = vmatpush1.msra.mxu0 %v136
    %1606 = vmatprep.subr.mxu0 0.0
    %1607 = vmatpush1.msra.mxu0 0.0
    %1608 = vmatprep.subr.mxu0 0.0
    %1609 = vmatpush1.msra.mxu0 0.0
    %1610 = vmatprep.subr.mxu0 0.0
    %1611 = vmatpush1.msra.mxu0 0.0
    %1612 = vmatprep.subr.mxu0 0.0
    %1613 = vmatpush1.msra.mxu0 0.0
    %1614 = vmatprep.subr.mxu0 0.0
    %1615 = vmatpush1.msra.mxu0 0.0
    %1616 = vmatprep.subr.mxu0 0.0
    %1617 = vmatpush1.msra.mxu0 0.0
    %1618 = vmatprep.subr.mxu0 0.0
    %1619 = vmatpush1.msra.mxu0 0.0
    %1620 = vmatprep.subr.mxu0 0.0
    %1621 = vmatpush1.msra.mxu0 0.0
    %1622 = vmatprep.subr.mxu0 0.0
    %1623 = vmatpush1.msra.mxu0 0.0
    %1624 = vmatprep.subr.mxu0 0.0
    %1625 = vmatpush1.msra.mxu0 0.0
    %1626 = vmatprep.subr.mxu0 0.0
    %1627 = vmatpush1.msra.mxu0 0.0
    %1628 = vmatprep.subr.mxu0 0.0
    %1629 = vmatpush1.msra.mxu0 0.0
    %1630 = vmatprep.subr.mxu0 0.0
    %1631 = vmatpush1.msra.mxu0 0.0
    %1632 = vmatprep.subr.mxu0 0.0
    %1633 = vmatpush1.msra.mxu0 0.0
    %1634 = vmatprep.subr.mxu0 0.0
    %1635 = vmatpush1.msra.mxu0 0.0
    %1636 = vmatprep.subr.mxu0 0.0
    %1637 = vmatpush1.msra.mxu0 0.0
    %1638 = vmatprep.subr.mxu0 0.0
    %1639 = vmatpush1.msra.mxu0 0.0
    %1640 = vmatprep.subr.mxu0 0.0
    %1641 = vmatpush1.msra.mxu0 0.0
    %1642 = vmatprep.subr.mxu0 0.0
    %1643 = vmatpush1.msra.mxu0 0.0
    %1644 = vmatprep.subr.mxu0 0.0
    %1645 = vmatpush1.msra.mxu0 0.0
    %1646 = vmatprep.subr.mxu0 0.0
    %1647 = vmatpush1.msra.mxu0 0.0
    %1648 = vmatprep.subr.mxu0 0.0
    %1649 = vmatpush1.msra.mxu0 0.0
    %1650 = vmatprep.subr.mxu0 0.0
    %1651 = vmatpush1.msra.mxu0 0.0
    %1652 = vmatprep.subr.mxu0 0.0
    %1653 = vmatpush1.msra.mxu0 0.0
    %1654 = vmatprep.subr.mxu0 0.0
    %1655 = vmatpush1.msra.mxu0 0.0
    %1656 = vmatprep.subr.mxu0 0.0
    %1657 = vmatpush1.msra.mxu0 0.0
    %1658 = vmatprep.subr.mxu0 0.0
    %1659 = vmatpush1.msra.mxu0 0.0
    %1660 = vmatprep.subr.mxu0 0.0
    %1661 = vmatpush1.msra.mxu0 0.0
    %1662 = vmatprep.subr.mxu0 0.0
    %1663 = vmatpush1.msra.mxu0 0.0
    %1664 = vmatprep.subr.mxu0 0.0
    %1665 = vmatpush1.msra.mxu0 0.0
    %1666 = vmatprep.mubr.f32.mxu0 0.0
    %1667 = vmatmul.mubr.f32.gmra.mrb[0].mxu0 %v1555
    %v1668 = vpop.f32.mrb[0].mxu0
    %v1669 = vadd.f32 0.0, %v1668
    %v1670 = vpop.f32.mrb[0].mxu0
    %1671 = vmatprep.mubr.f32.mxu0 0.0
    %1672 = vmatmul.mubr.f32.gmra.mrb[0].mxu0 %v1558
    %v1673 = vpop.f32.mrb[0].mxu0
    %v1674 = vadd.f32 0.0, %v1673
    %v1675 = vpop.f32.mrb[0].mxu0
    %1676 = vmatprep.mubr.f32.mxu0 0.0
    %1677 = vmatmul.mubr.f32.gmra.mrb[0].mxu0 %v1561
    %v1678 = vpop.f32.mrb[0].mxu0
    %v1679 = vadd.f32 0.0, %v1678
    %v1680 = vpop.f32.mrb[0].mxu0
    %1681 = vmatprep.mubr.f32.mxu0 0.0
    %1682 = vmatmul.mubr.f32.gmra.mrb[0].mxu0 %v1564
    %v1683 = vpop.f32.mrb[0].mxu0
    %v1684 = vadd.f32 0.0, %v1683
    %v1685 = vpop.f32.mrb[0].mxu0
    %1686 = vmatprep.mubr.f32.mxu0 0.0
    %1687 = vmatmul.mubr.f32.gmra.mrb[0].mxu0 %v1567
    %v1688 = vpop.f32.mrb[0].mxu0
    %v1689 = vadd.f32 0.0, %v1688
    %v1690 = vpop.f32.mrb[0].mxu0
    %1691 = vmatprep.mubr.f32.mxu0 0.0
    %1692 = vmatmul.mubr.f32.gmra.mrb[0].mxu0 %v1570
    %v1693 = vpop.f32.mrb[0].mxu0
    %v1694 = vadd.f32 0.0, %v1693
    %v1695 = vpop.f32.mrb[0].mxu0
    %1696 = vmatprep.mubr.f32.mxu0 0.0
    %1697 = vmatmul.mubr.f32.gmra.mrb[0].mxu0 %v1573
    %v1698 = vpop.f32.mrb[0].mxu0
    %v1699 = vadd.f32 0.0, %v1698
    %v1700 = vpop.f32.mrb[0].mxu0
    %1701 = vmatprep.mubr.f32.mxu0 0.0
    %1702 = vmatmul.mubr.f32.gmra.mrb[0].mxu0 %v1576
    %v1703 = vpop.f32.mrb[0].mxu0
    %v1704 = vadd.f32 0.0, %v1703
    %v1705 = vpop.f32.mrb[0].mxu0
    %1706 = vmatprep.mubr.f32.mxu0 0.0
    %1707 = vmatmul.mubr.f32.gmra.mrb[0].mxu0 %v1579
    %v1708 = vpop.f32.mrb[0].mxu0
    %v1709 = vadd.f32 0.0, %v1708
    %v1710 = vpop.f32.mrb[0].mxu0
    %1711 = vmatprep.mubr.f32.mxu0 0.0
    %1712 = vmatmul.mubr.f32.gmra.mrb[0].mxu0 %v1582
    %v1713 = vpop.f32.mrb[0].mxu0
    %v1714 = vadd.f32 0.0, %v1713
    %v1715 = vpop.f32.mrb[0].mxu0
    %1716 = vmatprep.mubr.f32.mxu0 0.0
    %1717 = vmatmul.mubr.f32.gmra.mrb[0].mxu0 %v1585
    %v1718 = vpop.f32.mrb[0].mxu0
    %v1719 = vadd.f32 0.0, %v1718
    %v1720 = vpop.f32.mrb[0].mxu0
    %1721 = vmatprep.mubr.f32.mxu0 0.0
    %1722 = vmatmul.mubr.f32.gmra.mrb[0].mxu0 %v1588
    %v1723 = vpop.f32.mrb[0].mxu0
    %v1724 = vadd.f32 0.0, %v1723
    %v1725 = vpop.f32.mrb[0].mxu0
    %1726 = vmatprep.mubr.f32.mxu0 0.0
    %1727 = vmatmul.mubr.f32.gmra.mrb[0].mxu0 %v1591
    %v1728 = vpop.f32.mrb[0].mxu0
    %v1729 = vadd.f32 0.0, %v1728
    %v1730 = vpop.f32.mrb[0].mxu0
    %1731 = vmatprep.mubr.f32.mxu0 0.0
    %1732 = vmatmul.mubr.f32.gmra.mrb[0].mxu0 %v1594
    %v1733 = vpop.f32.mrb[0].mxu0
    %v1734 = vadd.f32 0.0, %v1733
    %v1735 = vpop.f32.mrb[0].mxu0
    %1736 = vmatprep.mubr.f32.mxu0 0.0
    %1737 = vmatmul.mubr.f32.gmra.mrb[0].mxu0 %v1597
    %v1738 = vpop.f32.mrb[0].mxu0
    %v1739 = vadd.f32 0.0, %v1738
    %v1740 = vpop.f32.mrb[0].mxu0
    %1741 = vmatprep.mubr.f32.mxu0 0.0
    %1742 = vmatmul.mubr.f32.gmra.mrb[0].mxu0 %v1600
    %v1743 = vpop.f32.mrb[0].mxu0
    %v1744 = vadd.f32 0.0, %v1743
    %v1745 = vpop.f32.mrb[0].mxu0
    %1746 = vdwg.mxu0
    %1747 = vxpose.xlu0.b32.start [1/16] %v169, 128
    %1748 = vxpose.xlu0.b32.cont [2/16] %v170, 128
    %1749 = vxpose.xlu0.b32.cont [3/16] 0.0, 128
    %1750 = vxpose.xlu0.b32.cont [4/16] 0.0, 128
    %1751 = vxpose.xlu0.b32.cont [5/16] 0.0, 128
    %1752 = vxpose.xlu0.b32.cont [6/16] 0.0, 128
    %1753 = vxpose.xlu0.b32.cont [7/16] 0.0, 128
    %1754 = vxpose.xlu0.b32.cont [8/16] 0.0, 128
    %1755 = vxpose.xlu0.b32.cont [9/16] 0.0, 128
    %1756 = vxpose.xlu0.b32.cont [10/16] 0.0, 128
    %1757 = vxpose.xlu0.b32.cont [11/16] 0.0, 128
    %1758 = vxpose.xlu0.b32.cont [12/16] 0.0, 128
    %1759 = vxpose.xlu0.b32.cont [13/16] 0.0, 128
    %1760 = vxpose.xlu0.b32.cont [14/16] 0.0, 128
    %1761 = vxpose.xlu0.b32.cont [15/16] 0.0, 128
    %1762 = vxpose.xlu0.b32.end [16/16] 0.0, 128
    %v1763 = vpop.trf.xlu0
    %v1764 = vpop.trf.xlu0
    %v1765 = vpop.trf.xlu0
    %v1766 = vpop.trf.xlu0
    %v1767 = vpop.trf.xlu0
    %v1768 = vpop.trf.xlu0
    %v1769 = vpop.trf.xlu0
    %v1770 = vpop.trf.xlu0
    %v1771 = vpop.trf.xlu0
    %v1772 = vpop.trf.xlu0
    %v1773 = vpop.trf.xlu0
    %v1774 = vpop.trf.xlu0
    %v1775 = vpop.trf.xlu0
    %v1776 = vpop.trf.xlu0
    %v1777 = vpop.trf.xlu0
    %v1778 = vpop.trf.xlu0
    %v1780 = vsel %vm203, %v1763, 0
    %v1783 = vsel %vm203, %v1764, 0
    %v1786 = vsel %vm203, %v1765, 0
    %v1789 = vsel %vm203, %v1766, 0
    %v1792 = vsel %vm203, %v1767, 0
    %v1795 = vsel %vm203, %v1768, 0
    %v1798 = vsel %vm203, %v1769, 0
    %v1801 = vsel %vm203, %v1770, 0
    %v1804 = vsel %vm203, %v1771, 0
    %v1807 = vsel %vm203, %v1772, 0
    %v1810 = vsel %vm203, %v1773, 0
    %v1813 = vsel %vm203, %v1774, 0
    %v1816 = vsel %vm203, %v1775, 0
    %v1819 = vsel %vm203, %v1776, 0
    %v1822 = vsel %vm203, %v1777, 0
    %v1825 = vsel %vm203, %v1778, 0
    %1827 = vmatprep.subr.mxu0 0.0
    %1828 = vmatpush1.msra.mxu0 %v137
    %1829 = vmatprep.subr.mxu0 0.0
    %1830 = vmatpush1.msra.mxu0 %v138
    %1831 = vmatprep.subr.mxu0 0.0
    %1832 = vmatpush1.msra.mxu0 0.0
    %1833 = vmatprep.subr.mxu0 0.0
    %1834 = vmatpush1.msra.mxu0 0.0
    %1835 = vmatprep.subr.mxu0 0.0
    %1836 = vmatpush1.msra.mxu0 0.0
    %1837 = vmatprep.subr.mxu0 0.0
    %1838 = vmatpush1.msra.mxu0 0.0
    %1839 = vmatprep.subr.mxu0 0.0
    %1840 = vmatpush1.msra.mxu0 0.0
    %1841 = vmatprep.subr.mxu0 0.0
    %1842 = vmatpush1.msra.mxu0 0.0
    %1843 = vmatprep.subr.mxu0 0.0
    %1844 = vmatpush1.msra.mxu0 0.0
    %1845 = vmatprep.subr.mxu0 0.0
    %1846 = vmatpush1.msra.mxu0 0.0
    %1847 = vmatprep.subr.mxu0 0.0
    %1848 = vmatpush1.msra.mxu0 0.0
    %1849 = vmatprep.subr.mxu0 0.0
    %1850 = vmatpush1.msra.mxu0 0.0
    %1851 = vmatprep.subr.mxu0 0.0
    %1852 = vmatpush1.msra.mxu0 0.0
    %1853 = vmatprep.subr.mxu0 0.0
    %1854 = vmatpush1.msra.mxu0 0.0
    %1855 = vmatprep.subr.mxu0 0.0
    %1856 = vmatpush1.msra.mxu0 0.0
    %1857 = vmatprep.subr.mxu0 0.0
    %1858 = vmatpush1.msra.mxu0 0.0
    %1859 = vmatprep.subr.mxu0 0.0
    %1860 = vmatpush1.msra.mxu0 0.0
    %1861 = vmatprep.subr.mxu0 0.0
    %1862 = vmatpush1.msra.mxu0 0.0
    %1863 = vmatprep.subr.mxu0 0.0
    %1864 = vmatpush1.msra.mxu0 0.0
    %1865 = vmatprep.subr.mxu0 0.0
    %1866 = vmatpush1.msra.mxu0 0.0
    %1867 = vmatprep.subr.mxu0 0.0
    %1868 = vmatpush1.msra.mxu0 0.0
    %1869 = vmatprep.subr.mxu0 0.0
    %1870 = vmatpush1.msra.mxu0 0.0
    %1871 = vmatprep.subr.mxu0 0.0
    %1872 = vmatpush1.msra.mxu0 0.0
    %1873 = vmatprep.subr.mxu0 0.0
    %1874 = vmatpush1.msra.mxu0 0.0
    %1875 = vmatprep.subr.mxu0 0.0
    %1876 = vmatpush1.msra.mxu0 0.0
    %1877 = vmatprep.subr.mxu0 0.0
    %1878 = vmatpush1.msra.mxu0 0.0
    %1879 = vmatprep.subr.mxu0 0.0
    %1880 = vmatpush1.msra.mxu0 0.0
    %1881 = vmatprep.subr.mxu0 0.0
    %1882 = vmatpush1.msra.mxu0 0.0
    %1883 = vmatprep.subr.mxu0 0.0
    %1884 = vmatpush1.msra.mxu0 0.0
    %1885 = vmatprep.subr.mxu0 0.0
    %1886 = vmatpush1.msra.mxu0 0.0
    %1887 = vmatprep.subr.mxu0 0.0
    %1888 = vmatpush1.msra.mxu0 0.0
    %1889 = vmatprep.subr.mxu0 0.0
    %1890 = vmatpush1.msra.mxu0 0.0
    %1891 = vmatprep.mubr.f32.mxu0 0.0
    %1892 = vmatmul.mubr.f32.gmra.mrb[0].mxu0 %v1780
    %v1893 = vpop.f32.mrb[0].mxu0
    %v1894 = vadd.f32 0.0, %v1893
    %v1895 = vpop.f32.mrb[0].mxu0
    %1896 = vmatprep.mubr.f32.mxu0 0.0
    %1897 = vmatmul.mubr.f32.gmra.mrb[0].mxu0 %v1783
    %v1898 = vpop.f32.mrb[0].mxu0
    %v1899 = vadd.f32 0.0, %v1898
    %v1900 = vpop.f32.mrb[0].mxu0
    %1901 = vmatprep.mubr.f32.mxu0 0.0
    %1902 = vmatmul.mubr.f32.gmra.mrb[0].mxu0 %v1786
    %v1903 = vpop.f32.mrb[0].mxu0
    %v1904 = vadd.f32 0.0, %v1903
    %v1905 = vpop.f32.mrb[0].mxu0
    %1906 = vmatprep.mubr.f32.mxu0 0.0
    %1907 = vmatmul.mubr.f32.gmra.mrb[0].mxu0 %v1789
    %v1908 = vpop.f32.mrb[0].mxu0
    %v1909 = vadd.f32 0.0, %v1908
    %v1910 = vpop.f32.mrb[0].mxu0
    %1911 = vmatprep.mubr.f32.mxu0 0.0
    %1912 = vmatmul.mubr.f32.gmra.mrb[0].mxu0 %v1792
    %v1913 = vpop.f32.mrb[0].mxu0
    %v1914 = vadd.f32 0.0, %v1913
    %v1915 = vpop.f32.mrb[0].mxu0
    %1916 = vmatprep.mubr.f32.mxu0 0.0
    %1917 = vmatmul.mubr.f32.gmra.mrb[0].mxu0 %v1795
    %v1918 = vpop.f32.mrb[0].mxu0
    %v1919 = vadd.f32 0.0, %v1918
    %v1920 = vpop.f32.mrb[0].mxu0
    %1921 = vmatprep.mubr.f32.mxu0 0.0
    %1922 = vmatmul.mubr.f32.gmra.mrb[0].mxu0 %v1798
    %v1923 = vpop.f32.mrb[0].mxu0
    %v1924 = vadd.f32 0.0, %v1923
    %v1925 = vpop.f32.mrb[0].mxu0
    %1926 = vmatprep.mubr.f32.mxu0 0.0
    %1927 = vmatmul.mubr.f32.gmra.mrb[0].mxu0 %v1801
    %v1928 = vpop.f32.mrb[0].mxu0
    %v1929 = vadd.f32 0.0, %v1928
    %v1930 = vpop.f32.mrb[0].mxu0
    %1931 = vmatprep.mubr.f32.mxu0 0.0
    %1932 = vmatmul.mubr.f32.gmra.mrb[0].mxu0 %v1804
    %v1933 = vpop.f32.mrb[0].mxu0
    %v1934 = vadd.f32 0.0, %v1933
    %v1935 = vpop.f32.mrb[0].mxu0
    %1936 = vmatprep.mubr.f32.mxu0 0.0
    %1937 = vmatmul.mubr.f32.gmra.mrb[0].mxu0 %v1807
    %v1938 = vpop.f32.mrb[0].mxu0
    %v1939 = vadd.f32 0.0, %v1938
    %v1940 = vpop.f32.mrb[0].mxu0
    %1941 = vmatprep.mubr.f32.mxu0 0.0
    %1942 = vmatmul.mubr.f32.gmra.mrb[0].mxu0 %v1810
    %v1943 = vpop.f32.mrb[0].mxu0
    %v1944 = vadd.f32 0.0, %v1943
    %v1945 = vpop.f32.mrb[0].mxu0
    %1946 = vmatprep.mubr.f32.mxu0 0.0
    %1947 = vmatmul.mubr.f32.gmra.mrb[0].mxu0 %v1813
    %v1948 = vpop.f32.mrb[0].mxu0
    %v1949 = vadd.f32 0.0, %v1948
    %v1950 = vpop.f32.mrb[0].mxu0
    %1951 = vmatprep.mubr.f32.mxu0 0.0
    %1952 = vmatmul.mubr.f32.gmra.mrb[0].mxu0 %v1816
    %v1953 = vpop.f32.mrb[0].mxu0
    %v1954 = vadd.f32 0.0, %v1953
    %v1955 = vpop.f32.mrb[0].mxu0
    %1956 = vmatprep.mubr.f32.mxu0 0.0
    %1957 = vmatmul.mubr.f32.gmra.mrb[0].mxu0 %v1819
    %v1958 = vpop.f32.mrb[0].mxu0
    %v1959 = vadd.f32 0.0, %v1958
    %v1960 = vpop.f32.mrb[0].mxu0
    %1961 = vmatprep.mubr.f32.mxu0 0.0
    %1962 = vmatmul.mubr.f32.gmra.mrb[0].mxu0 %v1822
    %v1963 = vpop.f32.mrb[0].mxu0
    %v1964 = vadd.f32 0.0, %v1963
    %v1965 = vpop.f32.mrb[0].mxu0
    %1966 = vmatprep.mubr.f32.mxu0 0.0
    %1967 = vmatmul.mubr.f32.gmra.mrb[0].mxu0 %v1825
    %v1968 = vpop.f32.mrb[0].mxu0
    %v1969 = vadd.f32 0.0, %v1968
    %v1970 = vpop.f32.mrb[0].mxu0
    %1971 = vdwg.mxu0
    %v1972 = vlaneseq
    %v1973 = vand.u32 %v1972, 127
    %vm1974 = vcmp.lt.s32.totalorder %v1973, 16
    %v1975 = vsel %vm1974, 1, 0
    %vm1976 = vcmp.eq.s32.totalorder %v1975, 1
    %v1977 = vsel %vm1976, %v319, -inf
    %v1978 = vsel %vm1976, %v324, -inf
    %v1979 = vsel %vm1976, %v329, -inf
    %v1980 = vsel %vm1976, %v334, -inf
    %v1981 = vsel %vm1976, %v339, -inf
    %v1982 = vsel %vm1976, %v344, -inf
    %v1983 = vsel %vm1976, %v349, -inf
    %v1984 = vsel %vm1976, %v354, -inf
    %v1985 = vsel %vm1976, %v359, -inf
    %v1986 = vsel %vm1976, %v364, -inf
    %v1987 = vsel %vm1976, %v369, -inf
    %v1988 = vsel %vm1976, %v374, -inf
    %v1989 = vsel %vm1976, %v379, -inf
    %v1990 = vsel %vm1976, %v384, -inf
    %v1991 = vsel %vm1976, %v389, -inf
    %v1992 = vsel %vm1976, %v394, -inf
    %v1993 = vsel %vm1976, %v544, -inf
    %v1994 = vsel %vm1976, %v549, -inf
    %v1995 = vsel %vm1976, %v554, -inf
    %v1996 = vsel %vm1976, %v559, -inf
    %v1997 = vsel %vm1976, %v564, -inf
    %v1998 = vsel %vm1976, %v569, -inf
    %v1999 = vsel %vm1976, %v574, -inf
    %v2000 = vsel %vm1976, %v579, -inf
    %v2001 = vsel %vm1976, %v584, -inf
    %v2002 = vsel %vm1976, %v589, -inf
    %v2003 = vsel %vm1976, %v594, -inf
    %v2004 = vsel %vm1976, %v599, -inf
    %v2005 = vsel %vm1976, %v604, -inf
    %v2006 = vsel %vm1976, %v609, -inf
    %v2007 = vsel %vm1976, %v614, -inf
    %v2008 = vsel %vm1976, %v619, -inf
    %v2009 = vsel %vm1976, %v769, -inf
    %v2010 = vsel %vm1976, %v774, -inf
    %v2011 = vsel %vm1976, %v779, -inf
    %v2012 = vsel %vm1976, %v784, -inf
    %v2013 = vsel %vm1976, %v789, -inf
    %v2014 = vsel %vm1976, %v794, -inf
    %v2015 = vsel %vm1976, %v799, -inf
    %v2016 = vsel %vm1976, %v804, -inf
    %v2017 = vsel %vm1976, %v809, -inf
    %v2018 = vsel %vm1976, %v814, -inf
    %v2019 = vsel %vm1976, %v819, -inf
    %v2020 = vsel %vm1976, %v824, -inf
    %v2021 = vsel %vm1976, %v829, -inf
    %v2022 = vsel %vm1976, %v834, -inf
    %v2023 = vsel %vm1976, %v839, -inf
    %v2024 = vsel %vm1976, %v844, -inf
    %v2025 = vsel %vm1976, %v994, -inf
    %v2026 = vsel %vm1976, %v999, -inf
    %v2027 = vsel %vm1976, %v1004, -inf
    %v2028 = vsel %vm1976, %v1009, -inf
    %v2029 = vsel %vm1976, %v1014, -inf
    %v2030 = vsel %vm1976, %v1019, -inf
    %v2031 = vsel %vm1976, %v1024, -inf
    %v2032 = vsel %vm1976, %v1029, -inf
    %v2033 = vsel %vm1976, %v1034, -inf
    %v2034 = vsel %vm1976, %v1039, -inf
    %v2035 = vsel %vm1976, %v1044, -inf
    %v2036 = vsel %vm1976, %v1049, -inf
    %v2037 = vsel %vm1976, %v1054, -inf
    %v2038 = vsel %vm1976, %v1059, -inf
    %v2039 = vsel %vm1976, %v1064, -inf
    %v2040 = vsel %vm1976, %v1069, -inf
    %v2041 = vsel %vm1976, %v1219, -inf
    %v2042 = vsel %vm1976, %v1224, -inf
    %v2043 = vsel %vm1976, %v1229, -inf
    %v2044 = vsel %vm1976, %v1234, -inf
    %v2045 = vsel %vm1976, %v1239, -inf
    %v2046 = vsel %vm1976, %v1244, -inf
    %v2047 = vsel %vm1976, %v1249, -inf
    %v2048 = vsel %vm1976, %v1254, -inf
    %v2049 = vsel %vm1976, %v1259, -inf
    %v2050 = vsel %vm1976, %v1264, -inf
    %v2051 = vsel %vm1976, %v1269, -inf
    %v2052 = vsel %vm1976, %v1274, -inf
    %v2053 = vsel %vm1976, %v1279, -inf
    %v2054 = vsel %vm1976, %v1284, -inf
    %v2055 = vsel %vm1976, %v1289, -inf
    %v2056 = vsel %vm1976, %v1294, -inf
    %v2057 = vsel %vm1976, %v1444, -inf
    %v2058 = vsel %vm1976, %v1449, -inf
    %v2059 = vsel %vm1976, %v1454, -inf
    %v2060 = vsel %vm1976, %v1459, -inf
    %v2061 = vsel %vm1976, %v1464, -inf
    %v2062 = vsel %vm1976, %v1469, -inf
    %v2063 = vsel %vm1976, %v1474, -inf
    %v2064 = vsel %vm1976, %v1479, -inf
    %v2065 = vsel %vm1976, %v1484, -inf
    %v2066 = vsel %vm1976, %v1489, -inf
    %v2067 = vsel %vm1976, %v1494, -inf
    %v2068 = vsel %vm1976, %v1499, -inf
    %v2069 = vsel %vm1976, %v1504, -inf
    %v2070 = vsel %vm1976, %v1509, -inf
    %v2071 = vsel %vm1976, %v1514, -inf
    %v2072 = vsel %vm1976, %v1519, -inf
    %v2073 = vsel %vm1976, %v1669, -inf
    %v2074 = vsel %vm1976, %v1674, -inf
    %v2075 = vsel %vm1976, %v1679, -inf
    %v2076 = vsel %vm1976, %v1684, -inf
    %v2077 = vsel %vm1976, %v1689, -inf
    %v2078 = vsel %vm1976, %v1694, -inf
    %v2079 = vsel %vm1976, %v1699, -inf
    %v2080 = vsel %vm1976, %v1704, -inf
    %v2081 = vsel %vm1976, %v1709, -inf
    %v2082 = vsel %vm1976, %v1714, -inf
    %v2083 = vsel %vm1976, %v1719, -inf
    %v2084 = vsel %vm1976, %v1724, -inf
    %v2085 = vsel %vm1976, %v1729, -inf
    %v2086 = vsel %vm1976, %v1734, -inf
    %v2087 = vsel %vm1976, %v1739, -inf
    %v2088 = vsel %vm1976, %v1744, -inf
    %v2089 = vsel %vm1976, %v1894, -inf
    %v2090 = vsel %vm1976, %v1899, -inf
    %v2091 = vsel %vm1976, %v1904, -inf
    %v2092 = vsel %vm1976, %v1909, -inf
    %v2093 = vsel %vm1976, %v1914, -inf
    %v2094 = vsel %vm1976, %v1919, -inf
    %v2095 = vsel %vm1976, %v1924, -inf
    %v2096 = vsel %vm1976, %v1929, -inf
    %v2097 = vsel %vm1976, %v1934, -inf
    %v2098 = vsel %vm1976, %v1939, -inf
    %v2099 = vsel %vm1976, %v1944, -inf
    %v2100 = vsel %vm1976, %v1949, -inf
    %v2101 = vsel %vm1976, %v1954, -inf
    %v2102 = vsel %vm1976, %v1959, -inf
    %v2103 = vsel %vm1976, %v1964, -inf
    %v2104 = vsel %vm1976, %v1969, -inf
    %2105 = vmax.xlane.f32.xlu0 %v1977
    %v2106 = vpop.xlane.xlu0 %2105
    %2107 = vmax.xlane.f32.xlu0 %v1978
    %v2108 = vpop.xlane.xlu0 %2107
    %2109 = vmax.xlane.f32.xlu0 %v1979
    %v2110 = vpop.xlane.xlu0 %2109
    %2111 = vmax.xlane.f32.xlu0 %v1980
    %v2112 = vpop.xlane.xlu0 %2111
    %2113 = vmax.xlane.f32.xlu0 %v1981
    %v2114 = vpop.xlane.xlu0 %2113
    %2115 = vmax.xlane.f32.xlu0 %v1982
    %v2116 = vpop.xlane.xlu0 %2115
    %2117 = vmax.xlane.f32.xlu0 %v1983
    %v2118 = vpop.xlane.xlu0 %2117
    %2119 = vmax.xlane.f32.xlu0 %v1984
    %v2120 = vpop.xlane.xlu0 %2119
    %2121 = vmax.xlane.f32.xlu0 %v1985
    %v2122 = vpop.xlane.xlu0 %2121
    %2123 = vmax.xlane.f32.xlu0 %v1986
    %v2124 = vpop.xlane.xlu0 %2123
    %2125 = vmax.xlane.f32.xlu0 %v1987
    %v2126 = vpop.xlane.xlu0 %2125
    %2127 = vmax.xlane.f32.xlu0 %v1988
    %v2128 = vpop.xlane.xlu0 %2127
    %2129 = vmax.xlane.f32.xlu0 %v1989
    %v2130 = vpop.xlane.xlu0 %2129
    %2131 = vmax.xlane.f32.xlu0 %v1990
    %v2132 = vpop.xlane.xlu0 %2131
    %2133 = vmax.xlane.f32.xlu0 %v1991
    %v2134 = vpop.xlane.xlu0 %2133
    %2135 = vmax.xlane.f32.xlu0 %v1992
    %v2136 = vpop.xlane.xlu0 %2135
    %2137 = vmax.xlane.f32.xlu0 %v1993
    %v2138 = vpop.xlane.xlu0 %2137
    %2139 = vmax.xlane.f32.xlu0 %v1994
    %v2140 = vpop.xlane.xlu0 %2139
    %2141 = vmax.xlane.f32.xlu0 %v1995
    %v2142 = vpop.xlane.xlu0 %2141
    %2143 = vmax.xlane.f32.xlu0 %v1996
    %v2144 = vpop.xlane.xlu0 %2143
    %2145 = vmax.xlane.f32.xlu0 %v1997
    %v2146 = vpop.xlane.xlu0 %2145
    %2147 = vmax.xlane.f32.xlu0 %v1998
    %v2148 = vpop.xlane.xlu0 %2147
    %2149 = vmax.xlane.f32.xlu0 %v1999
    %v2150 = vpop.xlane.xlu0 %2149
    %2151 = vmax.xlane.f32.xlu0 %v2000
    %v2152 = vpop.xlane.xlu0 %2151
    %2153 = vmax.xlane.f32.xlu0 %v2001
    %v2154 = vpop.xlane.xlu0 %2153
    %2155 = vmax.xlane.f32.xlu0 %v2002
    %v2156 = vpop.xlane.xlu0 %2155
    %2157 = vmax.xlane.f32.xlu0 %v2003
    %v2158 = vpop.xlane.xlu0 %2157
    %2159 = vmax.xlane.f32.xlu0 %v2004
    %v2160 = vpop.xlane.xlu0 %2159
    %2161 = vmax.xlane.f32.xlu0 %v2005
    %v2162 = vpop.xlane.xlu0 %2161
    %2163 = vmax.xlane.f32.xlu0 %v2006
    %v2164 = vpop.xlane.xlu0 %2163
    %2165 = vmax.xlane.f32.xlu0 %v2007
    %v2166 = vpop.xlane.xlu0 %2165
    %2167 = vmax.xlane.f32.xlu0 %v2008
    %v2168 = vpop.xlane.xlu0 %2167
    %2169 = vmax.xlane.f32.xlu0 %v2009
    %v2170 = vpop.xlane.xlu0 %2169
    %2171 = vmax.xlane.f32.xlu0 %v2010
    %v2172 = vpop.xlane.xlu0 %2171
    %2173 = vmax.xlane.f32.xlu0 %v2011
    %v2174 = vpop.xlane.xlu0 %2173
    %2175 = vmax.xlane.f32.xlu0 %v2012
    %v2176 = vpop.xlane.xlu0 %2175
    %2177 = vmax.xlane.f32.xlu0 %v2013
    %v2178 = vpop.xlane.xlu0 %2177
    %2179 = vmax.xlane.f32.xlu0 %v2014
    %v2180 = vpop.xlane.xlu0 %2179
    %2181 = vmax.xlane.f32.xlu0 %v2015
    %v2182 = vpop.xlane.xlu0 %2181
    %2183 = vmax.xlane.f32.xlu0 %v2016
    %v2184 = vpop.xlane.xlu0 %2183
    %2185 = vmax.xlane.f32.xlu0 %v2017
    %v2186 = vpop.xlane.xlu0 %2185
    %2187 = vmax.xlane.f32.xlu0 %v2018
    %v2188 = vpop.xlane.xlu0 %2187
    %2189 = vmax.xlane.f32.xlu0 %v2019
    %v2190 = vpop.xlane.xlu0 %2189
    %2191 = vmax.xlane.f32.xlu0 %v2020
    %v2192 = vpop.xlane.xlu0 %2191
    %2193 = vmax.xlane.f32.xlu0 %v2021
    %v2194 = vpop.xlane.xlu0 %2193
    %2195 = vmax.xlane.f32.xlu0 %v2022
    %v2196 = vpop.xlane.xlu0 %2195
    %2197 = vmax.xlane.f32.xlu0 %v2023
    %v2198 = vpop.xlane.xlu0 %2197
    %2199 = vmax.xlane.f32.xlu0 %v2024
    %v2200 = vpop.xlane.xlu0 %2199
    %2201 = vmax.xlane.f32.xlu0 %v2025
    %v2202 = vpop.xlane.xlu0 %2201
    %2203 = vmax.xlane.f32.xlu0 %v2026
    %v2204 = vpop.xlane.xlu0 %2203
    %2205 = vmax.xlane.f32.xlu0 %v2027
    %v2206 = vpop.xlane.xlu0 %2205
    %2207 = vmax.xlane.f32.xlu0 %v2028
    %v2208 = vpop.xlane.xlu0 %2207
    %2209 = vmax.xlane.f32.xlu0 %v2029
    %v2210 = vpop.xlane.xlu0 %2209
    %2211 = vmax.xlane.f32.xlu0 %v2030
    %v2212 = vpop.xlane.xlu0 %2211
    %2213 = vmax.xlane.f32.xlu0 %v2031
    %v2214 = vpop.xlane.xlu0 %2213
    %2215 = vmax.xlane.f32.xlu0 %v2032
    %v2216 = vpop.xlane.xlu0 %2215
    %2217 = vmax.xlane.f32.xlu0 %v2033
    %v2218 = vpop.xlane.xlu0 %2217
    %2219 = vmax.xlane.f32.xlu0 %v2034
    %v2220 = vpop.xlane.xlu0 %2219
    %2221 = vmax.xlane.f32.xlu0 %v2035
    %v2222 = vpop.xlane.xlu0 %2221
    %2223 = vmax.xlane.f32.xlu0 %v2036
    %v2224 = vpop.xlane.xlu0 %2223
    %2225 = vmax.xlane.f32.xlu0 %v2037
    %v2226 = vpop.xlane.xlu0 %2225
    %2227 = vmax.xlane.f32.xlu0 %v2038
    %v2228 = vpop.xlane.xlu0 %2227
    %2229 = vmax.xlane.f32.xlu0 %v2039
    %v2230 = vpop.xlane.xlu0 %2229
    %2231 = vmax.xlane.f32.xlu0 %v2040
    %v2232 = vpop.xlane.xlu0 %2231
    %2233 = vmax.xlane.f32.xlu0 %v2041
    %v2234 = vpop.xlane.xlu0 %2233
    %2235 = vmax.xlane.f32.xlu0 %v2042
    %v2236 = vpop.xlane.xlu0 %2235
    %2237 = vmax.xlane.f32.xlu0 %v2043
    %v2238 = vpop.xlane.xlu0 %2237
    %2239 = vmax.xlane.f32.xlu0 %v2044
    %v2240 = vpop.xlane.xlu0 %2239
    %2241 = vmax.xlane.f32.xlu0 %v2045
    %v2242 = vpop.xlane.xlu0 %2241
    %2243 = vmax.xlane.f32.xlu0 %v2046
    %v2244 = vpop.xlane.xlu0 %2243
    %2245 = vmax.xlane.f32.xlu0 %v2047
    %v2246 = vpop.xlane.xlu0 %2245
    %2247 = vmax.xlane.f32.xlu0 %v2048
    %v2248 = vpop.xlane.xlu0 %2247
    %2249 = vmax.xlane.f32.xlu0 %v2049
    %v2250 = vpop.xlane.xlu0 %2249
    %2251 = vmax.xlane.f32.xlu0 %v2050
    %v2252 = vpop.xlane.xlu0 %2251
    %2253 = vmax.xlane.f32.xlu0 %v2051
    %v2254 = vpop.xlane.xlu0 %2253
    %2255 = vmax.xlane.f32.xlu0 %v2052
    %v2256 = vpop.xlane.xlu0 %2255
    %2257 = vmax.xlane.f32.xlu0 %v2053
    %v2258 = vpop.xlane.xlu0 %2257
    %2259 = vmax.xlane.f32.xlu0 %v2054
    %v2260 = vpop.xlane.xlu0 %2259
    %2261 = vmax.xlane.f32.xlu0 %v2055
    %v2262 = vpop.xlane.xlu0 %2261
    %2263 = vmax.xlane.f32.xlu0 %v2056
    %v2264 = vpop.xlane.xlu0 %2263
    %2265 = vmax.xlane.f32.xlu0 %v2057
    %v2266 = vpop.xlane.xlu0 %2265
    %2267 = vmax.xlane.f32.xlu0 %v2058
    %v2268 = vpop.xlane.xlu0 %2267
    %2269 = vmax.xlane.f32.xlu0 %v2059
    %v2270 = vpop.xlane.xlu0 %2269
    %2271 = vmax.xlane.f32.xlu0 %v2060
    %v2272 = vpop.xlane.xlu0 %2271
    %2273 = vmax.xlane.f32.xlu0 %v2061
    %v2274 = vpop.xlane.xlu0 %2273
    %2275 = vmax.xlane.f32.xlu0 %v2062
    %v2276 = vpop.xlane.xlu0 %2275
    %2277 = vmax.xlane.f32.xlu0 %v2063
    %v2278 = vpop.xlane.xlu0 %2277
    %2279 = vmax.xlane.f32.xlu0 %v2064
    %v2280 = vpop.xlane.xlu0 %2279
    %2281 = vmax.xlane.f32.xlu0 %v2065
    %v2282 = vpop.xlane.xlu0 %2281
    %2283 = vmax.xlane.f32.xlu0 %v2066
    %v2284 = vpop.xlane.xlu0 %2283
    %2285 = vmax.xlane.f32.xlu0 %v2067
    %v2286 = vpop.xlane.xlu0 %2285
    %2287 = vmax.xlane.f32.xlu0 %v2068
    %v2288 = vpop.xlane.xlu0 %2287
    %2289 = vmax.xlane.f32.xlu0 %v2069
    %v2290 = vpop.xlane.xlu0 %2289
    %2291 = vmax.xlane.f32.xlu0 %v2070
    %v2292 = vpop.xlane.xlu0 %2291
    %2293 = vmax.xlane.f32.xlu0 %v2071
    %v2294 = vpop.xlane.xlu0 %2293
    %2295 = vmax.xlane.f32.xlu0 %v2072
    %v2296 = vpop.xlane.xlu0 %2295
    %2297 = vmax.xlane.f32.xlu0 %v2073
    %v2298 = vpop.xlane.xlu0 %2297
    %2299 = vmax.xlane.f32.xlu0 %v2074
    %v2300 = vpop.xlane.xlu0 %2299
    %2301 = vmax.xlane.f32.xlu0 %v2075
    %v2302 = vpop.xlane.xlu0 %2301
    %2303 = vmax.xlane.f32.xlu0 %v2076
    %v2304 = vpop.xlane.xlu0 %2303
    %2305 = vmax.xlane.f32.xlu0 %v2077
    %v2306 = vpop.xlane.xlu0 %2305
    %2307 = vmax.xlane.f32.xlu0 %v2078
    %v2308 = vpop.xlane.xlu0 %2307
    %2309 = vmax.xlane.f32.xlu0 %v2079
    %v2310 = vpop.xlane.xlu0 %2309
    %2311 = vmax.xlane.f32.xlu0 %v2080
    %v2312 = vpop.xlane.xlu0 %2311
    %2313 = vmax.xlane.f32.xlu0 %v2081
    %v2314 = vpop.xlane.xlu0 %2313
    %2315 = vmax.xlane.f32.xlu0 %v2082
    %v2316 = vpop.xlane.xlu0 %2315
    %2317 = vmax.xlane.f32.xlu0 %v2083
    %v2318 = vpop.xlane.xlu0 %2317
    %2319 = vmax.xlane.f32.xlu0 %v2084
    %v2320 = vpop.xlane.xlu0 %2319
    %2321 = vmax.xlane.f32.xlu0 %v2085
    %v2322 = vpop.xlane.xlu0 %2321
    %2323 = vmax.xlane.f32.xlu0 %v2086
    %v2324 = vpop.xlane.xlu0 %2323
    %2325 = vmax.xlane.f32.xlu0 %v2087
    %v2326 = vpop.xlane.xlu0 %2325
    %2327 = vmax.xlane.f32.xlu0 %v2088
    %v2328 = vpop.xlane.xlu0 %2327
    %2329 = vmax.xlane.f32.xlu0 %v2089
    %v2330 = vpop.xlane.xlu0 %2329
    %2331 = vmax.xlane.f32.xlu0 %v2090
    %v2332 = vpop.xlane.xlu0 %2331
    %2333 = vmax.xlane.f32.xlu0 %v2091
    %v2334 = vpop.xlane.xlu0 %2333
    %2335 = vmax.xlane.f32.xlu0 %v2092
    %v2336 = vpop.xlane.xlu0 %2335
    %2337 = vmax.xlane.f32.xlu0 %v2093
    %v2338 = vpop.xlane.xlu0 %2337
    %2339 = vmax.xlane.f32.xlu0 %v2094
    %v2340 = vpop.xlane.xlu0 %2339
    %2341 = vmax.xlane.f32.xlu0 %v2095
    %v2342 = vpop.xlane.xlu0 %2341
    %2343 = vmax.xlane.f32.xlu0 %v2096
    %v2344 = vpop.xlane.xlu0 %2343
    %2345 = vmax.xlane.f32.xlu0 %v2097
    %v2346 = vpop.xlane.xlu0 %2345
    %2347 = vmax.xlane.f32.xlu0 %v2098
    %v2348 = vpop.xlane.xlu0 %2347
    %2349 = vmax.xlane.f32.xlu0 %v2099
    %v2350 = vpop.xlane.xlu0 %2349
    %2351 = vmax.xlane.f32.xlu0 %v2100
    %v2352 = vpop.xlane.xlu0 %2351
    %2353 = vmax.xlane.f32.xlu0 %v2101
    %v2354 = vpop.xlane.xlu0 %2353
    %2355 = vmax.xlane.f32.xlu0 %v2102
    %v2356 = vpop.xlane.xlu0 %2355
    %2357 = vmax.xlane.f32.xlu0 %v2103
    %v2358 = vpop.xlane.xlu0 %2357
    %2359 = vmax.xlane.f32.xlu0 %v2104
    %v2360 = vpop.xlane.xlu0 %2359
    %v2361 = vsub.f32 %v1977, %v2106
    %v2362 = vsub.f32 %v1978, %v2108
    %v2363 = vsub.f32 %v1979, %v2110
    %v2364 = vsub.f32 %v1980, %v2112
    %v2365 = vsub.f32 %v1981, %v2114
    %v2366 = vsub.f32 %v1982, %v2116
    %v2367 = vsub.f32 %v1983, %v2118
    %v2368 = vsub.f32 %v1984, %v2120
    %v2369 = vsub.f32 %v1985, %v2122
    %v2370 = vsub.f32 %v1986, %v2124
    %v2371 = vsub.f32 %v1987, %v2126
    %v2372 = vsub.f32 %v1988, %v2128
    %v2373 = vsub.f32 %v1989, %v2130
    %v2374 = vsub.f32 %v1990, %v2132
    %v2375 = vsub.f32 %v1991, %v2134
    %v2376 = vsub.f32 %v1992, %v2136
    %v2377 = vsub.f32 %v1993, %v2138
    %v2378 = vsub.f32 %v1994, %v2140
    %v2379 = vsub.f32 %v1995, %v2142
    %v2380 = vsub.f32 %v1996, %v2144
    %v2381 = vsub.f32 %v1997, %v2146
    %v2382 = vsub.f32 %v1998, %v2148
    %v2383 = vsub.f32 %v1999, %v2150
    %v2384 = vsub.f32 %v2000, %v2152
    %v2385 = vsub.f32 %v2001, %v2154
    %v2386 = vsub.f32 %v2002, %v2156
    %v2387 = vsub.f32 %v2003, %v2158
    %v2388 = vsub.f32 %v2004, %v2160
    %v2389 = vsub.f32 %v2005, %v2162
    %v2390 = vsub.f32 %v2006, %v2164
    %v2391 = vsub.f32 %v2007, %v2166
    %v2392 = vsub.f32 %v2008, %v2168
    %v2393 = vsub.f32 %v2009, %v2170
    %v2394 = vsub.f32 %v2010, %v2172
    %v2395 = vsub.f32 %v2011, %v2174
    %v2396 = vsub.f32 %v2012, %v2176
    %v2397 = vsub.f32 %v2013, %v2178
    %v2398 = vsub.f32 %v2014, %v2180
    %v2399 = vsub.f32 %v2015, %v2182
    %v2400 = vsub.f32 %v2016, %v2184
    %v2401 = vsub.f32 %v2017, %v2186
    %v2402 = vsub.f32 %v2018, %v2188
    %v2403 = vsub.f32 %v2019, %v2190
    %v2404 = vsub.f32 %v2020, %v2192
    %v2405 = vsub.f32 %v2021, %v2194
    %v2406 = vsub.f32 %v2022, %v2196
    %v2407 = vsub.f32 %v2023, %v2198
    %v2408 = vsub.f32 %v2024, %v2200
    %v2409 = vsub.f32 %v2025, %v2202
    %v2410 = vsub.f32 %v2026, %v2204
    %v2411 = vsub.f32 %v2027, %v2206
    %v2412 = vsub.f32 %v2028, %v2208
    %v2413 = vsub.f32 %v2029, %v2210
    %v2414 = vsub.f32 %v2030, %v2212
    %v2415 = vsub.f32 %v2031, %v2214
    %v2416 = vsub.f32 %v2032, %v2216
    %v2417 = vsub.f32 %v2033, %v2218
    %v2418 = vsub.f32 %v2034, %v2220
    %v2419 = vsub.f32 %v2035, %v2222
    %v2420 = vsub.f32 %v2036, %v2224
    %v2421 = vsub.f32 %v2037, %v2226
    %v2422 = vsub.f32 %v2038, %v2228
    %v2423 = vsub.f32 %v2039, %v2230
    %v2424 = vsub.f32 %v2040, %v2232
    %v2425 = vsub.f32 %v2041, %v2234
    %v2426 = vsub.f32 %v2042, %v2236
    %v2427 = vsub.f32 %v2043, %v2238
    %v2428 = vsub.f32 %v2044, %v2240
    %v2429 = vsub.f32 %v2045, %v2242
    %v2430 = vsub.f32 %v2046, %v2244
    %v2431 = vsub.f32 %v2047, %v2246
    %v2432 = vsub.f32 %v2048, %v2248
    %v2433 = vsub.f32 %v2049, %v2250
    %v2434 = vsub.f32 %v2050, %v2252
    %v2435 = vsub.f32 %v2051, %v2254
    %v2436 = vsub.f32 %v2052, %v2256
    %v2437 = vsub.f32 %v2053, %v2258
    %v2438 = vsub.f32 %v2054, %v2260
    %v2439 = vsub.f32 %v2055, %v2262
    %v2440 = vsub.f32 %v2056, %v2264
    %v2441 = vsub.f32 %v2057, %v2266
    %v2442 = vsub.f32 %v2058, %v2268
    %v2443 = vsub.f32 %v2059, %v2270
    %v2444 = vsub.f32 %v2060, %v2272
    %v2445 = vsub.f32 %v2061, %v2274
    %v2446 = vsub.f32 %v2062, %v2276
    %v2447 = vsub.f32 %v2063, %v2278
    %v2448 = vsub.f32 %v2064, %v2280
    %v2449 = vsub.f32 %v2065, %v2282
    %v2450 = vsub.f32 %v2066, %v2284
    %v2451 = vsub.f32 %v2067, %v2286
    %v2452 = vsub.f32 %v2068, %v2288
    %v2453 = vsub.f32 %v2069, %v2290
    %v2454 = vsub.f32 %v2070, %v2292
    %v2455 = vsub.f32 %v2071, %v2294
    %v2456 = vsub.f32 %v2072, %v2296
    %v2457 = vsub.f32 %v2073, %v2298
    %v2458 = vsub.f32 %v2074, %v2300
    %v2459 = vsub.f32 %v2075, %v2302
    %v2460 = vsub.f32 %v2076, %v2304
    %v2461 = vsub.f32 %v2077, %v2306
    %v2462 = vsub.f32 %v2078, %v2308
    %v2463 = vsub.f32 %v2079, %v2310
    %v2464 = vsub.f32 %v2080, %v2312
    %v2465 = vsub.f32 %v2081, %v2314
    %v2466 = vsub.f32 %v2082, %v2316
    %v2467 = vsub.f32 %v2083, %v2318
    %v2468 = vsub.f32 %v2084, %v2320
    %v2469 = vsub.f32 %v2085, %v2322
    %v2470 = vsub.f32 %v2086, %v2324
    %v2471 = vsub.f32 %v2087, %v2326
    %v2472 = vsub.f32 %v2088, %v2328
    %v2473 = vsub.f32 %v2089, %v2330
    %v2474 = vsub.f32 %v2090, %v2332
    %v2475 = vsub.f32 %v2091, %v2334
    %v2476 = vsub.f32 %v2092, %v2336
    %v2477 = vsub.f32 %v2093, %v2338
    %v2478 = vsub.f32 %v2094, %v2340
    %v2479 = vsub.f32 %v2095, %v2342
    %v2480 = vsub.f32 %v2096, %v2344
    %v2481 = vsub.f32 %v2097, %v2346
    %v2482 = vsub.f32 %v2098, %v2348
    %v2483 = vsub.f32 %v2099, %v2350
    %v2484 = vsub.f32 %v2100, %v2352
    %v2485 = vsub.f32 %v2101, %v2354
    %v2486 = vsub.f32 %v2102, %v2356
    %v2487 = vsub.f32 %v2103, %v2358
    %v2488 = vsub.f32 %v2104, %v2360
    %v2489 = vmul.f32 %v2361, 1.442695
    %v2490 = vpow.pop %v2489
    %v2491 = vmul.f32 %v2362, 1.442695
    %v2492 = vpow.pop %v2491
    %v2493 = vmul.f32 %v2363, 1.442695
    %v2494 = vpow.pop %v2493
    %v2495 = vmul.f32 %v2364, 1.442695
    %v2496 = vpow.pop %v2495
    %v2497 = vmul.f32 %v2365, 1.442695
    %v2498 = vpow.pop %v2497
    %v2499 = vmul.f32 %v2366, 1.442695
    %v2500 = vpow.pop %v2499
    %v2501 = vmul.f32 %v2367, 1.442695
    %v2502 = vpow.pop %v2501
    %v2503 = vmul.f32 %v2368, 1.442695
    %v2504 = vpow.pop %v2503
    %v2505 = vmul.f32 %v2369, 1.442695
    %v2506 = vpow.pop %v2505
    %v2507 = vmul.f32 %v2370, 1.442695
    %v2508 = vpow.pop %v2507
    %v2509 = vmul.f32 %v2371, 1.442695
    %v2510 = vpow.pop %v2509
    %v2511 = vmul.f32 %v2372, 1.442695
    %v2512 = vpow.pop %v2511
    %v2513 = vmul.f32 %v2373, 1.442695
    %v2514 = vpow.pop %v2513
    %v2515 = vmul.f32 %v2374, 1.442695
    %v2516 = vpow.pop %v2515
    %v2517 = vmul.f32 %v2375, 1.442695
    %v2518 = vpow.pop %v2517
    %v2519 = vmul.f32 %v2376, 1.442695
    %v2520 = vpow.pop %v2519
    %v2521 = vmul.f32 %v2377, 1.442695
    %v2522 = vpow.pop %v2521
    %v2523 = vmul.f32 %v2378, 1.442695
    %v2524 = vpow.pop %v2523
    %v2525 = vmul.f32 %v2379, 1.442695
    %v2526 = vpow.pop %v2525
    %v2527 = vmul.f32 %v2380, 1.442695
    %v2528 = vpow.pop %v2527
    %v2529 = vmul.f32 %v2381, 1.442695
    %v2530 = vpow.pop %v2529
    %v2531 = vmul.f32 %v2382, 1.442695
    %v2532 = vpow.pop %v2531
    %v2533 = vmul.f32 %v2383, 1.442695
    %v2534 = vpow.pop %v2533
    %v2535 = vmul.f32 %v2384, 1.442695
    %v2536 = vpow.pop %v2535
    %v2537 = vmul.f32 %v2385, 1.442695
    %v2538 = vpow.pop %v2537
    %v2539 = vmul.f32 %v2386, 1.442695
    %v2540 = vpow.pop %v2539
    %v2541 = vmul.f32 %v2387, 1.442695
    %v2542 = vpow.pop %v2541
    %v2543 = vmul.f32 %v2388, 1.442695
    %v2544 = vpow.pop %v2543
    %v2545 = vmul.f32 %v2389, 1.442695
    %v2546 = vpow.pop %v2545
    %v2547 = vmul.f32 %v2390, 1.442695
    %v2548 = vpow.pop %v2547
    %v2549 = vmul.f32 %v2391, 1.442695
    %v2550 = vpow.pop %v2549
    %v2551 = vmul.f32 %v2392, 1.442695
    %v2552 = vpow.pop %v2551
    %v2553 = vmul.f32 %v2393, 1.442695
    %v2554 = vpow.pop %v2553
    %v2555 = vmul.f32 %v2394, 1.442695
    %v2556 = vpow.pop %v2555
    %v2557 = vmul.f32 %v2395, 1.442695
    %v2558 = vpow.pop %v2557
    %v2559 = vmul.f32 %v2396, 1.442695
    %v2560 = vpow.pop %v2559
    %v2561 = vmul.f32 %v2397, 1.442695
    %v2562 = vpow.pop %v2561
    %v2563 = vmul.f32 %v2398, 1.442695
    %v2564 = vpow.pop %v2563
    %v2565 = vmul.f32 %v2399, 1.442695
    %v2566 = vpow.pop %v2565
    %v2567 = vmul.f32 %v2400, 1.442695
    %v2568 = vpow.pop %v2567
    %v2569 = vmul.f32 %v2401, 1.442695
    %v2570 = vpow.pop %v2569
    %v2571 = vmul.f32 %v2402, 1.442695
    %v2572 = vpow.pop %v2571
    %v2573 = vmul.f32 %v2403, 1.442695
    %v2574 = vpow.pop %v2573
    %v2575 = vmul.f32 %v2404, 1.442695
    %v2576 = vpow.pop %v2575
    %v2577 = vmul.f32 %v2405, 1.442695
    %v2578 = vpow.pop %v2577
    %v2579 = vmul.f32 %v2406, 1.442695
    %v2580 = vpow.pop %v2579
    %v2581 = vmul.f32 %v2407, 1.442695
    %v2582 = vpow.pop %v2581
    %v2583 = vmul.f32 %v2408, 1.442695
    %v2584 = vpow.pop %v2583
    %v2585 = vmul.f32 %v2409, 1.442695
    %v2586 = vpow.pop %v2585
    %v2587 = vmul.f32 %v2410, 1.442695
    %v2588 = vpow.pop %v2587
    %v2589 = vmul.f32 %v2411, 1.442695
    %v2590 = vpow.pop %v2589
    %v2591 = vmul.f32 %v2412, 1.442695
    %v2592 = vpow.pop %v2591
    %v2593 = vmul.f32 %v2413, 1.442695
    %v2594 = vpow.pop %v2593
    %v2595 = vmul.f32 %v2414, 1.442695
    %v2596 = vpow.pop %v2595
    %v2597 = vmul.f32 %v2415, 1.442695
    %v2598 = vpow.pop %v2597
    %v2599 = vmul.f32 %v2416, 1.442695
    %v2600 = vpow.pop %v2599
    %v2601 = vmul.f32 %v2417, 1.442695
    %v2602 = vpow.pop %v2601
    %v2603 = vmul.f32 %v2418, 1.442695
    %v2604 = vpow.pop %v2603
    %v2605 = vmul.f32 %v2419, 1.442695
    %v2606 = vpow.pop %v2605
    %v2607 = vmul.f32 %v2420, 1.442695
    %v2608 = vpow.pop %v2607
    %v2609 = vmul.f32 %v2421, 1.442695
    %v2610 = vpow.pop %v2609
    %v2611 = vmul.f32 %v2422, 1.442695
    %v2612 = vpow.pop %v2611
    %v2613 = vmul.f32 %v2423, 1.442695
    %v2614 = vpow.pop %v2613
    %v2615 = vmul.f32 %v2424, 1.442695
    %v2616 = vpow.pop %v2615
    %v2617 = vmul.f32 %v2425, 1.442695
    %v2618 = vpow.pop %v2617
    %v2619 = vmul.f32 %v2426, 1.442695
    %v2620 = vpow.pop %v2619
    %v2621 = vmul.f32 %v2427, 1.442695
    %v2622 = vpow.pop %v2621
    %v2623 = vmul.f32 %v2428, 1.442695
    %v2624 = vpow.pop %v2623
    %v2625 = vmul.f32 %v2429, 1.442695
    %v2626 = vpow.pop %v2625
    %v2627 = vmul.f32 %v2430, 1.442695
    %v2628 = vpow.pop %v2627
    %v2629 = vmul.f32 %v2431, 1.442695
    %v2630 = vpow.pop %v2629
    %v2631 = vmul.f32 %v2432, 1.442695
    %v2632 = vpow.pop %v2631
    %v2633 = vmul.f32 %v2433, 1.442695
    %v2634 = vpow.pop %v2633
    %v2635 = vmul.f32 %v2434, 1.442695
    %v2636 = vpow.pop %v2635
    %v2637 = vmul.f32 %v2435, 1.442695
    %v2638 = vpow.pop %v2637
    %v2639 = vmul.f32 %v2436, 1.442695
    %v2640 = vpow.pop %v2639
    %v2641 = vmul.f32 %v2437, 1.442695
    %v2642 = vpow.pop %v2641
    %v2643 = vmul.f32 %v2438, 1.442695
    %v2644 = vpow.pop %v2643
    %v2645 = vmul.f32 %v2439, 1.442695
    %v2646 = vpow.pop %v2645
    %v2647 = vmul.f32 %v2440, 1.442695
    %v2648 = vpow.pop %v2647
    %v2649 = vmul.f32 %v2441, 1.442695
    %v2650 = vpow.pop %v2649
    %v2651 = vmul.f32 %v2442, 1.442695
    %v2652 = vpow.pop %v2651
    %v2653 = vmul.f32 %v2443, 1.442695
    %v2654 = vpow.pop %v2653
    %v2655 = vmul.f32 %v2444, 1.442695
    %v2656 = vpow.pop %v2655
    %v2657 = vmul.f32 %v2445, 1.442695
    %v2658 = vpow.pop %v2657
    %v2659 = vmul.f32 %v2446, 1.442695
    %v2660 = vpow.pop %v2659
    %v2661 = vmul.f32 %v2447, 1.442695
    %v2662 = vpow.pop %v2661
    %v2663 = vmul.f32 %v2448, 1.442695
    %v2664 = vpow.pop %v2663
    %v2665 = vmul.f32 %v2449, 1.442695
    %v2666 = vpow.pop %v2665
    %v2667 = vmul.f32 %v2450, 1.442695
    %v2668 = vpow.pop %v2667
    %v2669 = vmul.f32 %v2451, 1.442695
    %v2670 = vpow.pop %v2669
    %v2671 = vmul.f32 %v2452, 1.442695
    %v2672 = vpow.pop %v2671
    %v2673 = vmul.f32 %v2453, 1.442695
    %v2674 = vpow.pop %v2673
    %v2675 = vmul.f32 %v2454, 1.442695
    %v2676 = vpow.pop %v2675
    %v2677 = vmul.f32 %v2455, 1.442695
    %v2678 = vpow.pop %v2677
    %v2679 = vmul.f32 %v2456, 1.442695
    %v2680 = vpow.pop %v2679
    %v2681 = vmul.f32 %v2457, 1.442695
    %v2682 = vpow.pop %v2681
    %v2683 = vmul.f32 %v2458, 1.442695
    %v2684 = vpow.pop %v2683
    %v2685 = vmul.f32 %v2459, 1.442695
    %v2686 = vpow.pop %v2685
    %v2687 = vmul.f32 %v2460, 1.442695
    %v2688 = vpow.pop %v2687
    %v2689 = vmul.f32 %v2461, 1.442695
    %v2690 = vpow.pop %v2689
    %v2691 = vmul.f32 %v2462, 1.442695
    %v2692 = vpow.pop %v2691
    %v2693 = vmul.f32 %v2463, 1.442695
    %v2694 = vpow.pop %v2693
    %v2695 = vmul.f32 %v2464, 1.442695
    %v2696 = vpow.pop %v2695
    %v2697 = vmul.f32 %v2465, 1.442695
    %v2698 = vpow.pop %v2697
    %v2699 = vmul.f32 %v2466, 1.442695
    %v2700 = vpow.pop %v2699
    %v2701 = vmul.f32 %v2467, 1.442695
    %v2702 = vpow.pop %v2701
    %v2703 = vmul.f32 %v2468, 1.442695
    %v2704 = vpow.pop %v2703
    %v2705 = vmul.f32 %v2469, 1.442695
    %v2706 = vpow.pop %v2705
    %v2707 = vmul.f32 %v2470, 1.442695
    %v2708 = vpow.pop %v2707
    %v2709 = vmul.f32 %v2471, 1.442695
    %v2710 = vpow.pop %v2709
    %v2711 = vmul.f32 %v2472, 1.442695
    %v2712 = vpow.pop %v2711
    %v2713 = vmul.f32 %v2473, 1.442695
    %v2714 = vpow.pop %v2713
    %v2715 = vmul.f32 %v2474, 1.442695
    %v2716 = vpow.pop %v2715
    %v2717 = vmul.f32 %v2475, 1.442695
    %v2718 = vpow.pop %v2717
    %v2719 = vmul.f32 %v2476, 1.442695
    %v2720 = vpow.pop %v2719
    %v2721 = vmul.f32 %v2477, 1.442695
    %v2722 = vpow.pop %v2721
    %v2723 = vmul.f32 %v2478, 1.442695
    %v2724 = vpow.pop %v2723
    %v2725 = vmul.f32 %v2479, 1.442695
    %v2726 = vpow.pop %v2725
    %v2727 = vmul.f32 %v2480, 1.442695
    %v2728 = vpow.pop %v2727
    %v2729 = vmul.f32 %v2481, 1.442695
    %v2730 = vpow.pop %v2729
    %v2731 = vmul.f32 %v2482, 1.442695
    %v2732 = vpow.pop %v2731
    %v2733 = vmul.f32 %v2483, 1.442695
    %v2734 = vpow.pop %v2733
    %v2735 = vmul.f32 %v2484, 1.442695
    %v2736 = vpow.pop %v2735
    %v2737 = vmul.f32 %v2485, 1.442695
    %v2738 = vpow.pop %v2737
    %v2739 = vmul.f32 %v2486, 1.442695
    %v2740 = vpow.pop %v2739
    %v2741 = vmul.f32 %v2487, 1.442695
    %v2742 = vpow.pop %v2741
    %v2743 = vmul.f32 %v2488, 1.442695
    %v2744 = vpow.pop %v2743
    %2745 = vadd.xlane.f32.xlu0 %v2490
    %v2746 = vpop.xlane.xlu0 %2745
    %2747 = vadd.xlane.f32.xlu0 %v2492
    %v2748 = vpop.xlane.xlu0 %2747
    %2749 = vadd.xlane.f32.xlu0 %v2494
    %v2750 = vpop.xlane.xlu0 %2749
    %2751 = vadd.xlane.f32.xlu0 %v2496
    %v2752 = vpop.xlane.xlu0 %2751
    %2753 = vadd.xlane.f32.xlu0 %v2498
    %v2754 = vpop.xlane.xlu0 %2753
    %2755 = vadd.xlane.f32.xlu0 %v2500
    %v2756 = vpop.xlane.xlu0 %2755
    %2757 = vadd.xlane.f32.xlu0 %v2502
    %v2758 = vpop.xlane.xlu0 %2757
    %2759 = vadd.xlane.f32.xlu0 %v2504
    %v2760 = vpop.xlane.xlu0 %2759
    %2761 = vadd.xlane.f32.xlu0 %v2506
    %v2762 = vpop.xlane.xlu0 %2761
    %2763 = vadd.xlane.f32.xlu0 %v2508
    %v2764 = vpop.xlane.xlu0 %2763
    %2765 = vadd.xlane.f32.xlu0 %v2510
    %v2766 = vpop.xlane.xlu0 %2765
    %2767 = vadd.xlane.f32.xlu0 %v2512
    %v2768 = vpop.xlane.xlu0 %2767
    %2769 = vadd.xlane.f32.xlu0 %v2514
    %v2770 = vpop.xlane.xlu0 %2769
    %2771 = vadd.xlane.f32.xlu0 %v2516
    %v2772 = vpop.xlane.xlu0 %2771
    %2773 = vadd.xlane.f32.xlu0 %v2518
    %v2774 = vpop.xlane.xlu0 %2773
    %2775 = vadd.xlane.f32.xlu0 %v2520
    %v2776 = vpop.xlane.xlu0 %2775
    %2777 = vadd.xlane.f32.xlu0 %v2522
    %v2778 = vpop.xlane.xlu0 %2777
    %2779 = vadd.xlane.f32.xlu0 %v2524
    %v2780 = vpop.xlane.xlu0 %2779
    %2781 = vadd.xlane.f32.xlu0 %v2526
    %v2782 = vpop.xlane.xlu0 %2781
    %2783 = vadd.xlane.f32.xlu0 %v2528
    %v2784 = vpop.xlane.xlu0 %2783
    %2785 = vadd.xlane.f32.xlu0 %v2530
    %v2786 = vpop.xlane.xlu0 %2785
    %2787 = vadd.xlane.f32.xlu0 %v2532
    %v2788 = vpop.xlane.xlu0 %2787
    %2789 = vadd.xlane.f32.xlu0 %v2534
    %v2790 = vpop.xlane.xlu0 %2789
    %2791 = vadd.xlane.f32.xlu0 %v2536
    %v2792 = vpop.xlane.xlu0 %2791
    %2793 = vadd.xlane.f32.xlu0 %v2538
    %v2794 = vpop.xlane.xlu0 %2793
    %2795 = vadd.xlane.f32.xlu0 %v2540
    %v2796 = vpop.xlane.xlu0 %2795
    %2797 = vadd.xlane.f32.xlu0 %v2542
    %v2798 = vpop.xlane.xlu0 %2797
    %2799 = vadd.xlane.f32.xlu0 %v2544
    %v2800 = vpop.xlane.xlu0 %2799
    %2801 = vadd.xlane.f32.xlu0 %v2546
    %v2802 = vpop.xlane.xlu0 %2801
    %2803 = vadd.xlane.f32.xlu0 %v2548
    %v2804 = vpop.xlane.xlu0 %2803
    %2805 = vadd.xlane.f32.xlu0 %v2550
    %v2806 = vpop.xlane.xlu0 %2805
    %2807 = vadd.xlane.f32.xlu0 %v2552
    %v2808 = vpop.xlane.xlu0 %2807
    %2809 = vadd.xlane.f32.xlu0 %v2554
    %v2810 = vpop.xlane.xlu0 %2809
    %2811 = vadd.xlane.f32.xlu0 %v2556
    %v2812 = vpop.xlane.xlu0 %2811
    %2813 = vadd.xlane.f32.xlu0 %v2558
    %v2814 = vpop.xlane.xlu0 %2813
    %2815 = vadd.xlane.f32.xlu0 %v2560
    %v2816 = vpop.xlane.xlu0 %2815
    %2817 = vadd.xlane.f32.xlu0 %v2562
    %v2818 = vpop.xlane.xlu0 %2817
    %2819 = vadd.xlane.f32.xlu0 %v2564
    %v2820 = vpop.xlane.xlu0 %2819
    %2821 = vadd.xlane.f32.xlu0 %v2566
    %v2822 = vpop.xlane.xlu0 %2821
    %2823 = vadd.xlane.f32.xlu0 %v2568
    %v2824 = vpop.xlane.xlu0 %2823
    %2825 = vadd.xlane.f32.xlu0 %v2570
    %v2826 = vpop.xlane.xlu0 %2825
    %2827 = vadd.xlane.f32.xlu0 %v2572
    %v2828 = vpop.xlane.xlu0 %2827
    %2829 = vadd.xlane.f32.xlu0 %v2574
    %v2830 = vpop.xlane.xlu0 %2829
    %2831 = vadd.xlane.f32.xlu0 %v2576
    %v2832 = vpop.xlane.xlu0 %2831
    %2833 = vadd.xlane.f32.xlu0 %v2578
    %v2834 = vpop.xlane.xlu0 %2833
    %2835 = vadd.xlane.f32.xlu0 %v2580
    %v2836 = vpop.xlane.xlu0 %2835
    %2837 = vadd.xlane.f32.xlu0 %v2582
    %v2838 = vpop.xlane.xlu0 %2837
    %2839 = vadd.xlane.f32.xlu0 %v2584
    %v2840 = vpop.xlane.xlu0 %2839
    %2841 = vadd.xlane.f32.xlu0 %v2586
    %v2842 = vpop.xlane.xlu0 %2841
    %2843 = vadd.xlane.f32.xlu0 %v2588
    %v2844 = vpop.xlane.xlu0 %2843
    %2845 = vadd.xlane.f32.xlu0 %v2590
    %v2846 = vpop.xlane.xlu0 %2845
    %2847 = vadd.xlane.f32.xlu0 %v2592
    %v2848 = vpop.xlane.xlu0 %2847
    %2849 = vadd.xlane.f32.xlu0 %v2594
    %v2850 = vpop.xlane.xlu0 %2849
    %2851 = vadd.xlane.f32.xlu0 %v2596
    %v2852 = vpop.xlane.xlu0 %2851
    %2853 = vadd.xlane.f32.xlu0 %v2598
    %v2854 = vpop.xlane.xlu0 %2853
    %2855 = vadd.xlane.f32.xlu0 %v2600
    %v2856 = vpop.xlane.xlu0 %2855
    %2857 = vadd.xlane.f32.xlu0 %v2602
    %v2858 = vpop.xlane.xlu0 %2857
    %2859 = vadd.xlane.f32.xlu0 %v2604
    %v2860 = vpop.xlane.xlu0 %2859
    %2861 = vadd.xlane.f32.xlu0 %v2606
    %v2862 = vpop.xlane.xlu0 %2861
    %2863 = vadd.xlane.f32.xlu0 %v2608
    %v2864 = vpop.xlane.xlu0 %2863
    %2865 = vadd.xlane.f32.xlu0 %v2610
    %v2866 = vpop.xlane.xlu0 %2865
    %2867 = vadd.xlane.f32.xlu0 %v2612
    %v2868 = vpop.xlane.xlu0 %2867
    %2869 = vadd.xlane.f32.xlu0 %v2614
    %v2870 = vpop.xlane.xlu0 %2869
    %2871 = vadd.xlane.f32.xlu0 %v2616
    %v2872 = vpop.xlane.xlu0 %2871
    %2873 = vadd.xlane.f32.xlu0 %v2618
    %v2874 = vpop.xlane.xlu0 %2873
    %2875 = vadd.xlane.f32.xlu0 %v2620
    %v2876 = vpop.xlane.xlu0 %2875
    %2877 = vadd.xlane.f32.xlu0 %v2622
    %v2878 = vpop.xlane.xlu0 %2877
    %2879 = vadd.xlane.f32.xlu0 %v2624
    %v2880 = vpop.xlane.xlu0 %2879
    %2881 = vadd.xlane.f32.xlu0 %v2626
    %v2882 = vpop.xlane.xlu0 %2881
    %2883 = vadd.xlane.f32.xlu0 %v2628
    %v2884 = vpop.xlane.xlu0 %2883
    %2885 = vadd.xlane.f32.xlu0 %v2630
    %v2886 = vpop.xlane.xlu0 %2885
    %2887 = vadd.xlane.f32.xlu0 %v2632
    %v2888 = vpop.xlane.xlu0 %2887
    %2889 = vadd.xlane.f32.xlu0 %v2634
    %v2890 = vpop.xlane.xlu0 %2889
    %2891 = vadd.xlane.f32.xlu0 %v2636
    %v2892 = vpop.xlane.xlu0 %2891
    %2893 = vadd.xlane.f32.xlu0 %v2638
    %v2894 = vpop.xlane.xlu0 %2893
    %2895 = vadd.xlane.f32.xlu0 %v2640
    %v2896 = vpop.xlane.xlu0 %2895
    %2897 = vadd.xlane.f32.xlu0 %v2642
    %v2898 = vpop.xlane.xlu0 %2897
    %2899 = vadd.xlane.f32.xlu0 %v2644
    %v2900 = vpop.xlane.xlu0 %2899
    %2901 = vadd.xlane.f32.xlu0 %v2646
    %v2902 = vpop.xlane.xlu0 %2901
    %2903 = vadd.xlane.f32.xlu0 %v2648
    %v2904 = vpop.xlane.xlu0 %2903
    %2905 = vadd.xlane.f32.xlu0 %v2650
    %v2906 = vpop.xlane.xlu0 %2905
    %2907 = vadd.xlane.f32.xlu0 %v2652
    %v2908 = vpop.xlane.xlu0 %2907
    %2909 = vadd.xlane.f32.xlu0 %v2654
    %v2910 = vpop.xlane.xlu0 %2909
    %2911 = vadd.xlane.f32.xlu0 %v2656
    %v2912 = vpop.xlane.xlu0 %2911
    %2913 = vadd.xlane.f32.xlu0 %v2658
    %v2914 = vpop.xlane.xlu0 %2913
    %2915 = vadd.xlane.f32.xlu0 %v2660
    %v2916 = vpop.xlane.xlu0 %2915
    %2917 = vadd.xlane.f32.xlu0 %v2662
    %v2918 = vpop.xlane.xlu0 %2917
    %2919 = vadd.xlane.f32.xlu0 %v2664
    %v2920 = vpop.xlane.xlu0 %2919
    %2921 = vadd.xlane.f32.xlu0 %v2666
    %v2922 = vpop.xlane.xlu0 %2921
    %2923 = vadd.xlane.f32.xlu0 %v2668
    %v2924 = vpop.xlane.xlu0 %2923
    %2925 = vadd.xlane.f32.xlu0 %v2670
    %v2926 = vpop.xlane.xlu0 %2925
    %2927 = vadd.xlane.f32.xlu0 %v2672
    %v2928 = vpop.xlane.xlu0 %2927
    %2929 = vadd.xlane.f32.xlu0 %v2674
    %v2930 = vpop.xlane.xlu0 %2929
    %2931 = vadd.xlane.f32.xlu0 %v2676
    %v2932 = vpop.xlane.xlu0 %2931
    %2933 = vadd.xlane.f32.xlu0 %v2678
    %v2934 = vpop.xlane.xlu0 %2933
    %2935 = vadd.xlane.f32.xlu0 %v2680
    %v2936 = vpop.xlane.xlu0 %2935
    %2937 = vadd.xlane.f32.xlu0 %v2682
    %v2938 = vpop.xlane.xlu0 %2937
    %2939 = vadd.xlane.f32.xlu0 %v2684
    %v2940 = vpop.xlane.xlu0 %2939
    %2941 = vadd.xlane.f32.xlu0 %v2686
    %v2942 = vpop.xlane.xlu0 %2941
    %2943 = vadd.xlane.f32.xlu0 %v2688
    %v2944 = vpop.xlane.xlu0 %2943
    %2945 = vadd.xlane.f32.xlu0 %v2690
    %v2946 = vpop.xlane.xlu0 %2945
    %2947 = vadd.xlane.f32.xlu0 %v2692
    %v2948 = vpop.xlane.xlu0 %2947
    %2949 = vadd.xlane.f32.xlu0 %v2694
    %v2950 = vpop.xlane.xlu0 %2949
    %2951 = vadd.xlane.f32.xlu0 %v2696
    %v2952 = vpop.xlane.xlu0 %2951
    %2953 = vadd.xlane.f32.xlu0 %v2698
    %v2954 = vpop.xlane.xlu0 %2953
    %2955 = vadd.xlane.f32.xlu0 %v2700
    %v2956 = vpop.xlane.xlu0 %2955
    %2957 = vadd.xlane.f32.xlu0 %v2702
    %v2958 = vpop.xlane.xlu0 %2957
    %2959 = vadd.xlane.f32.xlu0 %v2704
    %v2960 = vpop.xlane.xlu0 %2959
    %2961 = vadd.xlane.f32.xlu0 %v2706
    %v2962 = vpop.xlane.xlu0 %2961
    %2963 = vadd.xlane.f32.xlu0 %v2708
    %v2964 = vpop.xlane.xlu0 %2963
    %2965 = vadd.xlane.f32.xlu0 %v2710
    %v2966 = vpop.xlane.xlu0 %2965
    %2967 = vadd.xlane.f32.xlu0 %v2712
    %v2968 = vpop.xlane.xlu0 %2967
    %2969 = vadd.xlane.f32.xlu0 %v2714
    %v2970 = vpop.xlane.xlu0 %2969
    %2971 = vadd.xlane.f32.xlu0 %v2716
    %v2972 = vpop.xlane.xlu0 %2971
    %2973 = vadd.xlane.f32.xlu0 %v2718
    %v2974 = vpop.xlane.xlu0 %2973
    %2975 = vadd.xlane.f32.xlu0 %v2720
    %v2976 = vpop.xlane.xlu0 %2975
    %2977 = vadd.xlane.f32.xlu0 %v2722
    %v2978 = vpop.xlane.xlu0 %2977
    %2979 = vadd.xlane.f32.xlu0 %v2724
    %v2980 = vpop.xlane.xlu0 %2979
    %2981 = vadd.xlane.f32.xlu0 %v2726
    %v2982 = vpop.xlane.xlu0 %2981
    %2983 = vadd.xlane.f32.xlu0 %v2728
    %v2984 = vpop.xlane.xlu0 %2983
    %2985 = vadd.xlane.f32.xlu0 %v2730
    %v2986 = vpop.xlane.xlu0 %2985
    %2987 = vadd.xlane.f32.xlu0 %v2732
    %v2988 = vpop.xlane.xlu0 %2987
    %2989 = vadd.xlane.f32.xlu0 %v2734
    %v2990 = vpop.xlane.xlu0 %2989
    %2991 = vadd.xlane.f32.xlu0 %v2736
    %v2992 = vpop.xlane.xlu0 %2991
    %2993 = vadd.xlane.f32.xlu0 %v2738
    %v2994 = vpop.xlane.xlu0 %2993
    %2995 = vadd.xlane.f32.xlu0 %v2740
    %v2996 = vpop.xlane.xlu0 %2995
    %2997 = vadd.xlane.f32.xlu0 %v2742
    %v2998 = vpop.xlane.xlu0 %2997
    %2999 = vadd.xlane.f32.xlu0 %v2744
    %v3000 = vpop.xlane.xlu0 %2999
    %v3001 = vrcp.pop %v2746
    %v3002 = vrcp.pop %v2748
    %v3003 = vrcp.pop %v2750
    %v3004 = vrcp.pop %v2752
    %v3005 = vrcp.pop %v2754
    %v3006 = vrcp.pop %v2756
    %v3007 = vrcp.pop %v2758
    %v3008 = vrcp.pop %v2760
    %v3009 = vrcp.pop %v2762
    %v3010 = vrcp.pop %v2764
    %v3011 = vrcp.pop %v2766
    %v3012 = vrcp.pop %v2768
    %v3013 = vrcp.pop %v2770
    %v3014 = vrcp.pop %v2772
    %v3015 = vrcp.pop %v2774
    %v3016 = vrcp.pop %v2776
    %v3017 = vrcp.pop %v2778
    %v3018 = vrcp.pop %v2780
    %v3019 = vrcp.pop %v2782
    %v3020 = vrcp.pop %v2784
    %v3021 = vrcp.pop %v2786
    %v3022 = vrcp.pop %v2788
    %v3023 = vrcp.pop %v2790
    %v3024 = vrcp.pop %v2792
    %v3025 = vrcp.pop %v2794
    %v3026 = vrcp.pop %v2796
    %v3027 = vrcp.pop %v2798
    %v3028 = vrcp.pop %v2800
    %v3029 = vrcp.pop %v2802
    %v3030 = vrcp.pop %v2804
    %v3031 = vrcp.pop %v2806
    %v3032 = vrcp.pop %v2808
    %v3033 = vrcp.pop %v2810
    %v3034 = vrcp.pop %v2812
    %v3035 = vrcp.pop %v2814
    %v3036 = vrcp.pop %v2816
    %v3037 = vrcp.pop %v2818
    %v3038 = vrcp.pop %v2820
    %v3039 = vrcp.pop %v2822
    %v3040 = vrcp.pop %v2824
    %v3041 = vrcp.pop %v2826
    %v3042 = vrcp.pop %v2828
    %v3043 = vrcp.pop %v2830
    %v3044 = vrcp.pop %v2832
    %v3045 = vrcp.pop %v2834
    %v3046 = vrcp.pop %v2836
    %v3047 = vrcp.pop %v2838
    %v3048 = vrcp.pop %v2840
    %v3049 = vrcp.pop %v2842
    %v3050 = vrcp.pop %v2844
    %v3051 = vrcp.pop %v2846
    %v3052 = vrcp.pop %v2848
    %v3053 = vrcp.pop %v2850
    %v3054 = vrcp.pop %v2852
    %v3055 = vrcp.pop %v2854
    %v3056 = vrcp.pop %v2856
    %v3057 = vrcp.pop %v2858
    %v3058 = vrcp.pop %v2860
    %v3059 = vrcp.pop %v2862
    %v3060 = vrcp.pop %v2864
    %v3061 = vrcp.pop %v2866
    %v3062 = vrcp.pop %v2868
    %v3063 = vrcp.pop %v2870
    %v3064 = vrcp.pop %v2872
    %v3065 = vrcp.pop %v2874
    %v3066 = vrcp.pop %v2876
    %v3067 = vrcp.pop %v2878
    %v3068 = vrcp.pop %v2880
    %v3069 = vrcp.pop %v2882
    %v3070 = vrcp.pop %v2884
    %v3071 = vrcp.pop %v2886
    %v3072 = vrcp.pop %v2888
    %v3073 = vrcp.pop %v2890
    %v3074 = vrcp.pop %v2892
    %v3075 = vrcp.pop %v2894
    %v3076 = vrcp.pop %v2896
    %v3077 = vrcp.pop %v2898
    %v3078 = vrcp.pop %v2900
    %v3079 = vrcp.pop %v2902
    %v3080 = vrcp.pop %v2904
    %v3081 = vrcp.pop %v2906
    %v3082 = vrcp.pop %v2908
    %v3083 = vrcp.pop %v2910
    %v3084 = vrcp.pop %v2912
    %v3085 = vrcp.pop %v2914
    %v3086 = vrcp.pop %v2916
    %v3087 = vrcp.pop %v2918
    %v3088 = vrcp.pop %v2920
    %v3089 = vrcp.pop %v2922
    %v3090 = vrcp.pop %v2924
    %v3091 = vrcp.pop %v2926
    %v3092 = vrcp.pop %v2928
    %v3093 = vrcp.pop %v2930
    %v3094 = vrcp.pop %v2932
    %v3095 = vrcp.pop %v2934
    %v3096 = vrcp.pop %v2936
    %v3097 = vrcp.pop %v2938
    %v3098 = vrcp.pop %v2940
    %v3099 = vrcp.pop %v2942
    %v3100 = vrcp.pop %v2944
    %v3101 = vrcp.pop %v2946
    %v3102 = vrcp.pop %v2948
    %v3103 = vrcp.pop %v2950
    %v3104 = vrcp.pop %v2952
    %v3105 = vrcp.pop %v2954
    %v3106 = vrcp.pop %v2956
    %v3107 = vrcp.pop %v2958
    %v3108 = vrcp.pop %v2960
    %v3109 = vrcp.pop %v2962
    %v3110 = vrcp.pop %v2964
    %v3111 = vrcp.pop %v2966
    %v3112 = vrcp.pop %v2968
    %v3113 = vrcp.pop %v2970
    %v3114 = vrcp.pop %v2972
    %v3115 = vrcp.pop %v2974
    %v3116 = vrcp.pop %v2976
    %v3117 = vrcp.pop %v2978
    %v3118 = vrcp.pop %v2980
    %v3119 = vrcp.pop %v2982
    %v3120 = vrcp.pop %v2984
    %v3121 = vrcp.pop %v2986
    %v3122 = vrcp.pop %v2988
    %v3123 = vrcp.pop %v2990
    %v3124 = vrcp.pop %v2992
    %v3125 = vrcp.pop %v2994
    %v3126 = vrcp.pop %v2996
    %v3127 = vrcp.pop %v2998
    %v3128 = vrcp.pop %v3000
    %3129 = vmatprep.subr.mxu0 0.0
    %3130 = vmatpush1.xpose.msra.mxu0 %v139
    %3131 = vmatprep.subr.mxu0 0.0
    %3132 = vmatpush1.xpose.msra.mxu0 %v140
    %3133 = vmatprep.subr.mxu0 0.0
    %3134 = vmatpush1.xpose.msra.mxu0 0.0
    %3135 = vmatprep.subr.mxu0 0.0
    %3136 = vmatpush1.xpose.msra.mxu0 0.0
    %3137 = vmatprep.subr.mxu0 0.0
    %3138 = vmatpush1.xpose.msra.mxu0 0.0
    %3139 = vmatprep.subr.mxu0 0.0
    %3140 = vmatpush1.xpose.msra.mxu0 0.0
    %3141 = vmatprep.subr.mxu0 0.0
    %3142 = vmatpush1.xpose.msra.mxu0 0.0
    %3143 = vmatprep.subr.mxu0 0.0
    %3144 = vmatpush1.xpose.msra.mxu0 0.0
    %3145 = vmatprep.subr.mxu0 0.0
    %3146 = vmatpush1.xpose.msra.mxu0 0.0
    %3147 = vmatprep.subr.mxu0 0.0
    %3148 = vmatpush1.xpose.msra.mxu0 0.0
    %3149 = vmatprep.subr.mxu0 0.0
    %3150 = vmatpush1.xpose.msra.mxu0 0.0
    %3151 = vmatprep.subr.mxu0 0.0
    %3152 = vmatpush1.xpose.msra.mxu0 0.0
    %3153 = vmatprep.subr.mxu0 0.0
    %3154 = vmatpush1.xpose.msra.mxu0 0.0
    %3155 = vmatprep.subr.mxu0 0.0
    %3156 = vmatpush1.xpose.msra.mxu0 0.0
    %3157 = vmatprep.subr.mxu0 0.0
    %3158 = vmatpush1.xpose.msra.mxu0 0.0
    %3159 = vmatprep.subr.mxu0 0.0
    %3160 = vmatpush1.xpose.msra.mxu0 0.0
    %3161 = vmatprep.subr.mxu0 0.0
    %3162 = vmatpush1.xpose.msra.mxu0 0.0
    %3163 = vmatprep.subr.mxu0 0.0
    %3164 = vmatpush1.xpose.msra.mxu0 0.0
    %3165 = vmatprep.subr.mxu0 0.0
    %3166 = vmatpush1.xpose.msra.mxu0 0.0
    %3167 = vmatprep.subr.mxu0 0.0
    %3168 = vmatpush1.xpose.msra.mxu0 0.0
    %3169 = vmatprep.subr.mxu0 0.0
    %3170 = vmatpush1.xpose.msra.mxu0 0.0
    %3171 = vmatprep.subr.mxu0 0.0
    %3172 = vmatpush1.xpose.msra.mxu0 0.0
    %3173 = vmatprep.subr.mxu0 0.0
    %3174 = vmatpush1.xpose.msra.mxu0 0.0
    %3175 = vmatprep.subr.mxu0 0.0
    %3176 = vmatpush1.xpose.msra.mxu0 0.0
    %3177 = vmatprep.subr.mxu0 0.0
    %3178 = vmatpush1.xpose.msra.mxu0 0.0
    %3179 = vmatprep.subr.mxu0 0.0
    %3180 = vmatpush1.xpose.msra.mxu0 0.0
    %3181 = vmatprep.subr.mxu0 0.0
    %3182 = vmatpush1.xpose.msra.mxu0 0.0
    %3183 = vmatprep.subr.mxu0 0.0
    %3184 = vmatpush1.xpose.msra.mxu0 0.0
    %3185 = vmatprep.subr.mxu0 0.0
    %3186 = vmatpush1.xpose.msra.mxu0 0.0
    %3187 = vmatprep.subr.mxu0 0.0
    %3188 = vmatpush1.xpose.msra.mxu0 0.0
    %3189 = vmatprep.subr.mxu0 0.0
    %3190 = vmatpush1.xpose.msra.mxu0 0.0
    %3191 = vmatprep.subr.mxu0 0.0
    %3192 = vmatpush1.xpose.msra.mxu0 0.0
    %3193 = vmatprep.mubr.f32.mxu0 0.0
    %3194 = vmatmul.mubr.f32.gmra.mrb[0].mxu0 %v2490
    %v3195 = vpop.f32.mrb[0].mxu0
    %v3196 = vadd.f32 0.0, %v3195
    %v3197 = vpop.f32.mrb[0].mxu0
    %3198 = vmatprep.mubr.f32.mxu0 0.0
    %3199 = vmatmul.mubr.f32.gmra.mrb[0].mxu0 %v2492
    %v3200 = vpop.f32.mrb[0].mxu0
    %v3201 = vadd.f32 0.0, %v3200
    %v3202 = vpop.f32.mrb[0].mxu0
    %3203 = vmatprep.mubr.f32.mxu0 0.0
    %3204 = vmatmul.mubr.f32.gmra.mrb[0].mxu0 %v2494
    %v3205 = vpop.f32.mrb[0].mxu0
    %v3206 = vadd.f32 0.0, %v3205
    %v3207 = vpop.f32.mrb[0].mxu0
    %3208 = vmatprep.mubr.f32.mxu0 0.0
    %3209 = vmatmul.mubr.f32.gmra.mrb[0].mxu0 %v2496
    %v3210 = vpop.f32.mrb[0].mxu0
    %v3211 = vadd.f32 0.0, %v3210
    %v3212 = vpop.f32.mrb[0].mxu0
    %3213 = vmatprep.mubr.f32.mxu0 0.0
    %3214 = vmatmul.mubr.f32.gmra.mrb[0].mxu0 %v2498
    %v3215 = vpop.f32.mrb[0].mxu0
    %v3216 = vadd.f32 0.0, %v3215
    %v3217 = vpop.f32.mrb[0].mxu0
    %3218 = vmatprep.mubr.f32.mxu0 0.0
    %3219 = vmatmul.mubr.f32.gmra.mrb[0].mxu0 %v2500
    %v3220 = vpop.f32.mrb[0].mxu0
    %v3221 = vadd.f32 0.0, %v3220
    %v3222 = vpop.f32.mrb[0].mxu0
    %3223 = vmatprep.mubr.f32.mxu0 0.0
    %3224 = vmatmul.mubr.f32.gmra.mrb[0].mxu0 %v2502
    %v3225 = vpop.f32.mrb[0].mxu0
    %v3226 = vadd.f32 0.0, %v3225
    %v3227 = vpop.f32.mrb[0].mxu0
    %3228 = vmatprep.mubr.f32.mxu0 0.0
    %3229 = vmatmul.mubr.f32.gmra.mrb[0].mxu0 %v2504
    %v3230 = vpop.f32.mrb[0].mxu0
    %v3231 = vadd.f32 0.0, %v3230
    %v3232 = vpop.f32.mrb[0].mxu0
    %3233 = vmatprep.mubr.f32.mxu0 0.0
    %3234 = vmatmul.mubr.f32.gmra.mrb[0].mxu0 %v2506
    %v3235 = vpop.f32.mrb[0].mxu0
    %v3236 = vadd.f32 0.0, %v3235
    %v3237 = vpop.f32.mrb[0].mxu0
    %3238 = vmatprep.mubr.f32.mxu0 0.0
    %3239 = vmatmul.mubr.f32.gmra.mrb[0].mxu0 %v2508
    %v3240 = vpop.f32.mrb[0].mxu0
    %v3241 = vadd.f32 0.0, %v3240
    %v3242 = vpop.f32.mrb[0].mxu0
    %3243 = vmatprep.mubr.f32.mxu0 0.0
    %3244 = vmatmul.mubr.f32.gmra.mrb[0].mxu0 %v2510
    %v3245 = vpop.f32.mrb[0].mxu0
    %v3246 = vadd.f32 0.0, %v3245
    %v3247 = vpop.f32.mrb[0].mxu0
    %3248 = vmatprep.mubr.f32.mxu0 0.0
    %3249 = vmatmul.mubr.f32.gmra.mrb[0].mxu0 %v2512
    %v3250 = vpop.f32.mrb[0].mxu0
    %v3251 = vadd.f32 0.0, %v3250
    %v3252 = vpop.f32.mrb[0].mxu0
    %3253 = vmatprep.mubr.f32.mxu0 0.0
    %3254 = vmatmul.mubr.f32.gmra.mrb[0].mxu0 %v2514
    %v3255 = vpop.f32.mrb[0].mxu0
    %v3256 = vadd.f32 0.0, %v3255
    %v3257 = vpop.f32.mrb[0].mxu0
    %3258 = vmatprep.mubr.f32.mxu0 0.0
    %3259 = vmatmul.mubr.f32.gmra.mrb[0].mxu0 %v2516
    %v3260 = vpop.f32.mrb[0].mxu0
    %v3261 = vadd.f32 0.0, %v3260
    %v3262 = vpop.f32.mrb[0].mxu0
    %3263 = vmatprep.mubr.f32.mxu0 0.0
    %3264 = vmatmul.mubr.f32.gmra.mrb[0].mxu0 %v2518
    %v3265 = vpop.f32.mrb[0].mxu0
    %v3266 = vadd.f32 0.0, %v3265
    %v3267 = vpop.f32.mrb[0].mxu0
    %3268 = vmatprep.mubr.f32.mxu0 0.0
    %3269 = vmatmul.mubr.f32.gmra.mrb[0].mxu0 %v2520
    %v3270 = vpop.f32.mrb[0].mxu0
    %v3271 = vadd.f32 0.0, %v3270
    %v3272 = vpop.f32.mrb[0].mxu0
    %3273 = vdwg.mxu0
    %3274 = vmatprep.subr.mxu0 0.0
    %3275 = vmatpush1.xpose.msra.mxu0 %v141
    %3276 = vmatprep.subr.mxu0 0.0
    %3277 = vmatpush1.xpose.msra.mxu0 %v142
    %3278 = vmatprep.subr.mxu0 0.0
    %3279 = vmatpush1.xpose.msra.mxu0 0.0
    %3280 = vmatprep.subr.mxu0 0.0
    %3281 = vmatpush1.xpose.msra.mxu0 0.0
    %3282 = vmatprep.subr.mxu0 0.0
    %3283 = vmatpush1.xpose.msra.mxu0 0.0
    %3284 = vmatprep.subr.mxu0 0.0
    %3285 = vmatpush1.xpose.msra.mxu0 0.0
    %3286 = vmatprep.subr.mxu0 0.0
    %3287 = vmatpush1.xpose.msra.mxu0 0.0
    %3288 = vmatprep.subr.mxu0 0.0
    %3289 = vmatpush1.xpose.msra.mxu0 0.0
    %3290 = vmatprep.subr.mxu0 0.0
    %3291 = vmatpush1.xpose.msra.mxu0 0.0
    %3292 = vmatprep.subr.mxu0 0.0
    %3293 = vmatpush1.xpose.msra.mxu0 0.0
    %3294 = vmatprep.subr.mxu0 0.0
    %3295 = vmatpush1.xpose.msra.mxu0 0.0
    %3296 = vmatprep.subr.mxu0 0.0
    %3297 = vmatpush1.xpose.msra.mxu0 0.0
    %3298 = vmatprep.subr.mxu0 0.0
    %3299 = vmatpush1.xpose.msra.mxu0 0.0
    %3300 = vmatprep.subr.mxu0 0.0
    %3301 = vmatpush1.xpose.msra.mxu0 0.0
    %3302 = vmatprep.subr.mxu0 0.0
    %3303 = vmatpush1.xpose.msra.mxu0 0.0
    %3304 = vmatprep.subr.mxu0 0.0
    %3305 = vmatpush1.xpose.msra.mxu0 0.0
    %3306 = vmatprep.subr.mxu0 0.0
    %3307 = vmatpush1.xpose.msra.mxu0 0.0
    %3308 = vmatprep.subr.mxu0 0.0
    %3309 = vmatpush1.xpose.msra.mxu0 0.0
    %3310 = vmatprep.subr.mxu0 0.0
    %3311 = vmatpush1.xpose.msra.mxu0 0.0
    %3312 = vmatprep.subr.mxu0 0.0
    %3313 = vmatpush1.xpose.msra.mxu0 0.0
    %3314 = vmatprep.subr.mxu0 0.0
    %3315 = vmatpush1.xpose.msra.mxu0 0.0
    %3316 = vmatprep.subr.mxu0 0.0
    %3317 = vmatpush1.xpose.msra.mxu0 0.0
    %3318 = vmatprep.subr.mxu0 0.0
    %3319 = vmatpush1.xpose.msra.mxu0 0.0
    %3320 = vmatprep.subr.mxu0 0.0
    %3321 = vmatpush1.xpose.msra.mxu0 0.0
    %3322 = vmatprep.subr.mxu0 0.0
    %3323 = vmatpush1.xpose.msra.mxu0 0.0
    %3324 = vmatprep.subr.mxu0 0.0
    %3325 = vmatpush1.xpose.msra.mxu0 0.0
    %3326 = vmatprep.subr.mxu0 0.0
    %3327 = vmatpush1.xpose.msra.mxu0 0.0
    %3328 = vmatprep.subr.mxu0 0.0
    %3329 = vmatpush1.xpose.msra.mxu0 0.0
    %3330 = vmatprep.subr.mxu0 0.0
    %3331 = vmatpush1.xpose.msra.mxu0 0.0
    %3332 = vmatprep.subr.mxu0 0.0
    %3333 = vmatpush1.xpose.msra.mxu0 0.0
    %3334 = vmatprep.subr.mxu0 0.0
    %3335 = vmatpush1.xpose.msra.mxu0 0.0
    %3336 = vmatprep.subr.mxu0 0.0
    %3337 = vmatpush1.xpose.msra.mxu0 0.0
    %3338 = vmatprep.mubr.f32.mxu0 0.0
    %3339 = vmatmul.mubr.f32.gmra.mrb[0].mxu0 %v2522
    %v3340 = vpop.f32.mrb[0].mxu0
    %v3341 = vadd.f32 0.0, %v3340
    %v3342 = vpop.f32.mrb[0].mxu0
    %3343 = vmatprep.mubr.f32.mxu0 0.0
    %3344 = vmatmul.mubr.f32.gmra.mrb[0].mxu0 %v2524
    %v3345 = vpop.f32.mrb[0].mxu0
    %v3346 = vadd.f32 0.0, %v3345
    %v3347 = vpop.f32.mrb[0].mxu0
    %3348 = vmatprep.mubr.f32.mxu0 0.0
    %3349 = vmatmul.mubr.f32.gmra.mrb[0].mxu0 %v2526
    %v3350 = vpop.f32.mrb[0].mxu0
    %v3351 = vadd.f32 0.0, %v3350
    %v3352 = vpop.f32.mrb[0].mxu0
    %3353 = vmatprep.mubr.f32.mxu0 0.0
    %3354 = vmatmul.mubr.f32.gmra.mrb[0].mxu0 %v2528
    %v3355 = vpop.f32.mrb[0].mxu0
    %v3356 = vadd.f32 0.0, %v3355
    %v3357 = vpop.f32.mrb[0].mxu0
    %3358 = vmatprep.mubr.f32.mxu0 0.0
    %3359 = vmatmul.mubr.f32.gmra.mrb[0].mxu0 %v2530
    %v3360 = vpop.f32.mrb[0].mxu0
    %v3361 = vadd.f32 0.0, %v3360
    %v3362 = vpop.f32.mrb[0].mxu0
    %3363 = vmatprep.mubr.f32.mxu0 0.0
    %3364 = vmatmul.mubr.f32.gmra.mrb[0].mxu0 %v2532
    %v3365 = vpop.f32.mrb[0].mxu0
    %v3366 = vadd.f32 0.0, %v3365
    %v3367 = vpop.f32.mrb[0].mxu0
    %3368 = vmatprep.mubr.f32.mxu0 0.0
    %3369 = vmatmul.mubr.f32.gmra.mrb[0].mxu0 %v2534
    %v3370 = vpop.f32.mrb[0].mxu0
    %v3371 = vadd.f32 0.0, %v3370
    %v3372 = vpop.f32.mrb[0].mxu0
    %3373 = vmatprep.mubr.f32.mxu0 0.0
    %3374 = vmatmul.mubr.f32.gmra.mrb[0].mxu0 %v2536
    %v3375 = vpop.f32.mrb[0].mxu0
    %v3376 = vadd.f32 0.0, %v3375
    %v3377 = vpop.f32.mrb[0].mxu0
    %3378 = vmatprep.mubr.f32.mxu0 0.0
    %3379 = vmatmul.mubr.f32.gmra.mrb[0].mxu0 %v2538
    %v3380 = vpop.f32.mrb[0].mxu0
    %v3381 = vadd.f32 0.0, %v3380
    %v3382 = vpop.f32.mrb[0].mxu0
    %3383 = vmatprep.mubr.f32.mxu0 0.0
    %3384 = vmatmul.mubr.f32.gmra.mrb[0].mxu0 %v2540
    %v3385 = vpop.f32.mrb[0].mxu0
    %v3386 = vadd.f32 0.0, %v3385
    %v3387 = vpop.f32.mrb[0].mxu0
    %3388 = vmatprep.mubr.f32.mxu0 0.0
    %3389 = vmatmul.mubr.f32.gmra.mrb[0].mxu0 %v2542
    %v3390 = vpop.f32.mrb[0].mxu0
    %v3391 = vadd.f32 0.0, %v3390
    %v3392 = vpop.f32.mrb[0].mxu0
    %3393 = vmatprep.mubr.f32.mxu0 0.0
    %3394 = vmatmul.mubr.f32.gmra.mrb[0].mxu0 %v2544
    %v3395 = vpop.f32.mrb[0].mxu0
    %v3396 = vadd.f32 0.0, %v3395
    %v3397 = vpop.f32.mrb[0].mxu0
    %3398 = vmatprep.mubr.f32.mxu0 0.0
    %3399 = vmatmul.mubr.f32.gmra.mrb[0].mxu0 %v2546
    %v3400 = vpop.f32.mrb[0].mxu0
    %v3401 = vadd.f32 0.0, %v3400
    %v3402 = vpop.f32.mrb[0].mxu0
    %3403 = vmatprep.mubr.f32.mxu0 0.0
    %3404 = vmatmul.mubr.f32.gmra.mrb[0].mxu0 %v2548
    %v3405 = vpop.f32.mrb[0].mxu0
    %v3406 = vadd.f32 0.0, %v3405
    %v3407 = vpop.f32.mrb[0].mxu0
    %3408 = vmatprep.mubr.f32.mxu0 0.0
    %3409 = vmatmul.mubr.f32.gmra.mrb[0].mxu0 %v2550
    %v3410 = vpop.f32.mrb[0].mxu0
    %v3411 = vadd.f32 0.0, %v3410
    %v3412 = vpop.f32.mrb[0].mxu0
    %3413 = vmatprep.mubr.f32.mxu0 0.0
    %3414 = vmatmul.mubr.f32.gmra.mrb[0].mxu0 %v2552
    %v3415 = vpop.f32.mrb[0].mxu0
    %v3416 = vadd.f32 0.0, %v3415
    %v3417 = vpop.f32.mrb[0].mxu0
    %3418 = vdwg.mxu0
    %3419 = vmatprep.subr.mxu0 0.0
    %3420 = vmatpush1.xpose.msra.mxu0 %v143
    %3421 = vmatprep.subr.mxu0 0.0
    %3422 = vmatpush1.xpose.msra.mxu0 %v144
    %3423 = vmatprep.subr.mxu0 0.0
    %3424 = vmatpush1.xpose.msra.mxu0 0.0
    %3425 = vmatprep.subr.mxu0 0.0
    %3426 = vmatpush1.xpose.msra.mxu0 0.0
    %3427 = vmatprep.subr.mxu0 0.0
    %3428 = vmatpush1.xpose.msra.mxu0 0.0
    %3429 = vmatprep.subr.mxu0 0.0
    %3430 = vmatpush1.xpose.msra.mxu0 0.0
    %3431 = vmatprep.subr.mxu0 0.0
    %3432 = vmatpush1.xpose.msra.mxu0 0.0
    %3433 = vmatprep.subr.mxu0 0.0
    %3434 = vmatpush1.xpose.msra.mxu0 0.0
    %3435 = vmatprep.subr.mxu0 0.0
    %3436 = vmatpush1.xpose.msra.mxu0 0.0
    %3437 = vmatprep.subr.mxu0 0.0
    %3438 = vmatpush1.xpose.msra.mxu0 0.0
    %3439 = vmatprep.subr.mxu0 0.0
    %3440 = vmatpush1.xpose.msra.mxu0 0.0
    %3441 = vmatprep.subr.mxu0 0.0
    %3442 = vmatpush1.xpose.msra.mxu0 0.0
    %3443 = vmatprep.subr.mxu0 0.0
    %3444 = vmatpush1.xpose.msra.mxu0 0.0
    %3445 = vmatprep.subr.mxu0 0.0
    %3446 = vmatpush1.xpose.msra.mxu0 0.0
    %3447 = vmatprep.subr.mxu0 0.0
    %3448 = vmatpush1.xpose.msra.mxu0 0.0
    %3449 = vmatprep.subr.mxu0 0.0
    %3450 = vmatpush1.xpose.msra.mxu0 0.0
    %3451 = vmatprep.subr.mxu0 0.0
    %3452 = vmatpush1.xpose.msra.mxu0 0.0
    %3453 = vmatprep.subr.mxu0 0.0
    %3454 = vmatpush1.xpose.msra.mxu0 0.0
    %3455 = vmatprep.subr.mxu0 0.0
    %3456 = vmatpush1.xpose.msra.mxu0 0.0
    %3457 = vmatprep.subr.mxu0 0.0
    %3458 = vmatpush1.xpose.msra.mxu0 0.0
    %3459 = vmatprep.subr.mxu0 0.0
    %3460 = vmatpush1.xpose.msra.mxu0 0.0
    %3461 = vmatprep.subr.mxu0 0.0
    %3462 = vmatpush1.xpose.msra.mxu0 0.0
    %3463 = vmatprep.subr.mxu0 0.0
    %3464 = vmatpush1.xpose.msra.mxu0 0.0
    %3465 = vmatprep.subr.mxu0 0.0
    %3466 = vmatpush1.xpose.msra.mxu0 0.0
    %3467 = vmatprep.subr.mxu0 0.0
    %3468 = vmatpush1.xpose.msra.mxu0 0.0
    %3469 = vmatprep.subr.mxu0 0.0
    %3470 = vmatpush1.xpose.msra.mxu0 0.0
    %3471 = vmatprep.subr.mxu0 0.0
    %3472 = vmatpush1.xpose.msra.mxu0 0.0
    %3473 = vmatprep.subr.mxu0 0.0
    %3474 = vmatpush1.xpose.msra.mxu0 0.0
    %3475 = vmatprep.subr.mxu0 0.0
    %3476 = vmatpush1.xpose.msra.mxu0 0.0
    %3477 = vmatprep.subr.mxu0 0.0
    %3478 = vmatpush1.xpose.msra.mxu0 0.0
    %3479 = vmatprep.subr.mxu0 0.0
    %3480 = vmatpush1.xpose.msra.mxu0 0.0
    %3481 = vmatprep.subr.mxu0 0.0
    %3482 = vmatpush1.xpose.msra.mxu0 0.0
    %3483 = vmatprep.mubr.f32.mxu0 0.0
    %3484 = vmatmul.mubr.f32.gmra.mrb[0].mxu0 %v2554
    %v3485 = vpop.f32.mrb[0].mxu0
    %v3486 = vadd.f32 0.0, %v3485
    %v3487 = vpop.f32.mrb[0].mxu0
    %3488 = vmatprep.mubr.f32.mxu0 0.0
    %3489 = vmatmul.mubr.f32.gmra.mrb[0].mxu0 %v2556
    %v3490 = vpop.f32.mrb[0].mxu0
    %v3491 = vadd.f32 0.0, %v3490
    %v3492 = vpop.f32.mrb[0].mxu0
    %3493 = vmatprep.mubr.f32.mxu0 0.0
    %3494 = vmatmul.mubr.f32.gmra.mrb[0].mxu0 %v2558
    %v3495 = vpop.f32.mrb[0].mxu0
    %v3496 = vadd.f32 0.0, %v3495
    %v3497 = vpop.f32.mrb[0].mxu0
    %3498 = vmatprep.mubr.f32.mxu0 0.0
    %3499 = vmatmul.mubr.f32.gmra.mrb[0].mxu0 %v2560
    %v3500 = vpop.f32.mrb[0].mxu0
    %v3501 = vadd.f32 0.0, %v3500
    %v3502 = vpop.f32.mrb[0].mxu0
    %3503 = vmatprep.mubr.f32.mxu0 0.0
    %3504 = vmatmul.mubr.f32.gmra.mrb[0].mxu0 %v2562
    %v3505 = vpop.f32.mrb[0].mxu0
    %v3506 = vadd.f32 0.0, %v3505
    %v3507 = vpop.f32.mrb[0].mxu0
    %3508 = vmatprep.mubr.f32.mxu0 0.0
    %3509 = vmatmul.mubr.f32.gmra.mrb[0].mxu0 %v2564
    %v3510 = vpop.f32.mrb[0].mxu0
    %v3511 = vadd.f32 0.0, %v3510
    %v3512 = vpop.f32.mrb[0].mxu0
    %3513 = vmatprep.mubr.f32.mxu0 0.0
    %3514 = vmatmul.mubr.f32.gmra.mrb[0].mxu0 %v2566
    %v3515 = vpop.f32.mrb[0].mxu0
    %v3516 = vadd.f32 0.0, %v3515
    %v3517 = vpop.f32.mrb[0].mxu0
    %3518 = vmatprep.mubr.f32.mxu0 0.0
    %3519 = vmatmul.mubr.f32.gmra.mrb[0].mxu0 %v2568
    %v3520 = vpop.f32.mrb[0].mxu0
    %v3521 = vadd.f32 0.0, %v3520
    %v3522 = vpop.f32.mrb[0].mxu0
    %3523 = vmatprep.mubr.f32.mxu0 0.0
    %3524 = vmatmul.mubr.f32.gmra.mrb[0].mxu0 %v2570
    %v3525 = vpop.f32.mrb[0].mxu0
    %v3526 = vadd.f32 0.0, %v3525
    %v3527 = vpop.f32.mrb[0].mxu0
    %3528 = vmatprep.mubr.f32.mxu0 0.0
    %3529 = vmatmul.mubr.f32.gmra.mrb[0].mxu0 %v2572
    %v3530 = vpop.f32.mrb[0].mxu0
    %v3531 = vadd.f32 0.0, %v3530
    %v3532 = vpop.f32.mrb[0].mxu0
    %3533 = vmatprep.mubr.f32.mxu0 0.0
    %3534 = vmatmul.mubr.f32.gmra.mrb[0].mxu0 %v2574
    %v3535 = vpop.f32.mrb[0].mxu0
    %v3536 = vadd.f32 0.0, %v3535
    %v3537 = vpop.f32.mrb[0].mxu0
    %3538 = vmatprep.mubr.f32.mxu0 0.0
    %3539 = vmatmul.mubr.f32.gmra.mrb[0].mxu0 %v2576
    %v3540 = vpop.f32.mrb[0].mxu0
    %v3541 = vadd.f32 0.0, %v3540
    %v3542 = vpop.f32.mrb[0].mxu0
    %3543 = vmatprep.mubr.f32.mxu0 0.0
    %3544 = vmatmul.mubr.f32.gmra.mrb[0].mxu0 %v2578
    %v3545 = vpop.f32.mrb[0].mxu0
    %v3546 = vadd.f32 0.0, %v3545
    %v3547 = vpop.f32.mrb[0].mxu0
    %3548 = vmatprep.mubr.f32.mxu0 0.0
    %3549 = vmatmul.mubr.f32.gmra.mrb[0].mxu0 %v2580
    %v3550 = vpop.f32.mrb[0].mxu0
    %v3551 = vadd.f32 0.0, %v3550
    %v3552 = vpop.f32.mrb[0].mxu0
    %3553 = vmatprep.mubr.f32.mxu0 0.0
    %3554 = vmatmul.mubr.f32.gmra.mrb[0].mxu0 %v2582
    %v3555 = vpop.f32.mrb[0].mxu0
    %v3556 = vadd.f32 0.0, %v3555
    %v3557 = vpop.f32.mrb[0].mxu0
    %3558 = vmatprep.mubr.f32.mxu0 0.0
    %3559 = vmatmul.mubr.f32.gmra.mrb[0].mxu0 %v2584
    %v3560 = vpop.f32.mrb[0].mxu0
    %v3561 = vadd.f32 0.0, %v3560
    %v3562 = vpop.f32.mrb[0].mxu0
    %3563 = vdwg.mxu0
    %3564 = vmatprep.subr.mxu0 0.0
    %3565 = vmatpush1.xpose.msra.mxu0 %v145
    %3566 = vmatprep.subr.mxu0 0.0
    %3567 = vmatpush1.xpose.msra.mxu0 %v146
    %3568 = vmatprep.subr.mxu0 0.0
    %3569 = vmatpush1.xpose.msra.mxu0 0.0
    %3570 = vmatprep.subr.mxu0 0.0
    %3571 = vmatpush1.xpose.msra.mxu0 0.0
    %3572 = vmatprep.subr.mxu0 0.0
    %3573 = vmatpush1.xpose.msra.mxu0 0.0
    %3574 = vmatprep.subr.mxu0 0.0
    %3575 = vmatpush1.xpose.msra.mxu0 0.0
    %3576 = vmatprep.subr.mxu0 0.0
    %3577 = vmatpush1.xpose.msra.mxu0 0.0
    %3578 = vmatprep.subr.mxu0 0.0
    %3579 = vmatpush1.xpose.msra.mxu0 0.0
    %3580 = vmatprep.subr.mxu0 0.0
    %3581 = vmatpush1.xpose.msra.mxu0 0.0
    %3582 = vmatprep.subr.mxu0 0.0
    %3583 = vmatpush1.xpose.msra.mxu0 0.0
    %3584 = vmatprep.subr.mxu0 0.0
    %3585 = vmatpush1.xpose.msra.mxu0 0.0
    %3586 = vmatprep.subr.mxu0 0.0
    %3587 = vmatpush1.xpose.msra.mxu0 0.0
    %3588 = vmatprep.subr.mxu0 0.0
    %3589 = vmatpush1.xpose.msra.mxu0 0.0
    %3590 = vmatprep.subr.mxu0 0.0
    %3591 = vmatpush1.xpose.msra.mxu0 0.0
    %3592 = vmatprep.subr.mxu0 0.0
    %3593 = vmatpush1.xpose.msra.mxu0 0.0
    %3594 = vmatprep.subr.mxu0 0.0
    %3595 = vmatpush1.xpose.msra.mxu0 0.0
    %3596 = vmatprep.subr.mxu0 0.0
    %3597 = vmatpush1.xpose.msra.mxu0 0.0
    %3598 = vmatprep.subr.mxu0 0.0
    %3599 = vmatpush1.xpose.msra.mxu0 0.0
    %3600 = vmatprep.subr.mxu0 0.0
    %3601 = vmatpush1.xpose.msra.mxu0 0.0
    %3602 = vmatprep.subr.mxu0 0.0
    %3603 = vmatpush1.xpose.msra.mxu0 0.0
    %3604 = vmatprep.subr.mxu0 0.0
    %3605 = vmatpush1.xpose.msra.mxu0 0.0
    %3606 = vmatprep.subr.mxu0 0.0
    %3607 = vmatpush1.xpose.msra.mxu0 0.0
    %3608 = vmatprep.subr.mxu0 0.0
    %3609 = vmatpush1.xpose.msra.mxu0 0.0
    %3610 = vmatprep.subr.mxu0 0.0
    %3611 = vmatpush1.xpose.msra.mxu0 0.0
    %3612 = vmatprep.subr.mxu0 0.0
    %3613 = vmatpush1.xpose.msra.mxu0 0.0
    %3614 = vmatprep.subr.mxu0 0.0
    %3615 = vmatpush1.xpose.msra.mxu0 0.0
    %3616 = vmatprep.subr.mxu0 0.0
    %3617 = vmatpush1.xpose.msra.mxu0 0.0
    %3618 = vmatprep.subr.mxu0 0.0
    %3619 = vmatpush1.xpose.msra.mxu0 0.0
    %3620 = vmatprep.subr.mxu0 0.0
    %3621 = vmatpush1.xpose.msra.mxu0 0.0
    %3622 = vmatprep.subr.mxu0 0.0
    %3623 = vmatpush1.xpose.msra.mxu0 0.0
    %3624 = vmatprep.subr.mxu0 0.0
    %3625 = vmatpush1.xpose.msra.mxu0 0.0
    %3626 = vmatprep.subr.mxu0 0.0
    %3627 = vmatpush1.xpose.msra.mxu0 0.0
    %3628 = vmatprep.mubr.f32.mxu0 0.0
    %3629 = vmatmul.mubr.f32.gmra.mrb[0].mxu0 %v2586
    %v3630 = vpop.f32.mrb[0].mxu0
    %v3631 = vadd.f32 0.0, %v3630
    %v3632 = vpop.f32.mrb[0].mxu0
    %3633 = vmatprep.mubr.f32.mxu0 0.0
    %3634 = vmatmul.mubr.f32.gmra.mrb[0].mxu0 %v2588
    %v3635 = vpop.f32.mrb[0].mxu0
    %v3636 = vadd.f32 0.0, %v3635
    %v3637 = vpop.f32.mrb[0].mxu0
    %3638 = vmatprep.mubr.f32.mxu0 0.0
    %3639 = vmatmul.mubr.f32.gmra.mrb[0].mxu0 %v2590
    %v3640 = vpop.f32.mrb[0].mxu0
    %v3641 = vadd.f32 0.0, %v3640
    %v3642 = vpop.f32.mrb[0].mxu0
    %3643 = vmatprep.mubr.f32.mxu0 0.0
    %3644 = vmatmul.mubr.f32.gmra.mrb[0].mxu0 %v2592
    %v3645 = vpop.f32.mrb[0].mxu0
    %v3646 = vadd.f32 0.0, %v3645
    %v3647 = vpop.f32.mrb[0].mxu0
    %3648 = vmatprep.mubr.f32.mxu0 0.0
    %3649 = vmatmul.mubr.f32.gmra.mrb[0].mxu0 %v2594
    %v3650 = vpop.f32.mrb[0].mxu0
    %v3651 = vadd.f32 0.0, %v3650
    %v3652 = vpop.f32.mrb[0].mxu0
    %3653 = vmatprep.mubr.f32.mxu0 0.0
    %3654 = vmatmul.mubr.f32.gmra.mrb[0].mxu0 %v2596
    %v3655 = vpop.f32.mrb[0].mxu0
    %v3656 = vadd.f32 0.0, %v3655
    %v3657 = vpop.f32.mrb[0].mxu0
    %3658 = vmatprep.mubr.f32.mxu0 0.0
    %3659 = vmatmul.mubr.f32.gmra.mrb[0].mxu0 %v2598
    %v3660 = vpop.f32.mrb[0].mxu0
    %v3661 = vadd.f32 0.0, %v3660
    %v3662 = vpop.f32.mrb[0].mxu0
    %3663 = vmatprep.mubr.f32.mxu0 0.0
    %3664 = vmatmul.mubr.f32.gmra.mrb[0].mxu0 %v2600
    %v3665 = vpop.f32.mrb[0].mxu0
    %v3666 = vadd.f32 0.0, %v3665
    %v3667 = vpop.f32.mrb[0].mxu0
    %3668 = vmatprep.mubr.f32.mxu0 0.0
    %3669 = vmatmul.mubr.f32.gmra.mrb[0].mxu0 %v2602
    %v3670 = vpop.f32.mrb[0].mxu0
    %v3671 = vadd.f32 0.0, %v3670
    %v3672 = vpop.f32.mrb[0].mxu0
    %3673 = vmatprep.mubr.f32.mxu0 0.0
    %3674 = vmatmul.mubr.f32.gmra.mrb[0].mxu0 %v2604
    %v3675 = vpop.f32.mrb[0].mxu0
    %v3676 = vadd.f32 0.0, %v3675
    %v3677 = vpop.f32.mrb[0].mxu0
    %3678 = vmatprep.mubr.f32.mxu0 0.0
    %3679 = vmatmul.mubr.f32.gmra.mrb[0].mxu0 %v2606
    %v3680 = vpop.f32.mrb[0].mxu0
    %v3681 = vadd.f32 0.0, %v3680
    %v3682 = vpop.f32.mrb[0].mxu0
    %3683 = vmatprep.mubr.f32.mxu0 0.0
    %3684 = vmatmul.mubr.f32.gmra.mrb[0].mxu0 %v2608
    %v3685 = vpop.f32.mrb[0].mxu0
    %v3686 = vadd.f32 0.0, %v3685
    %v3687 = vpop.f32.mrb[0].mxu0
    %3688 = vmatprep.mubr.f32.mxu0 0.0
    %3689 = vmatmul.mubr.f32.gmra.mrb[0].mxu0 %v2610
    %v3690 = vpop.f32.mrb[0].mxu0
    %v3691 = vadd.f32 0.0, %v3690
    %v3692 = vpop.f32.mrb[0].mxu0
    %3693 = vmatprep.mubr.f32.mxu0 0.0
    %3694 = vmatmul.mubr.f32.gmra.mrb[0].mxu0 %v2612
    %v3695 = vpop.f32.mrb[0].mxu0
    %v3696 = vadd.f32 0.0, %v3695
    %v3697 = vpop.f32.mrb[0].mxu0
    %3698 = vmatprep.mubr.f32.mxu0 0.0
    %3699 = vmatmul.mubr.f32.gmra.mrb[0].mxu0 %v2614
    %v3700 = vpop.f32.mrb[0].mxu0
    %v3701 = vadd.f32 0.0, %v3700
    %v3702 = vpop.f32.mrb[0].mxu0
    %3703 = vmatprep.mubr.f32.mxu0 0.0
    %3704 = vmatmul.mubr.f32.gmra.mrb[0].mxu0 %v2616
    %v3705 = vpop.f32.mrb[0].mxu0
    %v3706 = vadd.f32 0.0, %v3705
    %v3707 = vpop.f32.mrb[0].mxu0
    %3708 = vdwg.mxu0
    %3709 = vmatprep.subr.mxu0 0.0
    %3710 = vmatpush1.xpose.msra.mxu0 %v147
    %3711 = vmatprep.subr.mxu0 0.0
    %3712 = vmatpush1.xpose.msra.mxu0 %v148
    %3713 = vmatprep.subr.mxu0 0.0
    %3714 = vmatpush1.xpose.msra.mxu0 0.0
    %3715 = vmatprep.subr.mxu0 0.0
    %3716 = vmatpush1.xpose.msra.mxu0 0.0
    %3717 = vmatprep.subr.mxu0 0.0
    %3718 = vmatpush1.xpose.msra.mxu0 0.0
    %3719 = vmatprep.subr.mxu0 0.0
    %3720 = vmatpush1.xpose.msra.mxu0 0.0
    %3721 = vmatprep.subr.mxu0 0.0
    %3722 = vmatpush1.xpose.msra.mxu0 0.0
    %3723 = vmatprep.subr.mxu0 0.0
    %3724 = vmatpush1.xpose.msra.mxu0 0.0
    %3725 = vmatprep.subr.mxu0 0.0
    %3726 = vmatpush1.xpose.msra.mxu0 0.0
    %3727 = vmatprep.subr.mxu0 0.0
    %3728 = vmatpush1.xpose.msra.mxu0 0.0
    %3729 = vmatprep.subr.mxu0 0.0
    %3730 = vmatpush1.xpose.msra.mxu0 0.0
    %3731 = vmatprep.subr.mxu0 0.0
    %3732 = vmatpush1.xpose.msra.mxu0 0.0
    %3733 = vmatprep.subr.mxu0 0.0
    %3734 = vmatpush1.xpose.msra.mxu0 0.0
    %3735 = vmatprep.subr.mxu0 0.0
    %3736 = vmatpush1.xpose.msra.mxu0 0.0
    %3737 = vmatprep.subr.mxu0 0.0
    %3738 = vmatpush1.xpose.msra.mxu0 0.0
    %3739 = vmatprep.subr.mxu0 0.0
    %3740 = vmatpush1.xpose.msra.mxu0 0.0
    %3741 = vmatprep.subr.mxu0 0.0
    %3742 = vmatpush1.xpose.msra.mxu0 0.0
    %3743 = vmatprep.subr.mxu0 0.0
    %3744 = vmatpush1.xpose.msra.mxu0 0.0
    %3745 = vmatprep.subr.mxu0 0.0
    %3746 = vmatpush1.xpose.msra.mxu0 0.0
    %3747 = vmatprep.subr.mxu0 0.0
    %3748 = vmatpush1.xpose.msra.mxu0 0.0
    %3749 = vmatprep.subr.mxu0 0.0
    %3750 = vmatpush1.xpose.msra.mxu0 0.0
    %3751 = vmatprep.subr.mxu0 0.0
    %3752 = vmatpush1.xpose.msra.mxu0 0.0
    %3753 = vmatprep.subr.mxu0 0.0
    %3754 = vmatpush1.xpose.msra.mxu0 0.0
    %3755 = vmatprep.subr.mxu0 0.0
    %3756 = vmatpush1.xpose.msra.mxu0 0.0
    %3757 = vmatprep.subr.mxu0 0.0
    %3758 = vmatpush1.xpose.msra.mxu0 0.0
    %3759 = vmatprep.subr.mxu0 0.0
    %3760 = vmatpush1.xpose.msra.mxu0 0.0
    %3761 = vmatprep.subr.mxu0 0.0
    %3762 = vmatpush1.xpose.msra.mxu0 0.0
    %3763 = vmatprep.subr.mxu0 0.0
    %3764 = vmatpush1.xpose.msra.mxu0 0.0
    %3765 = vmatprep.subr.mxu0 0.0
    %3766 = vmatpush1.xpose.msra.mxu0 0.0
    %3767 = vmatprep.subr.mxu0 0.0
    %3768 = vmatpush1.xpose.msra.mxu0 0.0
    %3769 = vmatprep.subr.mxu0 0.0
    %3770 = vmatpush1.xpose.msra.mxu0 0.0
    %3771 = vmatprep.subr.mxu0 0.0
    %3772 = vmatpush1.xpose.msra.mxu0 0.0
    %3773 = vmatprep.mubr.f32.mxu0 0.0
    %3774 = vmatmul.mubr.f32.gmra.mrb[0].mxu0 %v2618
    %v3775 = vpop.f32.mrb[0].mxu0
    %v3776 = vadd.f32 0.0, %v3775
    %v3777 = vpop.f32.mrb[0].mxu0
    %3778 = vmatprep.mubr.f32.mxu0 0.0
    %3779 = vmatmul.mubr.f32.gmra.mrb[0].mxu0 %v2620
    %v3780 = vpop.f32.mrb[0].mxu0
    %v3781 = vadd.f32 0.0, %v3780
    %v3782 = vpop.f32.mrb[0].mxu0
    %3783 = vmatprep.mubr.f32.mxu0 0.0
    %3784 = vmatmul.mubr.f32.gmra.mrb[0].mxu0 %v2622
    %v3785 = vpop.f32.mrb[0].mxu0
    %v3786 = vadd.f32 0.0, %v3785
    %v3787 = vpop.f32.mrb[0].mxu0
    %3788 = vmatprep.mubr.f32.mxu0 0.0
    %3789 = vmatmul.mubr.f32.gmra.mrb[0].mxu0 %v2624
    %v3790 = vpop.f32.mrb[0].mxu0
    %v3791 = vadd.f32 0.0, %v3790
    %v3792 = vpop.f32.mrb[0].mxu0
    %3793 = vmatprep.mubr.f32.mxu0 0.0
    %3794 = vmatmul.mubr.f32.gmra.mrb[0].mxu0 %v2626
    %v3795 = vpop.f32.mrb[0].mxu0
    %v3796 = vadd.f32 0.0, %v3795
    %v3797 = vpop.f32.mrb[0].mxu0
    %3798 = vmatprep.mubr.f32.mxu0 0.0
    %3799 = vmatmul.mubr.f32.gmra.mrb[0].mxu0 %v2628
    %v3800 = vpop.f32.mrb[0].mxu0
    %v3801 = vadd.f32 0.0, %v3800
    %v3802 = vpop.f32.mrb[0].mxu0
    %3803 = vmatprep.mubr.f32.mxu0 0.0
    %3804 = vmatmul.mubr.f32.gmra.mrb[0].mxu0 %v2630
    %v3805 = vpop.f32.mrb[0].mxu0
    %v3806 = vadd.f32 0.0, %v3805
    %v3807 = vpop.f32.mrb[0].mxu0
    %3808 = vmatprep.mubr.f32.mxu0 0.0
    %3809 = vmatmul.mubr.f32.gmra.mrb[0].mxu0 %v2632
    %v3810 = vpop.f32.mrb[0].mxu0
    %v3811 = vadd.f32 0.0, %v3810
    %v3812 = vpop.f32.mrb[0].mxu0
    %3813 = vmatprep.mubr.f32.mxu0 0.0
    %3814 = vmatmul.mubr.f32.gmra.mrb[0].mxu0 %v2634
    %v3815 = vpop.f32.mrb[0].mxu0
    %v3816 = vadd.f32 0.0, %v3815
    %v3817 = vpop.f32.mrb[0].mxu0
    %3818 = vmatprep.mubr.f32.mxu0 0.0
    %3819 = vmatmul.mubr.f32.gmra.mrb[0].mxu0 %v2636
    %v3820 = vpop.f32.mrb[0].mxu0
    %v3821 = vadd.f32 0.0, %v3820
    %v3822 = vpop.f32.mrb[0].mxu0
    %3823 = vmatprep.mubr.f32.mxu0 0.0
    %3824 = vmatmul.mubr.f32.gmra.mrb[0].mxu0 %v2638
    %v3825 = vpop.f32.mrb[0].mxu0
    %v3826 = vadd.f32 0.0, %v3825
    %v3827 = vpop.f32.mrb[0].mxu0
    %3828 = vmatprep.mubr.f32.mxu0 0.0
    %3829 = vmatmul.mubr.f32.gmra.mrb[0].mxu0 %v2640
    %v3830 = vpop.f32.mrb[0].mxu0
    %v3831 = vadd.f32 0.0, %v3830
    %v3832 = vpop.f32.mrb[0].mxu0
    %3833 = vmatprep.mubr.f32.mxu0 0.0
    %3834 = vmatmul.mubr.f32.gmra.mrb[0].mxu0 %v2642
    %v3835 = vpop.f32.mrb[0].mxu0
    %v3836 = vadd.f32 0.0, %v3835
    %v3837 = vpop.f32.mrb[0].mxu0
    %3838 = vmatprep.mubr.f32.mxu0 0.0
    %3839 = vmatmul.mubr.f32.gmra.mrb[0].mxu0 %v2644
    %v3840 = vpop.f32.mrb[0].mxu0
    %v3841 = vadd.f32 0.0, %v3840
    %v3842 = vpop.f32.mrb[0].mxu0
    %3843 = vmatprep.mubr.f32.mxu0 0.0
    %3844 = vmatmul.mubr.f32.gmra.mrb[0].mxu0 %v2646
    %v3845 = vpop.f32.mrb[0].mxu0
    %v3846 = vadd.f32 0.0, %v3845
    %v3847 = vpop.f32.mrb[0].mxu0
    %3848 = vmatprep.mubr.f32.mxu0 0.0
    %3849 = vmatmul.mubr.f32.gmra.mrb[0].mxu0 %v2648
    %v3850 = vpop.f32.mrb[0].mxu0
    %v3851 = vadd.f32 0.0, %v3850
    %v3852 = vpop.f32.mrb[0].mxu0
    %3853 = vdwg.mxu0
    %3854 = vmatprep.subr.mxu0 0.0
    %3855 = vmatpush1.xpose.msra.mxu0 %v149
    %3856 = vmatprep.subr.mxu0 0.0
    %3857 = vmatpush1.xpose.msra.mxu0 %v150
    %3858 = vmatprep.subr.mxu0 0.0
    %3859 = vmatpush1.xpose.msra.mxu0 0.0
    %3860 = vmatprep.subr.mxu0 0.0
    %3861 = vmatpush1.xpose.msra.mxu0 0.0
    %3862 = vmatprep.subr.mxu0 0.0
    %3863 = vmatpush1.xpose.msra.mxu0 0.0
    %3864 = vmatprep.subr.mxu0 0.0
    %3865 = vmatpush1.xpose.msra.mxu0 0.0
    %3866 = vmatprep.subr.mxu0 0.0
    %3867 = vmatpush1.xpose.msra.mxu0 0.0
    %3868 = vmatprep.subr.mxu0 0.0
    %3869 = vmatpush1.xpose.msra.mxu0 0.0
    %3870 = vmatprep.subr.mxu0 0.0
    %3871 = vmatpush1.xpose.msra.mxu0 0.0
    %3872 = vmatprep.subr.mxu0 0.0
    %3873 = vmatpush1.xpose.msra.mxu0 0.0
    %3874 = vmatprep.subr.mxu0 0.0
    %3875 = vmatpush1.xpose.msra.mxu0 0.0
    %3876 = vmatprep.subr.mxu0 0.0
    %3877 = vmatpush1.xpose.msra.mxu0 0.0
    %3878 = vmatprep.subr.mxu0 0.0
    %3879 = vmatpush1.xpose.msra.mxu0 0.0
    %3880 = vmatprep.subr.mxu0 0.0
    %3881 = vmatpush1.xpose.msra.mxu0 0.0
    %3882 = vmatprep.subr.mxu0 0.0
    %3883 = vmatpush1.xpose.msra.mxu0 0.0
    %3884 = vmatprep.subr.mxu0 0.0
    %3885 = vmatpush1.xpose.msra.mxu0 0.0
    %3886 = vmatprep.subr.mxu0 0.0
    %3887 = vmatpush1.xpose.msra.mxu0 0.0
    %3888 = vmatprep.subr.mxu0 0.0
    %3889 = vmatpush1.xpose.msra.mxu0 0.0
    %3890 = vmatprep.subr.mxu0 0.0
    %3891 = vmatpush1.xpose.msra.mxu0 0.0
    %3892 = vmatprep.subr.mxu0 0.0
    %3893 = vmatpush1.xpose.msra.mxu0 0.0
    %3894 = vmatprep.subr.mxu0 0.0
    %3895 = vmatpush1.xpose.msra.mxu0 0.0
    %3896 = vmatprep.subr.mxu0 0.0
    %3897 = vmatpush1.xpose.msra.mxu0 0.0
    %3898 = vmatprep.subr.mxu0 0.0
    %3899 = vmatpush1.xpose.msra.mxu0 0.0
    %3900 = vmatprep.subr.mxu0 0.0
    %3901 = vmatpush1.xpose.msra.mxu0 0.0
    %3902 = vmatprep.subr.mxu0 0.0
    %3903 = vmatpush1.xpose.msra.mxu0 0.0
    %3904 = vmatprep.subr.mxu0 0.0
    %3905 = vmatpush1.xpose.msra.mxu0 0.0
    %3906 = vmatprep.subr.mxu0 0.0
    %3907 = vmatpush1.xpose.msra.mxu0 0.0
    %3908 = vmatprep.subr.mxu0 0.0
    %3909 = vmatpush1.xpose.msra.mxu0 0.0
    %3910 = vmatprep.subr.mxu0 0.0
    %3911 = vmatpush1.xpose.msra.mxu0 0.0
    %3912 = vmatprep.subr.mxu0 0.0
    %3913 = vmatpush1.xpose.msra.mxu0 0.0
    %3914 = vmatprep.subr.mxu0 0.0
    %3915 = vmatpush1.xpose.msra.mxu0 0.0
    %3916 = vmatprep.subr.mxu0 0.0
    %3917 = vmatpush1.xpose.msra.mxu0 0.0
    %3918 = vmatprep.mubr.f32.mxu0 0.0
    %3919 = vmatmul.mubr.f32.gmra.mrb[0].mxu0 %v2650
    %v3920 = vpop.f32.mrb[0].mxu0
    %v3921 = vadd.f32 0.0, %v3920
    %v3922 = vpop.f32.mrb[0].mxu0
    %3923 = vmatprep.mubr.f32.mxu0 0.0
    %3924 = vmatmul.mubr.f32.gmra.mrb[0].mxu0 %v2652
    %v3925 = vpop.f32.mrb[0].mxu0
    %v3926 = vadd.f32 0.0, %v3925
    %v3927 = vpop.f32.mrb[0].mxu0
    %3928 = vmatprep.mubr.f32.mxu0 0.0
    %3929 = vmatmul.mubr.f32.gmra.mrb[0].mxu0 %v2654
    %v3930 = vpop.f32.mrb[0].mxu0
    %v3931 = vadd.f32 0.0, %v3930
    %v3932 = vpop.f32.mrb[0].mxu0
    %3933 = vmatprep.mubr.f32.mxu0 0.0
    %3934 = vmatmul.mubr.f32.gmra.mrb[0].mxu0 %v2656
    %v3935 = vpop.f32.mrb[0].mxu0
    %v3936 = vadd.f32 0.0, %v3935
    %v3937 = vpop.f32.mrb[0].mxu0
    %3938 = vmatprep.mubr.f32.mxu0 0.0
    %3939 = vmatmul.mubr.f32.gmra.mrb[0].mxu0 %v2658
    %v3940 = vpop.f32.mrb[0].mxu0
    %v3941 = vadd.f32 0.0, %v3940
    %v3942 = vpop.f32.mrb[0].mxu0
    %3943 = vmatprep.mubr.f32.mxu0 0.0
    %3944 = vmatmul.mubr.f32.gmra.mrb[0].mxu0 %v2660
    %v3945 = vpop.f32.mrb[0].mxu0
    %v3946 = vadd.f32 0.0, %v3945
    %v3947 = vpop.f32.mrb[0].mxu0
    %3948 = vmatprep.mubr.f32.mxu0 0.0
    %3949 = vmatmul.mubr.f32.gmra.mrb[0].mxu0 %v2662
    %v3950 = vpop.f32.mrb[0].mxu0
    %v3951 = vadd.f32 0.0, %v3950
    %v3952 = vpop.f32.mrb[0].mxu0
    %3953 = vmatprep.mubr.f32.mxu0 0.0
    %3954 = vmatmul.mubr.f32.gmra.mrb[0].mxu0 %v2664
    %v3955 = vpop.f32.mrb[0].mxu0
    %v3956 = vadd.f32 0.0, %v3955
    %v3957 = vpop.f32.mrb[0].mxu0
    %3958 = vmatprep.mubr.f32.mxu0 0.0
    %3959 = vmatmul.mubr.f32.gmra.mrb[0].mxu0 %v2666
    %v3960 = vpop.f32.mrb[0].mxu0
    %v3961 = vadd.f32 0.0, %v3960
    %v3962 = vpop.f32.mrb[0].mxu0
    %3963 = vmatprep.mubr.f32.mxu0 0.0
    %3964 = vmatmul.mubr.f32.gmra.mrb[0].mxu0 %v2668
    %v3965 = vpop.f32.mrb[0].mxu0
    %v3966 = vadd.f32 0.0, %v3965
    %v3967 = vpop.f32.mrb[0].mxu0
    %3968 = vmatprep.mubr.f32.mxu0 0.0
    %3969 = vmatmul.mubr.f32.gmra.mrb[0].mxu0 %v2670
    %v3970 = vpop.f32.mrb[0].mxu0
    %v3971 = vadd.f32 0.0, %v3970
    %v3972 = vpop.f32.mrb[0].mxu0
    %3973 = vmatprep.mubr.f32.mxu0 0.0
    %3974 = vmatmul.mubr.f32.gmra.mrb[0].mxu0 %v2672
    %v3975 = vpop.f32.mrb[0].mxu0
    %v3976 = vadd.f32 0.0, %v3975
    %v3977 = vpop.f32.mrb[0].mxu0
    %3978 = vmatprep.mubr.f32.mxu0 0.0
    %3979 = vmatmul.mubr.f32.gmra.mrb[0].mxu0 %v2674
    %v3980 = vpop.f32.mrb[0].mxu0
    %v3981 = vadd.f32 0.0, %v3980
    %v3982 = vpop.f32.mrb[0].mxu0
    %3983 = vmatprep.mubr.f32.mxu0 0.0
    %3984 = vmatmul.mubr.f32.gmra.mrb[0].mxu0 %v2676
    %v3985 = vpop.f32.mrb[0].mxu0
    %v3986 = vadd.f32 0.0, %v3985
    %v3987 = vpop.f32.mrb[0].mxu0
    %3988 = vmatprep.mubr.f32.mxu0 0.0
    %3989 = vmatmul.mubr.f32.gmra.mrb[0].mxu0 %v2678
    %v3990 = vpop.f32.mrb[0].mxu0
    %v3991 = vadd.f32 0.0, %v3990
    %v3992 = vpop.f32.mrb[0].mxu0
    %3993 = vmatprep.mubr.f32.mxu0 0.0
    %3994 = vmatmul.mubr.f32.gmra.mrb[0].mxu0 %v2680
    %v3995 = vpop.f32.mrb[0].mxu0
    %v3996 = vadd.f32 0.0, %v3995
    %v3997 = vpop.f32.mrb[0].mxu0
    %3998 = vdwg.mxu0
    %3999 = vmatprep.subr.mxu0 0.0
    %4000 = vmatpush1.xpose.msra.mxu0 %v151
    %4001 = vmatprep.subr.mxu0 0.0
    %4002 = vmatpush1.xpose.msra.mxu0 %v152
    %4003 = vmatprep.subr.mxu0 0.0
    %4004 = vmatpush1.xpose.msra.mxu0 0.0
    %4005 = vmatprep.subr.mxu0 0.0
    %4006 = vmatpush1.xpose.msra.mxu0 0.0
    %4007 = vmatprep.subr.mxu0 0.0
    %4008 = vmatpush1.xpose.msra.mxu0 0.0
    %4009 = vmatprep.subr.mxu0 0.0
    %4010 = vmatpush1.xpose.msra.mxu0 0.0
    %4011 = vmatprep.subr.mxu0 0.0
    %4012 = vmatpush1.xpose.msra.mxu0 0.0
    %4013 = vmatprep.subr.mxu0 0.0
    %4014 = vmatpush1.xpose.msra.mxu0 0.0
    %4015 = vmatprep.subr.mxu0 0.0
    %4016 = vmatpush1.xpose.msra.mxu0 0.0
    %4017 = vmatprep.subr.mxu0 0.0
    %4018 = vmatpush1.xpose.msra.mxu0 0.0
    %4019 = vmatprep.subr.mxu0 0.0
    %4020 = vmatpush1.xpose.msra.mxu0 0.0
    %4021 = vmatprep.subr.mxu0 0.0
    %4022 = vmatpush1.xpose.msra.mxu0 0.0
    %4023 = vmatprep.subr.mxu0 0.0
    %4024 = vmatpush1.xpose.msra.mxu0 0.0
    %4025 = vmatprep.subr.mxu0 0.0
    %4026 = vmatpush1.xpose.msra.mxu0 0.0
    %4027 = vmatprep.subr.mxu0 0.0
    %4028 = vmatpush1.xpose.msra.mxu0 0.0
    %4029 = vmatprep.subr.mxu0 0.0
    %4030 = vmatpush1.xpose.msra.mxu0 0.0
    %4031 = vmatprep.subr.mxu0 0.0
    %4032 = vmatpush1.xpose.msra.mxu0 0.0
    %4033 = vmatprep.subr.mxu0 0.0
    %4034 = vmatpush1.xpose.msra.mxu0 0.0
    %4035 = vmatprep.subr.mxu0 0.0
    %4036 = vmatpush1.xpose.msra.mxu0 0.0
    %4037 = vmatprep.subr.mxu0 0.0
    %4038 = vmatpush1.xpose.msra.mxu0 0.0
    %4039 = vmatprep.subr.mxu0 0.0
    %4040 = vmatpush1.xpose.msra.mxu0 0.0
    %4041 = vmatprep.subr.mxu0 0.0
    %4042 = vmatpush1.xpose.msra.mxu0 0.0
    %4043 = vmatprep.subr.mxu0 0.0
    %4044 = vmatpush1.xpose.msra.mxu0 0.0
    %4045 = vmatprep.subr.mxu0 0.0
    %4046 = vmatpush1.xpose.msra.mxu0 0.0
    %4047 = vmatprep.subr.mxu0 0.0
    %4048 = vmatpush1.xpose.msra.mxu0 0.0
    %4049 = vmatprep.subr.mxu0 0.0
    %4050 = vmatpush1.xpose.msra.mxu0 0.0
    %4051 = vmatprep.subr.mxu0 0.0
    %4052 = vmatpush1.xpose.msra.mxu0 0.0
    %4053 = vmatprep.subr.mxu0 0.0
    %4054 = vmatpush1.xpose.msra.mxu0 0.0
    %4055 = vmatprep.subr.mxu0 0.0
    %4056 = vmatpush1.xpose.msra.mxu0 0.0
    %4057 = vmatprep.subr.mxu0 0.0
    %4058 = vmatpush1.xpose.msra.mxu0 0.0
    %4059 = vmatprep.subr.mxu0 0.0
    %4060 = vmatpush1.xpose.msra.mxu0 0.0
    %4061 = vmatprep.subr.mxu0 0.0
    %4062 = vmatpush1.xpose.msra.mxu0 0.0
    %4063 = vmatprep.mubr.f32.mxu0 0.0
    %4064 = vmatmul.mubr.f32.gmra.mrb[0].mxu0 %v2682
    %v4065 = vpop.f32.mrb[0].mxu0
    %v4066 = vadd.f32 0.0, %v4065
    %v4067 = vpop.f32.mrb[0].mxu0
    %4068 = vmatprep.mubr.f32.mxu0 0.0
    %4069 = vmatmul.mubr.f32.gmra.mrb[0].mxu0 %v2684
    %v4070 = vpop.f32.mrb[0].mxu0
    %v4071 = vadd.f32 0.0, %v4070
    %v4072 = vpop.f32.mrb[0].mxu0
    %4073 = vmatprep.mubr.f32.mxu0 0.0
    %4074 = vmatmul.mubr.f32.gmra.mrb[0].mxu0 %v2686
    %v4075 = vpop.f32.mrb[0].mxu0
    %v4076 = vadd.f32 0.0, %v4075
    %v4077 = vpop.f32.mrb[0].mxu0
    %4078 = vmatprep.mubr.f32.mxu0 0.0
    %4079 = vmatmul.mubr.f32.gmra.mrb[0].mxu0 %v2688
    %v4080 = vpop.f32.mrb[0].mxu0
    %v4081 = vadd.f32 0.0, %v4080
    %v4082 = vpop.f32.mrb[0].mxu0
    %4083 = vmatprep.mubr.f32.mxu0 0.0
    %4084 = vmatmul.mubr.f32.gmra.mrb[0].mxu0 %v2690
    %v4085 = vpop.f32.mrb[0].mxu0
    %v4086 = vadd.f32 0.0, %v4085
    %v4087 = vpop.f32.mrb[0].mxu0
    %4088 = vmatprep.mubr.f32.mxu0 0.0
    %4089 = vmatmul.mubr.f32.gmra.mrb[0].mxu0 %v2692
    %v4090 = vpop.f32.mrb[0].mxu0
    %v4091 = vadd.f32 0.0, %v4090
    %v4092 = vpop.f32.mrb[0].mxu0
    %4093 = vmatprep.mubr.f32.mxu0 0.0
    %4094 = vmatmul.mubr.f32.gmra.mrb[0].mxu0 %v2694
    %v4095 = vpop.f32.mrb[0].mxu0
    %v4096 = vadd.f32 0.0, %v4095
    %v4097 = vpop.f32.mrb[0].mxu0
    %4098 = vmatprep.mubr.f32.mxu0 0.0
    %4099 = vmatmul.mubr.f32.gmra.mrb[0].mxu0 %v2696
    %v4100 = vpop.f32.mrb[0].mxu0
    %v4101 = vadd.f32 0.0, %v4100
    %v4102 = vpop.f32.mrb[0].mxu0
    %4103 = vmatprep.mubr.f32.mxu0 0.0
    %4104 = vmatmul.mubr.f32.gmra.mrb[0].mxu0 %v2698
    %v4105 = vpop.f32.mrb[0].mxu0
    %v4106 = vadd.f32 0.0, %v4105
    %v4107 = vpop.f32.mrb[0].mxu0
    %4108 = vmatprep.mubr.f32.mxu0 0.0
    %4109 = vmatmul.mubr.f32.gmra.mrb[0].mxu0 %v2700
    %v4110 = vpop.f32.mrb[0].mxu0
    %v4111 = vadd.f32 0.0, %v4110
    %v4112 = vpop.f32.mrb[0].mxu0
    %4113 = vmatprep.mubr.f32.mxu0 0.0
    %4114 = vmatmul.mubr.f32.gmra.mrb[0].mxu0 %v2702
    %v4115 = vpop.f32.mrb[0].mxu0
    %v4116 = vadd.f32 0.0, %v4115
    %v4117 = vpop.f32.mrb[0].mxu0
    %4118 = vmatprep.mubr.f32.mxu0 0.0
    %4119 = vmatmul.mubr.f32.gmra.mrb[0].mxu0 %v2704
    %v4120 = vpop.f32.mrb[0].mxu0
    %v4121 = vadd.f32 0.0, %v4120
    %v4122 = vpop.f32.mrb[0].mxu0
    %4123 = vmatprep.mubr.f32.mxu0 0.0
    %4124 = vmatmul.mubr.f32.gmra.mrb[0].mxu0 %v2706
    %v4125 = vpop.f32.mrb[0].mxu0
    %v4126 = vadd.f32 0.0, %v4125
    %v4127 = vpop.f32.mrb[0].mxu0
    %4128 = vmatprep.mubr.f32.mxu0 0.0
    %4129 = vmatmul.mubr.f32.gmra.mrb[0].mxu0 %v2708
    %v4130 = vpop.f32.mrb[0].mxu0
    %v4131 = vadd.f32 0.0, %v4130
    %v4132 = vpop.f32.mrb[0].mxu0
    %4133 = vmatprep.mubr.f32.mxu0 0.0
    %4134 = vmatmul.mubr.f32.gmra.mrb[0].mxu0 %v2710
    %v4135 = vpop.f32.mrb[0].mxu0
    %v4136 = vadd.f32 0.0, %v4135
    %v4137 = vpop.f32.mrb[0].mxu0
    %4138 = vmatprep.mubr.f32.mxu0 0.0
    %4139 = vmatmul.mubr.f32.gmra.mrb[0].mxu0 %v2712
    %v4140 = vpop.f32.mrb[0].mxu0
    %v4141 = vadd.f32 0.0, %v4140
    %v4142 = vpop.f32.mrb[0].mxu0
    %4143 = vdwg.mxu0
    %4144 = vmatprep.subr.mxu0 0.0
    %4145 = vmatpush1.xpose.msra.mxu0 %v153
    %4146 = vmatprep.subr.mxu0 0.0
    %4147 = vmatpush1.xpose.msra.mxu0 %v154
    %4148 = vmatprep.subr.mxu0 0.0
    %4149 = vmatpush1.xpose.msra.mxu0 0.0
    %4150 = vmatprep.subr.mxu0 0.0
    %4151 = vmatpush1.xpose.msra.mxu0 0.0
    %4152 = vmatprep.subr.mxu0 0.0
    %4153 = vmatpush1.xpose.msra.mxu0 0.0
    %4154 = vmatprep.subr.mxu0 0.0
    %4155 = vmatpush1.xpose.msra.mxu0 0.0
    %4156 = vmatprep.subr.mxu0 0.0
    %4157 = vmatpush1.xpose.msra.mxu0 0.0
    %4158 = vmatprep.subr.mxu0 0.0
    %4159 = vmatpush1.xpose.msra.mxu0 0.0
    %4160 = vmatprep.subr.mxu0 0.0
    %4161 = vmatpush1.xpose.msra.mxu0 0.0
    %4162 = vmatprep.subr.mxu0 0.0
    %4163 = vmatpush1.xpose.msra.mxu0 0.0
    %4164 = vmatprep.subr.mxu0 0.0
    %4165 = vmatpush1.xpose.msra.mxu0 0.0
    %4166 = vmatprep.subr.mxu0 0.0
    %4167 = vmatpush1.xpose.msra.mxu0 0.0
    %4168 = vmatprep.subr.mxu0 0.0
    %4169 = vmatpush1.xpose.msra.mxu0 0.0
    %4170 = vmatprep.subr.mxu0 0.0
    %4171 = vmatpush1.xpose.msra.mxu0 0.0
    %4172 = vmatprep.subr.mxu0 0.0
    %4173 = vmatpush1.xpose.msra.mxu0 0.0
    %4174 = vmatprep.subr.mxu0 0.0
    %4175 = vmatpush1.xpose.msra.mxu0 0.0
    %4176 = vmatprep.subr.mxu0 0.0
    %4177 = vmatpush1.xpose.msra.mxu0 0.0
    %4178 = vmatprep.subr.mxu0 0.0
    %4179 = vmatpush1.xpose.msra.mxu0 0.0
    %4180 = vmatprep.subr.mxu0 0.0
    %4181 = vmatpush1.xpose.msra.mxu0 0.0
    %4182 = vmatprep.subr.mxu0 0.0
    %4183 = vmatpush1.xpose.msra.mxu0 0.0
    %4184 = vmatprep.subr.mxu0 0.0
    %4185 = vmatpush1.xpose.msra.mxu0 0.0
    %4186 = vmatprep.subr.mxu0 0.0
    %4187 = vmatpush1.xpose.msra.mxu0 0.0
    %4188 = vmatprep.subr.mxu0 0.0
    %4189 = vmatpush1.xpose.msra.mxu0 0.0
    %4190 = vmatprep.subr.mxu0 0.0
    %4191 = vmatpush1.xpose.msra.mxu0 0.0
    %4192 = vmatprep.subr.mxu0 0.0
    %4193 = vmatpush1.xpose.msra.mxu0 0.0
    %4194 = vmatprep.subr.mxu0 0.0
    %4195 = vmatpush1.xpose.msra.mxu0 0.0
    %4196 = vmatprep.subr.mxu0 0.0
    %4197 = vmatpush1.xpose.msra.mxu0 0.0
    %4198 = vmatprep.subr.mxu0 0.0
    %4199 = vmatpush1.xpose.msra.mxu0 0.0
    %4200 = vmatprep.subr.mxu0 0.0
    %4201 = vmatpush1.xpose.msra.mxu0 0.0
    %4202 = vmatprep.subr.mxu0 0.0
    %4203 = vmatpush1.xpose.msra.mxu0 0.0
    %4204 = vmatprep.subr.mxu0 0.0
    %4205 = vmatpush1.xpose.msra.mxu0 0.0
    %4206 = vmatprep.subr.mxu0 0.0
    %4207 = vmatpush1.xpose.msra.mxu0 0.0
    %4208 = vmatprep.mubr.f32.mxu0 0.0
    %4209 = vmatmul.mubr.f32.gmra.mrb[0].mxu0 %v2714
    %v4210 = vpop.f32.mrb[0].mxu0
    %v4211 = vadd.f32 0.0, %v4210
    %v4212 = vpop.f32.mrb[0].mxu0
    %4213 = vmatprep.mubr.f32.mxu0 0.0
    %4214 = vmatmul.mubr.f32.gmra.mrb[0].mxu0 %v2716
    %v4215 = vpop.f32.mrb[0].mxu0
    %v4216 = vadd.f32 0.0, %v4215
    %v4217 = vpop.f32.mrb[0].mxu0
    %4218 = vmatprep.mubr.f32.mxu0 0.0
    %4219 = vmatmul.mubr.f32.gmra.mrb[0].mxu0 %v2718
    %v4220 = vpop.f32.mrb[0].mxu0
    %v4221 = vadd.f32 0.0, %v4220
    %v4222 = vpop.f32.mrb[0].mxu0
    %4223 = vmatprep.mubr.f32.mxu0 0.0
    %4224 = vmatmul.mubr.f32.gmra.mrb[0].mxu0 %v2720
    %v4225 = vpop.f32.mrb[0].mxu0
    %v4226 = vadd.f32 0.0, %v4225
    %v4227 = vpop.f32.mrb[0].mxu0
    %4228 = vmatprep.mubr.f32.mxu0 0.0
    %4229 = vmatmul.mubr.f32.gmra.mrb[0].mxu0 %v2722
    %v4230 = vpop.f32.mrb[0].mxu0
    %v4231 = vadd.f32 0.0, %v4230
    %v4232 = vpop.f32.mrb[0].mxu0
    %4233 = vmatprep.mubr.f32.mxu0 0.0
    %4234 = vmatmul.mubr.f32.gmra.mrb[0].mxu0 %v2724
    %v4235 = vpop.f32.mrb[0].mxu0
    %v4236 = vadd.f32 0.0, %v4235
    %v4237 = vpop.f32.mrb[0].mxu0
    %4238 = vmatprep.mubr.f32.mxu0 0.0
    %4239 = vmatmul.mubr.f32.gmra.mrb[0].mxu0 %v2726
    %v4240 = vpop.f32.mrb[0].mxu0
    %v4241 = vadd.f32 0.0, %v4240
    %v4242 = vpop.f32.mrb[0].mxu0
    %4243 = vmatprep.mubr.f32.mxu0 0.0
    %4244 = vmatmul.mubr.f32.gmra.mrb[0].mxu0 %v2728
    %v4245 = vpop.f32.mrb[0].mxu0
    %v4246 = vadd.f32 0.0, %v4245
    %v4247 = vpop.f32.mrb[0].mxu0
    %4248 = vmatprep.mubr.f32.mxu0 0.0
    %4249 = vmatmul.mubr.f32.gmra.mrb[0].mxu0 %v2730
    %v4250 = vpop.f32.mrb[0].mxu0
    %v4251 = vadd.f32 0.0, %v4250
    %v4252 = vpop.f32.mrb[0].mxu0
    %4253 = vmatprep.mubr.f32.mxu0 0.0
    %4254 = vmatmul.mubr.f32.gmra.mrb[0].mxu0 %v2732
    %v4255 = vpop.f32.mrb[0].mxu0
    %v4256 = vadd.f32 0.0, %v4255
    %v4257 = vpop.f32.mrb[0].mxu0
    %4258 = vmatprep.mubr.f32.mxu0 0.0
    %4259 = vmatmul.mubr.f32.gmra.mrb[0].mxu0 %v2734
    %v4260 = vpop.f32.mrb[0].mxu0
    %v4261 = vadd.f32 0.0, %v4260
    %v4262 = vpop.f32.mrb[0].mxu0
    %4263 = vmatprep.mubr.f32.mxu0 0.0
    %4264 = vmatmul.mubr.f32.gmra.mrb[0].mxu0 %v2736
    %v4265 = vpop.f32.mrb[0].mxu0
    %v4266 = vadd.f32 0.0, %v4265
    %v4267 = vpop.f32.mrb[0].mxu0
    %4268 = vmatprep.mubr.f32.mxu0 0.0
    %4269 = vmatmul.mubr.f32.gmra.mrb[0].mxu0 %v2738
    %v4270 = vpop.f32.mrb[0].mxu0
    %v4271 = vadd.f32 0.0, %v4270
    %v4272 = vpop.f32.mrb[0].mxu0
    %4273 = vmatprep.mubr.f32.mxu0 0.0
    %4274 = vmatmul.mubr.f32.gmra.mrb[0].mxu0 %v2740
    %v4275 = vpop.f32.mrb[0].mxu0
    %v4276 = vadd.f32 0.0, %v4275
    %v4277 = vpop.f32.mrb[0].mxu0
    %4278 = vmatprep.mubr.f32.mxu0 0.0
    %4279 = vmatmul.mubr.f32.gmra.mrb[0].mxu0 %v2742
    %v4280 = vpop.f32.mrb[0].mxu0
    %v4281 = vadd.f32 0.0, %v4280
    %v4282 = vpop.f32.mrb[0].mxu0
    %4283 = vmatprep.mubr.f32.mxu0 0.0
    %4284 = vmatmul.mubr.f32.gmra.mrb[0].mxu0 %v2744
    %v4285 = vpop.f32.mrb[0].mxu0
    %v4286 = vadd.f32 0.0, %v4285
    %v4287 = vpop.f32.mrb[0].mxu0
    %4288 = vdwg.mxu0
    %v4289 = vmul.f32 %v3196, %v3001
    %v4290 = vmul.f32 %v3201, %v3002
    %v4291 = vmul.f32 %v3206, %v3003
    %v4292 = vmul.f32 %v3211, %v3004
    %v4293 = vmul.f32 %v3216, %v3005
    %v4294 = vmul.f32 %v3221, %v3006
    %v4295 = vmul.f32 %v3226, %v3007
    %v4296 = vmul.f32 %v3231, %v3008
    %v4297 = vmul.f32 %v3236, %v3009
    %v4298 = vmul.f32 %v3241, %v3010
    %v4299 = vmul.f32 %v3246, %v3011
    %v4300 = vmul.f32 %v3251, %v3012
    %v4301 = vmul.f32 %v3256, %v3013
    %v4302 = vmul.f32 %v3261, %v3014
    %v4303 = vmul.f32 %v3266, %v3015
    %v4304 = vmul.f32 %v3271, %v3016
    %v4305 = vmul.f32 %v3341, %v3017
    %v4306 = vmul.f32 %v3346, %v3018
    %v4307 = vmul.f32 %v3351, %v3019
    %v4308 = vmul.f32 %v3356, %v3020
    %v4309 = vmul.f32 %v3361, %v3021
    %v4310 = vmul.f32 %v3366, %v3022
    %v4311 = vmul.f32 %v3371, %v3023
    %v4312 = vmul.f32 %v3376, %v3024
    %v4313 = vmul.f32 %v3381, %v3025
    %v4314 = vmul.f32 %v3386, %v3026
    %v4315 = vmul.f32 %v3391, %v3027
    %v4316 = vmul.f32 %v3396, %v3028
    %v4317 = vmul.f32 %v3401, %v3029
    %v4318 = vmul.f32 %v3406, %v3030
    %v4319 = vmul.f32 %v3411, %v3031
    %v4320 = vmul.f32 %v3416, %v3032
    %v4321 = vmul.f32 %v3486, %v3033
    %v4322 = vmul.f32 %v3491, %v3034
    %v4323 = vmul.f32 %v3496, %v3035
    %v4324 = vmul.f32 %v3501, %v3036
    %v4325 = vmul.f32 %v3506, %v3037
    %v4326 = vmul.f32 %v3511, %v3038
    %v4327 = vmul.f32 %v3516, %v3039
    %v4328 = vmul.f32 %v3521, %v3040
    %v4329 = vmul.f32 %v3526, %v3041
    %v4330 = vmul.f32 %v3531, %v3042
    %v4331 = vmul.f32 %v3536, %v3043
    %v4332 = vmul.f32 %v3541, %v3044
    %v4333 = vmul.f32 %v3546, %v3045
    %v4334 = vmul.f32 %v3551, %v3046
    %v4335 = vmul.f32 %v3556, %v3047
    %v4336 = vmul.f32 %v3561, %v3048
    %v4337 = vmul.f32 %v3631, %v3049
    %v4338 = vmul.f32 %v3636, %v3050
    %v4339 = vmul.f32 %v3641, %v3051
    %v4340 = vmul.f32 %v3646, %v3052
    %v4341 = vmul.f32 %v3651, %v3053
    %v4342 = vmul.f32 %v3656, %v3054
    %v4343 = vmul.f32 %v3661, %v3055
    %v4344 = vmul.f32 %v3666, %v3056
    %v4345 = vmul.f32 %v3671, %v3057
    %v4346 = vmul.f32 %v3676, %v3058
    %v4347 = vmul.f32 %v3681, %v3059
    %v4348 = vmul.f32 %v3686, %v3060
    %v4349 = vmul.f32 %v3691, %v3061
    %v4350 = vmul.f32 %v3696, %v3062
    %v4351 = vmul.f32 %v3701, %v3063
    %v4352 = vmul.f32 %v3706, %v3064
    %v4353 = vmul.f32 %v3776, %v3065
    %v4354 = vmul.f32 %v3781, %v3066
    %v4355 = vmul.f32 %v3786, %v3067
    %v4356 = vmul.f32 %v3791, %v3068
    %v4357 = vmul.f32 %v3796, %v3069
    %v4358 = vmul.f32 %v3801, %v3070
    %v4359 = vmul.f32 %v3806, %v3071
    %v4360 = vmul.f32 %v3811, %v3072
    %v4361 = vmul.f32 %v3816, %v3073
    %v4362 = vmul.f32 %v3821, %v3074
    %v4363 = vmul.f32 %v3826, %v3075
    %v4364 = vmul.f32 %v3831, %v3076
    %v4365 = vmul.f32 %v3836, %v3077
    %v4366 = vmul.f32 %v3841, %v3078
    %v4367 = vmul.f32 %v3846, %v3079
    %v4368 = vmul.f32 %v3851, %v3080
    %v4369 = vmul.f32 %v3921, %v3081
    %v4370 = vmul.f32 %v3926, %v3082
    %v4371 = vmul.f32 %v3931, %v3083
    %v4372 = vmul.f32 %v3936, %v3084
    %v4373 = vmul.f32 %v3941, %v3085
    %v4374 = vmul.f32 %v3946, %v3086
    %v4375 = vmul.f32 %v3951, %v3087
    %v4376 = vmul.f32 %v3956, %v3088
    %v4377 = vmul.f32 %v3961, %v3089
    %v4378 = vmul.f32 %v3966, %v3090
    %v4379 = vmul.f32 %v3971, %v3091
    %v4380 = vmul.f32 %v3976, %v3092
    %v4381 = vmul.f32 %v3981, %v3093
    %v4382 = vmul.f32 %v3986, %v3094
    %v4383 = vmul.f32 %v3991, %v3095
    %v4384 = vmul.f32 %v3996, %v3096
    %v4385 = vmul.f32 %v4066, %v3097
    %v4386 = vmul.f32 %v4071, %v3098
    %v4387 = vmul.f32 %v4076, %v3099
    %v4388 = vmul.f32 %v4081, %v3100
    %v4389 = vmul.f32 %v4086, %v3101
    %v4390 = vmul.f32 %v4091, %v3102
    %v4391 = vmul.f32 %v4096, %v3103
    %v4392 = vmul.f32 %v4101, %v3104
    %v4393 = vmul.f32 %v4106, %v3105
    %v4394 = vmul.f32 %v4111, %v3106
    %v4395 = vmul.f32 %v4116, %v3107
    %v4396 = vmul.f32 %v4121, %v3108
    %v4397 = vmul.f32 %v4126, %v3109
    %v4398 = vmul.f32 %v4131, %v3110
    %v4399 = vmul.f32 %v4136, %v3111
    %v4400 = vmul.f32 %v4141, %v3112
    %v4401 = vmul.f32 %v4211, %v3113
    %v4402 = vmul.f32 %v4216, %v3114
    %v4403 = vmul.f32 %v4221, %v3115
    %v4404 = vmul.f32 %v4226, %v3116
    %v4405 = vmul.f32 %v4231, %v3117
    %v4406 = vmul.f32 %v4236, %v3118
    %v4407 = vmul.f32 %v4241, %v3119
    %v4408 = vmul.f32 %v4246, %v3120
    %v4409 = vmul.f32 %v4251, %v3121
    %v4410 = vmul.f32 %v4256, %v3122
    %v4411 = vmul.f32 %v4261, %v3123
    %v4412 = vmul.f32 %v4266, %v3124
    %v4413 = vmul.f32 %v4271, %v3125
    %v4414 = vmul.f32 %v4276, %v3126
    %v4415 = vmul.f32 %v4281, %v3127
    %v4416 = vmul.f32 %v4286, %v3128
    %4417 = vxpose.xlu0.b32.start [1/16] %v4289, 128
    %4418 = vxpose.xlu0.b32.cont [2/16] %v4290, 128
    %4419 = vxpose.xlu0.b32.cont [3/16] %v4291, 128
    %4420 = vxpose.xlu0.b32.cont [4/16] %v4292, 128
    %4421 = vxpose.xlu0.b32.cont [5/16] %v4293, 128
    %4422 = vxpose.xlu0.b32.cont [6/16] %v4294, 128
    %4423 = vxpose.xlu0.b32.cont [7/16] %v4295, 128
    %4424 = vxpose.xlu0.b32.cont [8/16] %v4296, 128
    %4425 = vxpose.xlu0.b32.cont [9/16] %v4297, 128
    %4426 = vxpose.xlu0.b32.cont [10/16] %v4298, 128
    %4427 = vxpose.xlu0.b32.cont [11/16] %v4299, 128
    %4428 = vxpose.xlu0.b32.cont [12/16] %v4300, 128
    %4429 = vxpose.xlu0.b32.cont [13/16] %v4301, 128
    %4430 = vxpose.xlu0.b32.cont [14/16] %v4302, 128
    %4431 = vxpose.xlu0.b32.cont [15/16] %v4303, 128
    %4432 = vxpose.xlu0.b32.end [16/16] %v4304, 128
    %v4433 = vpop.trf.xlu0
    %v4434 = vpop.trf.xlu0
    %v4435 = vpop.trf.xlu0
    %v4436 = vpop.trf.xlu0
    %v4437 = vpop.trf.xlu0
    %v4438 = vpop.trf.xlu0
    %v4439 = vpop.trf.xlu0
    %v4440 = vpop.trf.xlu0
    %v4441 = vpop.trf.xlu0
    %v4442 = vpop.trf.xlu0
    %v4443 = vpop.trf.xlu0
    %v4444 = vpop.trf.xlu0
    %v4445 = vpop.trf.xlu0
    %v4446 = vpop.trf.xlu0
    %v4447 = vpop.trf.xlu0
    %v4448 = vpop.trf.xlu0
    %4449 = vxpose.xlu0.b32.start [1/16] %v4305, 128
    %4450 = vxpose.xlu0.b32.cont [2/16] %v4306, 128
    %4451 = vxpose.xlu0.b32.cont [3/16] %v4307, 128
    %4452 = vxpose.xlu0.b32.cont [4/16] %v4308, 128
    %4453 = vxpose.xlu0.b32.cont [5/16] %v4309, 128
    %4454 = vxpose.xlu0.b32.cont [6/16] %v4310, 128
    %4455 = vxpose.xlu0.b32.cont [7/16] %v4311, 128
    %4456 = vxpose.xlu0.b32.cont [8/16] %v4312, 128
    %4457 = vxpose.xlu0.b32.cont [9/16] %v4313, 128
    %4458 = vxpose.xlu0.b32.cont [10/16] %v4314, 128
    %4459 = vxpose.xlu0.b32.cont [11/16] %v4315, 128
    %4460 = vxpose.xlu0.b32.cont [12/16] %v4316, 128
    %4461 = vxpose.xlu0.b32.cont [13/16] %v4317, 128
    %4462 = vxpose.xlu0.b32.cont [14/16] %v4318, 128
    %4463 = vxpose.xlu0.b32.cont [15/16] %v4319, 128
    %4464 = vxpose.xlu0.b32.end [16/16] %v4320, 128
    %v4465 = vpop.trf.xlu0
    %v4466 = vpop.trf.xlu0
    %v4467 = vpop.trf.xlu0
    %v4468 = vpop.trf.xlu0
    %v4469 = vpop.trf.xlu0
    %v4470 = vpop.trf.xlu0
    %v4471 = vpop.trf.xlu0
    %v4472 = vpop.trf.xlu0
    %v4473 = vpop.trf.xlu0
    %v4474 = vpop.trf.xlu0
    %v4475 = vpop.trf.xlu0
    %v4476 = vpop.trf.xlu0
    %v4477 = vpop.trf.xlu0
    %v4478 = vpop.trf.xlu0
    %v4479 = vpop.trf.xlu0
    %v4480 = vpop.trf.xlu0
    %4481 = vxpose.xlu0.b32.start [1/16] %v4321, 128
    %4482 = vxpose.xlu0.b32.cont [2/16] %v4322, 128
    %4483 = vxpose.xlu0.b32.cont [3/16] %v4323, 128
    %4484 = vxpose.xlu0.b32.cont [4/16] %v4324, 128
    %4485 = vxpose.xlu0.b32.cont [5/16] %v4325, 128
    %4486 = vxpose.xlu0.b32.cont [6/16] %v4326, 128
    %4487 = vxpose.xlu0.b32.cont [7/16] %v4327, 128
    %4488 = vxpose.xlu0.b32.cont [8/16] %v4328, 128
    %4489 = vxpose.xlu0.b32.cont [9/16] %v4329, 128
    %4490 = vxpose.xlu0.b32.cont [10/16] %v4330, 128
    %4491 = vxpose.xlu0.b32.cont [11/16] %v4331, 128
    %4492 = vxpose.xlu0.b32.cont [12/16] %v4332, 128
    %4493 = vxpose.xlu0.b32.cont [13/16] %v4333, 128
    %4494 = vxpose.xlu0.b32.cont [14/16] %v4334, 128
    %4495 = vxpose.xlu0.b32.cont [15/16] %v4335, 128
    %4496 = vxpose.xlu0.b32.end [16/16] %v4336, 128
    %v4497 = vpop.trf.xlu0
    %v4498 = vpop.trf.xlu0
    %v4499 = vpop.trf.xlu0
    %v4500 = vpop.trf.xlu0
    %v4501 = vpop.trf.xlu0
    %v4502 = vpop.trf.xlu0
    %v4503 = vpop.trf.xlu0
    %v4504 = vpop.trf.xlu0
    %v4505 = vpop.trf.xlu0
    %v4506 = vpop.trf.xlu0
    %v4507 = vpop.trf.xlu0
    %v4508 = vpop.trf.xlu0
    %v4509 = vpop.trf.xlu0
    %v4510 = vpop.trf.xlu0
    %v4511 = vpop.trf.xlu0
    %v4512 = vpop.trf.xlu0
    %4513 = vxpose.xlu0.b32.start [1/16] %v4337, 128
    %4514 = vxpose.xlu0.b32.cont [2/16] %v4338, 128
    %4515 = vxpose.xlu0.b32.cont [3/16] %v4339, 128
    %4516 = vxpose.xlu0.b32.cont [4/16] %v4340, 128
    %4517 = vxpose.xlu0.b32.cont [5/16] %v4341, 128
    %4518 = vxpose.xlu0.b32.cont [6/16] %v4342, 128
    %4519 = vxpose.xlu0.b32.cont [7/16] %v4343, 128
    %4520 = vxpose.xlu0.b32.cont [8/16] %v4344, 128
    %4521 = vxpose.xlu0.b32.cont [9/16] %v4345, 128
    %4522 = vxpose.xlu0.b32.cont [10/16] %v4346, 128
    %4523 = vxpose.xlu0.b32.cont [11/16] %v4347, 128
    %4524 = vxpose.xlu0.b32.cont [12/16] %v4348, 128
    %4525 = vxpose.xlu0.b32.cont [13/16] %v4349, 128
    %4526 = vxpose.xlu0.b32.cont [14/16] %v4350, 128
    %4527 = vxpose.xlu0.b32.cont [15/16] %v4351, 128
    %4528 = vxpose.xlu0.b32.end [16/16] %v4352, 128
    %v4529 = vpop.trf.xlu0
    %v4530 = vpop.trf.xlu0
    %v4531 = vpop.trf.xlu0
    %v4532 = vpop.trf.xlu0
    %v4533 = vpop.trf.xlu0
    %v4534 = vpop.trf.xlu0
    %v4535 = vpop.trf.xlu0
    %v4536 = vpop.trf.xlu0
    %v4537 = vpop.trf.xlu0
    %v4538 = vpop.trf.xlu0
    %v4539 = vpop.trf.xlu0
    %v4540 = vpop.trf.xlu0
    %v4541 = vpop.trf.xlu0
    %v4542 = vpop.trf.xlu0
    %v4543 = vpop.trf.xlu0
    %v4544 = vpop.trf.xlu0
    %4545 = vxpose.xlu0.b32.start [1/16] %v4353, 128
    %4546 = vxpose.xlu0.b32.cont [2/16] %v4354, 128
    %4547 = vxpose.xlu0.b32.cont [3/16] %v4355, 128
    %4548 = vxpose.xlu0.b32.cont [4/16] %v4356, 128
    %4549 = vxpose.xlu0.b32.cont [5/16] %v4357, 128
    %4550 = vxpose.xlu0.b32.cont [6/16] %v4358, 128
    %4551 = vxpose.xlu0.b32.cont [7/16] %v4359, 128
    %4552 = vxpose.xlu0.b32.cont [8/16] %v4360, 128
    %4553 = vxpose.xlu0.b32.cont [9/16] %v4361, 128
    %4554 = vxpose.xlu0.b32.cont [10/16] %v4362, 128
    %4555 = vxpose.xlu0.b32.cont [11/16] %v4363, 128
    %4556 = vxpose.xlu0.b32.cont [12/16] %v4364, 128
    %4557 = vxpose.xlu0.b32.cont [13/16] %v4365, 128
    %4558 = vxpose.xlu0.b32.cont [14/16] %v4366, 128
    %4559 = vxpose.xlu0.b32.cont [15/16] %v4367, 128
    %4560 = vxpose.xlu0.b32.end [16/16] %v4368, 128
    %v4561 = vpop.trf.xlu0
    %v4562 = vpop.trf.xlu0
    %v4563 = vpop.trf.xlu0
    %v4564 = vpop.trf.xlu0
    %v4565 = vpop.trf.xlu0
    %v4566 = vpop.trf.xlu0
    %v4567 = vpop.trf.xlu0
    %v4568 = vpop.trf.xlu0
    %v4569 = vpop.trf.xlu0
    %v4570 = vpop.trf.xlu0
    %v4571 = vpop.trf.xlu0
    %v4572 = vpop.trf.xlu0
    %v4573 = vpop.trf.xlu0
    %v4574 = vpop.trf.xlu0
    %v4575 = vpop.trf.xlu0
    %v4576 = vpop.trf.xlu0
    %4577 = vxpose.xlu0.b32.start [1/16] %v4369, 128
    %4578 = vxpose.xlu0.b32.cont [2/16] %v4370, 128
    %4579 = vxpose.xlu0.b32.cont [3/16] %v4371, 128
    %4580 = vxpose.xlu0.b32.cont [4/16] %v4372, 128
    %4581 = vxpose.xlu0.b32.cont [5/16] %v4373, 128
    %4582 = vxpose.xlu0.b32.cont [6/16] %v4374, 128
    %4583 = vxpose.xlu0.b32.cont [7/16] %v4375, 128
    %4584 = vxpose.xlu0.b32.cont [8/16] %v4376, 128
    %4585 = vxpose.xlu0.b32.cont [9/16] %v4377, 128
    %4586 = vxpose.xlu0.b32.cont [10/16] %v4378, 128
    %4587 = vxpose.xlu0.b32.cont [11/16] %v4379, 128
    %4588 = vxpose.xlu0.b32.cont [12/16] %v4380, 128
    %4589 = vxpose.xlu0.b32.cont [13/16] %v4381, 128
    %4590 = vxpose.xlu0.b32.cont [14/16] %v4382, 128
    %4591 = vxpose.xlu0.b32.cont [15/16] %v4383, 128
    %4592 = vxpose.xlu0.b32.end [16/16] %v4384, 128
    %v4593 = vpop.trf.xlu0
    %v4594 = vpop.trf.xlu0
    %v4595 = vpop.trf.xlu0
    %v4596 = vpop.trf.xlu0
    %v4597 = vpop.trf.xlu0
    %v4598 = vpop.trf.xlu0
    %v4599 = vpop.trf.xlu0
    %v4600 = vpop.trf.xlu0
    %v4601 = vpop.trf.xlu0
    %v4602 = vpop.trf.xlu0
    %v4603 = vpop.trf.xlu0
    %v4604 = vpop.trf.xlu0
    %v4605 = vpop.trf.xlu0
    %v4606 = vpop.trf.xlu0
    %v4607 = vpop.trf.xlu0
    %v4608 = vpop.trf.xlu0
    %4609 = vxpose.xlu0.b32.start [1/16] %v4385, 128
    %4610 = vxpose.xlu0.b32.cont [2/16] %v4386, 128
    %4611 = vxpose.xlu0.b32.cont [3/16] %v4387, 128
    %4612 = vxpose.xlu0.b32.cont [4/16] %v4388, 128
    %4613 = vxpose.xlu0.b32.cont [5/16] %v4389, 128
    %4614 = vxpose.xlu0.b32.cont [6/16] %v4390, 128
    %4615 = vxpose.xlu0.b32.cont [7/16] %v4391, 128
    %4616 = vxpose.xlu0.b32.cont [8/16] %v4392, 128
    %4617 = vxpose.xlu0.b32.cont [9/16] %v4393, 128
    %4618 = vxpose.xlu0.b32.cont [10/16] %v4394, 128
    %4619 = vxpose.xlu0.b32.cont [11/16] %v4395, 128
    %4620 = vxpose.xlu0.b32.cont [12/16] %v4396, 128
    %4621 = vxpose.xlu0.b32.cont [13/16] %v4397, 128
    %4622 = vxpose.xlu0.b32.cont [14/16] %v4398, 128
    %4623 = vxpose.xlu0.b32.cont [15/16] %v4399, 128
    %4624 = vxpose.xlu0.b32.end [16/16] %v4400, 128
    %v4625 = vpop.trf.xlu0
    %v4626 = vpop.trf.xlu0
    %v4627 = vpop.trf.xlu0
    %v4628 = vpop.trf.xlu0
    %v4629 = vpop.trf.xlu0
    %v4630 = vpop.trf.xlu0
    %v4631 = vpop.trf.xlu0
    %v4632 = vpop.trf.xlu0
    %v4633 = vpop.trf.xlu0
    %v4634 = vpop.trf.xlu0
    %v4635 = vpop.trf.xlu0
    %v4636 = vpop.trf.xlu0
    %v4637 = vpop.trf.xlu0
    %v4638 = vpop.trf.xlu0
    %v4639 = vpop.trf.xlu0
    %v4640 = vpop.trf.xlu0
    %4641 = vxpose.xlu0.b32.start [1/16] %v4401, 128
    %4642 = vxpose.xlu0.b32.cont [2/16] %v4402, 128
    %4643 = vxpose.xlu0.b32.cont [3/16] %v4403, 128
    %4644 = vxpose.xlu0.b32.cont [4/16] %v4404, 128
    %4645 = vxpose.xlu0.b32.cont [5/16] %v4405, 128
    %4646 = vxpose.xlu0.b32.cont [6/16] %v4406, 128
    %4647 = vxpose.xlu0.b32.cont [7/16] %v4407, 128
    %4648 = vxpose.xlu0.b32.cont [8/16] %v4408, 128
    %4649 = vxpose.xlu0.b32.cont [9/16] %v4409, 128
    %4650 = vxpose.xlu0.b32.cont [10/16] %v4410, 128
    %4651 = vxpose.xlu0.b32.cont [11/16] %v4411, 128
    %4652 = vxpose.xlu0.b32.cont [12/16] %v4412, 128
    %4653 = vxpose.xlu0.b32.cont [13/16] %v4413, 128
    %4654 = vxpose.xlu0.b32.cont [14/16] %v4414, 128
    %4655 = vxpose.xlu0.b32.cont [15/16] %v4415, 128
    %4656 = vxpose.xlu0.b32.end [16/16] %v4416, 128
    %v4657 = vpop.trf.xlu0
    %v4658 = vpop.trf.xlu0
    %v4659 = vpop.trf.xlu0
    %v4660 = vpop.trf.xlu0
    %v4661 = vpop.trf.xlu0
    %v4662 = vpop.trf.xlu0
    %v4663 = vpop.trf.xlu0
    %v4664 = vpop.trf.xlu0
    %v4665 = vpop.trf.xlu0
    %v4666 = vpop.trf.xlu0
    %v4667 = vpop.trf.xlu0
    %v4668 = vpop.trf.xlu0
    %v4669 = vpop.trf.xlu0
    %v4670 = vpop.trf.xlu0
    %v4671 = vpop.trf.xlu0
    %v4672 = vpop.trf.xlu0
    %4673 = vst [vmem:[#allocation8] sm:$0xff] %v4433
    %4674 = vst [vmem:[#allocation8 + $0x8] sm:$0xff] %v4434
    %4675 = vst [vmem:[#allocation8 + $0x10] sm:$0xff] %v4465
    %4676 = vst [vmem:[#allocation8 + $0x18] sm:$0xff] %v4466
    %4677 = vst [vmem:[#allocation8 + $0x20] sm:$0xff] %v4497
    %4678 = vst [vmem:[#allocation8 + $0x28] sm:$0xff] %v4498
    %4679 = vst [vmem:[#allocation8 + $0x30] sm:$0xff] %v4529
    %4680 = vst [vmem:[#allocation8 + $0x38] sm:$0xff] %v4530
    %4681 = vst [vmem:[#allocation8 + $0x40] sm:$0xff] %v4561
    %4682 = vst [vmem:[#allocation8 + $0x48] sm:$0xff] %v4562
    %4683 = vst [vmem:[#allocation8 + $0x50] sm:$0xff] %v4593
    %4684 = vst [vmem:[#allocation8 + $0x58] sm:$0xff] %v4594
    %4685 = vst [vmem:[#allocation8 + $0x60] sm:$0xff] %v4625
    %4686 = vst [vmem:[#allocation8 + $0x68] sm:$0xff] %v4626
    %4687 = vst [vmem:[#allocation8 + $0x70] sm:$0xff] %v4657
    %4688 = vst [vmem:[#allocation8 + $0x78] sm:$0xff] %v4658
    // Predicated region
    $region26: #{tpu_custom_call.1} parent=1 // pred_check
      _
    $region27: #{tpu_custom_call.1} parent=1 // pred_check_branch
      %4690 = sbr.rel (0) target = $region29
    $region28: #{tpu_custom_call.1} parent=1 // pred_region
      %s4692 = ssub.s32 2048, 2048
      %4693 = vsyncadd [#allocation4], %s4692
      %s4694 = sshll.u32 [#allocation8], 4
      %s4695 = int_to_ptr.vmem [resolvable:$true] %s4694
      %4700 = dma.vmem_to_hbm [thread:$0]  %s4695, 2048, %s3, [#allocation4], 128, 128, 8
    $region29: #{tpu_custom_call.1} parent=1 // pred_fallthru
      _
    // Predicated region
    $region30: #{tpu_custom_call.1} parent=1 // pred_check
      _
    $region31: #{tpu_custom_call.1} parent=1 // pred_check_branch
      %4702 = sbr.rel (0) target = $region33
    $region32: #{tpu_custom_call.1} parent=1 // pred_region
      %4703 = dma.done [#allocation4], 2048
    $region33: #{tpu_custom_call.1} parent=1 // pred_fallthru
      _
    %4704 = vsyncpa [#allocation3], 1
    %4705 = vsyncpa [#allocation6], 1
    %4706 = vsyncpa [#allocation4], 1

</llo_original>
